<compile_context>
chip_gen: v5e
topology: v5e:2x2
jax: 0.10.0
libtpu: 0.0.40
codegen_flags: <defaults>
</compile_context>

<pallas_src>
import jax
import jax.numpy as jnp
from jax.experimental import pallas as pl
from jax.experimental.pallas import tpu as pltpu

LATENT_DIMS = 256
C_CONV_IN, C_CONV_OUT, KH, KW = 6, 1, 3, 3
H_ACT, W_ACT = 62, 62                                   # unflattened plane
H_OUT, W_OUT = H_ACT + KH - 1, W_ACT + KW - 1           # 64, 64 (stride-1 convT)
K_FEAT = C_CONV_IN * H_ACT * W_ACT                      # 23064
TCOL = 4096                                             # FC output-column tile
COLS_PAD = pl.cdiv(K_FEAT, TCOL) * TCOL                 # 24576


# ---------------------------------------------------------------------------
# Linear(256 -> 23064) + ReLU.  Grid over lane-dense column tiles; each step
# does one (N,256)x(256,TCOL) MXU dot, adds bias, applies ReLU.  No reduction
# axis -> every grid step is independent ("parallel").
# ---------------------------------------------------------------------------
def fc_relu_kernel(x_ref, w_ref, b_ref, o_ref):
    y = jnp.dot(x_ref[...], w_ref[...], preferred_element_type=jnp.float32)
    o_ref[...] = jnp.maximum(y + b_ref[...], 0.0)


def fc_relu(x, w_pad, b_pad):
    n = x.shape[0]
    return pl.pallas_call(
        fc_relu_kernel,
        out_shape=jax.ShapeDtypeStruct((n, COLS_PAD), jnp.float32),
        grid_spec=pltpu.PrefetchScalarGridSpec(
            num_scalar_prefetch=0,
            grid=(COLS_PAD // TCOL,),
            in_specs=[
                pl.BlockSpec((n, LATENT_DIMS), lambda j: (0, 0)),
                pl.BlockSpec((LATENT_DIMS, TCOL), lambda j: (0, j)),
                pl.BlockSpec((1, TCOL), lambda j: (0, j)),
            ],
            out_specs=pl.BlockSpec((n, TCOL), lambda j: (0, j)),
        ),
        compiler_params=pltpu.CompilerParams(dimension_semantics=("parallel",)),
    )(x, w_pad, b_pad)


# ---------------------------------------------------------------------------
# ConvTranspose2d(6 -> 1, k=3, stride=1) + bias.  One batch element per grid
# step.  Transposed conv == correlation of the input zero-padded by (k-1)=2
# with the spatially flipped kernel, so we stage each (62,62) plane into a
# zeroed (66,128) VMEM scratch and accumulate 54 scalar*window taps on the VPU.
# ---------------------------------------------------------------------------
def convT_kernel(wf_ref, b_ref, y_ref, o_ref, pad_ref):
    pad_ref[...] = jnp.zeros_like(pad_ref)
    for c in range(C_CONV_IN):
        pad_ref[c, KH - 1:KH - 1 + H_ACT, KW - 1:KW - 1 + W_ACT] = y_ref[0, c]

    acc = jnp.full((H_OUT, W_OUT), b_ref[0], dtype=jnp.float32)
    for c in range(C_CONV_IN):
        for kh in range(KH):
            for kw in range(KW):
                w = wf_ref[c * (KH * KW) + (KH - 1 - kh) * KW + (KW - 1 - kw)]
                acc = acc + w * pad_ref[c, kh:kh + H_OUT, kw:kw + W_OUT]
    o_ref[0, 0] = acc


def conv_transpose(y_act, conv_w_flat, conv_b):
    n = y_act.shape[0]
    return pl.pallas_call(
        convT_kernel,
        out_shape=jax.ShapeDtypeStruct((n, C_CONV_OUT, H_OUT, W_OUT), jnp.float32),
        grid_spec=pltpu.PrefetchScalarGridSpec(
            num_scalar_prefetch=2,                      # conv weights, bias -> SMEM
            grid=(n,),
            in_specs=[
                pl.BlockSpec((1, C_CONV_IN, H_ACT, W_ACT),
                             lambda i, w, b: (i, 0, 0, 0)),
            ],
            out_specs=pl.BlockSpec((1, C_CONV_OUT, H_OUT, W_OUT),
                                   lambda i, w, b: (i, 0, 0, 0)),
            scratch_shapes=[
                pltpu.VMEM((C_CONV_IN, H_ACT + 2 * (KH - 1), 128), jnp.float32),
            ],
        ),
        compiler_params=pltpu.CompilerParams(dimension_semantics=("parallel",)),
    )(conv_w_flat, conv_b, y_act)


# ---------------------------------------------------------------------------
# One-time parameter layout prep (runs once at init, outside the forward).
# fc_w: (K_FEAT, 256) == torch fc.weight; fc_b: (K_FEAT,)
# ---------------------------------------------------------------------------
def prepare_fc_params(fc_w, fc_b):
    w_pad = jnp.zeros((LATENT_DIMS, COLS_PAD), jnp.float32)
    w_pad = w_pad.at[:, :K_FEAT].set(fc_w.T)
    b_pad = jnp.zeros((1, COLS_PAD), jnp.float32).at[0, :K_FEAT].set(fc_b)
    return w_pad, b_pad


@jax.jit
def decoder_forward(x, w_pad, b_pad, conv_w_flat, conv_b):
    n = x.shape[0]
    y = fc_relu(x, w_pad, b_pad)                                  # (N, COLS_PAD)
    act = y[:, :K_FEAT].reshape(n, C_CONV_IN, H_ACT, W_ACT)       # ~184 KB glue
    return conv_transpose(act, conv_w_flat, conv_b)               # (N, 1, 64, 64)


# Pure-JAX reference for verification.
def decoder_reference(x, fc_w, fc_b, conv_w, conv_b):
    y = jnp.maximum(
        jnp.dot(x, fc_w.T, precision=jax.lax.Precision.HIGHEST) + fc_b, 0.0)
    y = y.reshape(x.shape[0], C_CONV_IN, H_ACT, W_ACT)
    # ConvTranspose2d(stride=1, pad=0) == full-pad correlation with flipped kernel.
    rhs = jnp.flip(jnp.transpose(conv_w, (1, 0, 2, 3)), axis=(2, 3))   # OIHW
    out = jax.lax.conv_general_dilated(
        y, rhs, window_strides=(1, 1),
        padding=((KH - 1, KH - 1), (KW - 1, KW - 1)),
        dimension_numbers=("NCHW", "OIHW", "NCHW"),
        precision=jax.lax.Precision.HIGHEST)
    return out + conv_b[None, :, None, None]


if __name__ == "__main__":
    key = jax.random.PRNGKey(0)
    k_x, k_fw, k_fb, k_cw, k_cb = jax.random.split(key, 5)

    N = 2
    x = jax.random.normal(k_x, (N, LATENT_DIMS), dtype=jnp.float32)

    # Deterministic synthetic parameters (shapes match the nn.Module).
    fc_w = jax.random.normal(k_fw, (K_FEAT, LATENT_DIMS), dtype=jnp.float32) * 0.01
    fc_b = jax.random.normal(k_fb, (K_FEAT,), dtype=jnp.float32) * 0.1
    conv_w = jax.random.normal(k_cw, (C_CONV_IN, C_CONV_OUT, KH, KW),
                               dtype=jnp.float32) * 0.2
    conv_b = jax.random.normal(k_cb, (C_CONV_OUT,), dtype=jnp.float32) * 0.1

    # Pre-layout the FC weight/bias once (NOT per forward call).
    w_pad, b_pad = prepare_fc_params(fc_w, fc_b)
    conv_w_flat = conv_w.reshape(-1)

    out = decoder_forward(x, w_pad, b_pad, conv_w_flat, conv_b)
    out = jax.block_until_ready(out)
    assert out.shape == (N, C_CONV_OUT, H_OUT, W_OUT), out.shape

    ref = jax.block_until_ready(decoder_reference(x, fc_w, fc_b, conv_w, conv_b))
    assert jnp.allclose(out, ref, rtol=1e-3, atol=1e-3), \
        float(jnp.max(jnp.abs(out - ref)))

    print("KERNEL_OK")
</pallas_src>

<mosaic_0001>
module attributes {stable_mosaic.version = 11 : i64} {
  func.func @convT_kernel(%arg0: i32, %arg1: memref<54xf32, #tpu.memory_space<smem>>, %arg2: memref<1xf32, #tpu.memory_space<smem>>, %arg3: memref<1x6x62x62xf32, #tpu.memory_space<vmem>>, %arg4: memref<1x1x64x64xf32, #tpu.memory_space<vmem>>, %arg5: memref<6x66x128xf32, #tpu.memory_space<vmem>>) attributes {dimension_semantics = [#tpu.dimension_semantics<parallel>], iteration_bounds = array<i64: 2>, scalar_prefetch = 2 : i64, scratch_operands = 1 : i64, tpu.core_type = #tpu.core_type<tc>, window_params = [{transform_indices = @transform_0, window_bounds = array<i64: 1, 6, 62, 62>}, {transform_indices = @transform_1, window_bounds = array<i64: 1, 1, 64, 64>}]} {
    %cst = arith.constant 0.000000e+00 : f32
    %0 = vector.broadcast %cst : f32 to vector<6x66x128xf32>
    %c0 = arith.constant 0 : index
    %c0_0 = arith.constant 0 : index
    %c0_1 = arith.constant 0 : index
    %1 = vector.load %arg5[%c0, %c0_0, %c0_1] : memref<6x66x128xf32, #tpu.memory_space<vmem>>, vector<6x66x128xf32>
    tpu.vector_store %arg5[%c0, %c0_0, %c0_1], %0 {strides = array<i32>} : memref<6x66x128xf32, #tpu.memory_space<vmem>>, vector<6x66x128xf32>,
    %c0_2 = arith.constant 0 : index
    %c0_3 = arith.constant 0 : index
    %c0_4 = arith.constant 0 : index
    %c0_5 = arith.constant 0 : index
    %2 = vector.load %arg3[%c0_2, %c0_3, %c0_4, %c0_5] : memref<1x6x62x62xf32, #tpu.memory_space<vmem>>, vector<1x1x62x62xf32>
    %3 = vector.shape_cast %2 : vector<1x1x62x62xf32> to vector<62x62xf32>
    %c0_6 = arith.constant 0 : index
    %c2 = arith.constant 2 : index
    %c2_7 = arith.constant 2 : index
    %4 = vector.load %arg5[%c0_6, %c2, %c2_7] : memref<6x66x128xf32, #tpu.memory_space<vmem>>, vector<1x62x62xf32>
    %5 = vector.shape_cast %4 : vector<1x62x62xf32> to vector<62x62xf32>
    %6 = vector.shape_cast %3 : vector<62x62xf32> to vector<1x62x62xf32>
    tpu.vector_store %arg5[%c0_6, %c2, %c2_7], %6 {strides = array<i32>} : memref<6x66x128xf32, #tpu.memory_space<vmem>>, vector<1x62x62xf32>,
    %c0_8 = arith.constant 0 : index
    %c1 = arith.constant 1 : index
    %c0_9 = arith.constant 0 : index
    %c0_10 = arith.constant 0 : index
    %7 = vector.load %arg3[%c0_8, %c1, %c0_9, %c0_10] : memref<1x6x62x62xf32, #tpu.memory_space<vmem>>, vector<1x1x62x62xf32>
    %8 = vector.shape_cast %7 : vector<1x1x62x62xf32> to vector<62x62xf32>
    %c1_11 = arith.constant 1 : index
    %c2_12 = arith.constant 2 : index
    %c2_13 = arith.constant 2 : index
    %9 = vector.load %arg5[%c1_11, %c2_12, %c2_13] : memref<6x66x128xf32, #tpu.memory_space<vmem>>, vector<1x62x62xf32>
    %10 = vector.shape_cast %9 : vector<1x62x62xf32> to vector<62x62xf32>
    %11 = vector.shape_cast %8 : vector<62x62xf32> to vector<1x62x62xf32>
    tpu.vector_store %arg5[%c1_11, %c2_12, %c2_13], %11 {strides = array<i32>} : memref<6x66x128xf32, #tpu.memory_space<vmem>>, vector<1x62x62xf32>,
    %c0_14 = arith.constant 0 : index
    %c2_15 = arith.constant 2 : index
    %c0_16 = arith.constant 0 : index
    %c0_17 = arith.constant 0 : index
    %12 = vector.load %arg3[%c0_14, %c2_15, %c0_16, %c0_17] : memref<1x6x62x62xf32, #tpu.memory_space<vmem>>, vector<1x1x62x62xf32>
    %13 = vector.shape_cast %12 : vector<1x1x62x62xf32> to vector<62x62xf32>
    %c2_18 = arith.constant 2 : index
    %c2_19 = arith.constant 2 : index
    %c2_20 = arith.constant 2 : index
    %14 = vector.load %arg5[%c2_18, %c2_19, %c2_20] : memref<6x66x128xf32, #tpu.memory_space<vmem>>, vector<1x62x62xf32>
    %15 = vector.shape_cast %14 : vector<1x62x62xf32> to vector<62x62xf32>
    %16 = vector.shape_cast %13 : vector<62x62xf32> to vector<1x62x62xf32>
    tpu.vector_store %arg5[%c2_18, %c2_19, %c2_20], %16 {strides = array<i32>} : memref<6x66x128xf32, #tpu.memory_space<vmem>>, vector<1x62x62xf32>,
    %c0_21 = arith.constant 0 : index
    %c3 = arith.constant 3 : index
    %c0_22 = arith.constant 0 : index
    %c0_23 = arith.constant 0 : index
    %17 = vector.load %arg3[%c0_21, %c3, %c0_22, %c0_23] : memref<1x6x62x62xf32, #tpu.memory_space<vmem>>, vector<1x1x62x62xf32>
    %18 = vector.shape_cast %17 : vector<1x1x62x62xf32> to vector<62x62xf32>
    %c3_24 = arith.constant 3 : index
    %c2_25 = arith.constant 2 : index
    %c2_26 = arith.constant 2 : index
    %19 = vector.load %arg5[%c3_24, %c2_25, %c2_26] : memref<6x66x128xf32, #tpu.memory_space<vmem>>, vector<1x62x62xf32>
    %20 = vector.shape_cast %19 : vector<1x62x62xf32> to vector<62x62xf32>
    %21 = vector.shape_cast %18 : vector<62x62xf32> to vector<1x62x62xf32>
    tpu.vector_store %arg5[%c3_24, %c2_25, %c2_26], %21 {strides = array<i32>} : memref<6x66x128xf32, #tpu.memory_space<vmem>>, vector<1x62x62xf32>,
    %c0_27 = arith.constant 0 : index
    %c4 = arith.constant 4 : index
    %c0_28 = arith.constant 0 : index
    %c0_29 = arith.constant 0 : index
    %22 = vector.load %arg3[%c0_27, %c4, %c0_28, %c0_29] : memref<1x6x62x62xf32, #tpu.memory_space<vmem>>, vector<1x1x62x62xf32>
    %23 = vector.shape_cast %22 : vector<1x1x62x62xf32> to vector<62x62xf32>
    %c4_30 = arith.constant 4 : index
    %c2_31 = arith.constant 2 : index
    %c2_32 = arith.constant 2 : index
    %24 = vector.load %arg5[%c4_30, %c2_31, %c2_32] : memref<6x66x128xf32, #tpu.memory_space<vmem>>, vector<1x62x62xf32>
    %25 = vector.shape_cast %24 : vector<1x62x62xf32> to vector<62x62xf32>
    %26 = vector.shape_cast %23 : vector<62x62xf32> to vector<1x62x62xf32>
    tpu.vector_store %arg5[%c4_30, %c2_31, %c2_32], %26 {strides = array<i32>} : memref<6x66x128xf32, #tpu.memory_space<vmem>>, vector<1x62x62xf32>,
    %c0_33 = arith.constant 0 : index
    %c5 = arith.constant 5 : index
    %c0_34 = arith.constant 0 : index
    %c0_35 = arith.constant 0 : index
    %27 = vector.load %arg3[%c0_33, %c5, %c0_34, %c0_35] : memref<1x6x62x62xf32, #tpu.memory_space<vmem>>, vector<1x1x62x62xf32>
    %28 = vector.shape_cast %27 : vector<1x1x62x62xf32> to vector<62x62xf32>
    %c5_36 = arith.constant 5 : index
    %c2_37 = arith.constant 2 : index
    %c2_38 = arith.constant 2 : index
    %29 = vector.load %arg5[%c5_36, %c2_37, %c2_38] : memref<6x66x128xf32, #tpu.memory_space<vmem>>, vector<1x62x62xf32>
    %30 = vector.shape_cast %29 : vector<1x62x62xf32> to vector<62x62xf32>
    %31 = vector.shape_cast %28 : vector<62x62xf32> to vector<1x62x62xf32>
    tpu.vector_store %arg5[%c5_36, %c2_37, %c2_38], %31 {strides = array<i32>} : memref<6x66x128xf32, #tpu.memory_space<vmem>>, vector<1x62x62xf32>,
    %c0_39 = arith.constant 0 : index
    %32 = memref.load %arg2[%c0_39] : memref<1xf32, #tpu.memory_space<smem>>
    %33 = vector.broadcast %32 : f32 to vector<64x64xf32>
    %c8 = arith.constant 8 : index
    %34 = memref.load %arg1[%c8] : memref<54xf32, #tpu.memory_space<smem>>
    %c0_40 = arith.constant 0 : index
    %c0_41 = arith.constant 0 : index
    %c0_42 = arith.constant 0 : index
    %35 = vector.load %arg5[%c0_40, %c0_41, %c0_42] : memref<6x66x128xf32, #tpu.memory_space<vmem>>, vector<1x64x64xf32>
    %36 = vector.shape_cast %35 : vector<1x64x64xf32> to vector<64x64xf32>
    %37 = vector.broadcast %34 : f32 to vector<64x64xf32>
    %38 = arith.mulf %37, %36 : vector<64x64xf32>
    %39 = arith.addf %33, %38 : vector<64x64xf32>
    %c7 = arith.constant 7 : index
    %40 = memref.load %arg1[%c7] : memref<54xf32, #tpu.memory_space<smem>>
    %c0_43 = arith.constant 0 : index
    %c0_44 = arith.constant 0 : index
    %c1_45 = arith.constant 1 : index
    %41 = vector.load %arg5[%c0_43, %c0_44, %c1_45] : memref<6x66x128xf32, #tpu.memory_space<vmem>>, vector<1x64x64xf32>
    %42 = vector.shape_cast %41 : vector<1x64x64xf32> to vector<64x64xf32>
    %43 = vector.broadcast %40 : f32 to vector<64x64xf32>
    %44 = arith.mulf %43, %42 : vector<64x64xf32>
    %45 = arith.addf %39, %44 : vector<64x64xf32>
    %c6 = arith.constant 6 : index
    %46 = memref.load %arg1[%c6] : memref<54xf32, #tpu.memory_space<smem>>
    %c0_46 = arith.constant 0 : index
    %c0_47 = arith.constant 0 : index
    %c2_48 = arith.constant 2 : index
    %47 = vector.load %arg5[%c0_46, %c0_47, %c2_48] : memref<6x66x128xf32, #tpu.memory_space<vmem>>, vector<1x64x64xf32>
    %48 = vector.shape_cast %47 : vector<1x64x64xf32> to vector<64x64xf32>
    %49 = vector.broadcast %46 : f32 to vector<64x64xf32>
    %50 = arith.mulf %49, %48 : vector<64x64xf32>
    %51 = arith.addf %45, %50 : vector<64x64xf32>
    %c5_49 = arith.constant 5 : index
    %52 = memref.load %arg1[%c5_49] : memref<54xf32, #tpu.memory_space<smem>>
    %c0_50 = arith.constant 0 : index
    %c1_51 = arith.constant 1 : index
    %c0_52 = arith.constant 0 : index
    %53 = vector.load %arg5[%c0_50, %c1_51, %c0_52] : memref<6x66x128xf32, #tpu.memory_space<vmem>>, vector<1x64x64xf32>
    %54 = vector.shape_cast %53 : vector<1x64x64xf32> to vector<64x64xf32>
    %55 = vector.broadcast %52 : f32 to vector<64x64xf32>
    %56 = arith.mulf %55, %54 : vector<64x64xf32>
    %57 = arith.addf %51, %56 : vector<64x64xf32>
    %c4_53 = arith.constant 4 : index
    %58 = memref.load %arg1[%c4_53] : memref<54xf32, #tpu.memory_space<smem>>
    %c0_54 = arith.constant 0 : index
    %c1_55 = arith.constant 1 : index
    %c1_56 = arith.constant 1 : index
    %59 = vector.load %arg5[%c0_54, %c1_55, %c1_56] : memref<6x66x128xf32, #tpu.memory_space<vmem>>, vector<1x64x64xf32>
    %60 = vector.shape_cast %59 : vector<1x64x64xf32> to vector<64x64xf32>
    %61 = vector.broadcast %58 : f32 to vector<64x64xf32>
    %62 = arith.mulf %61, %60 : vector<64x64xf32>
    %63 = arith.addf %57, %62 : vector<64x64xf32>
    %c3_57 = arith.constant 3 : index
    %64 = memref.load %arg1[%c3_57] : memref<54xf32, #tpu.memory_space<smem>>
    %c0_58 = arith.constant 0 : index
    %c1_59 = arith.constant 1 : index
    %c2_60 = arith.constant 2 : index
    %65 = vector.load %arg5[%c0_58, %c1_59, %c2_60] : memref<6x66x128xf32, #tpu.memory_space<vmem>>, vector<1x64x64xf32>
    %66 = vector.shape_cast %65 : vector<1x64x64xf32> to vector<64x64xf32>
    %67 = vector.broadcast %64 : f32 to vector<64x64xf32>
    %68 = arith.mulf %67, %66 : vector<64x64xf32>
    %69 = arith.addf %63, %68 : vector<64x64xf32>
    %c2_61 = arith.constant 2 : index
    %70 = memref.load %arg1[%c2_61] : memref<54xf32, #tpu.memory_space<smem>>
    %c0_62 = arith.constant 0 : index
    %c2_63 = arith.constant 2 : index
    %c0_64 = arith.constant 0 : index
    %71 = vector.load %arg5[%c0_62, %c2_63, %c0_64] : memref<6x66x128xf32, #tpu.memory_space<vmem>>, vector<1x64x64xf32>
    %72 = vector.shape_cast %71 : vector<1x64x64xf32> to vector<64x64xf32>
    %73 = vector.broadcast %70 : f32 to vector<64x64xf32>
    %74 = arith.mulf %73, %72 : vector<64x64xf32>
    %75 = arith.addf %69, %74 : vector<64x64xf32>
    %c1_65 = arith.constant 1 : index
    %76 = memref.load %arg1[%c1_65] : memref<54xf32, #tpu.memory_space<smem>>
    %c0_66 = arith.constant 0 : index
    %c2_67 = arith.constant 2 : index
    %c1_68 = arith.constant 1 : index
    %77 = vector.load %arg5[%c0_66, %c2_67, %c1_68] : memref<6x66x128xf32, #tpu.memory_space<vmem>>, vector<1x64x64xf32>
    %78 = vector.shape_cast %77 : vector<1x64x64xf32> to vector<64x64xf32>
    %79 = vector.broadcast %76 : f32 to vector<64x64xf32>
    %80 = arith.mulf %79, %78 : vector<64x64xf32>
    %81 = arith.addf %75, %80 : vector<64x64xf32>
    %c0_69 = arith.constant 0 : index
    %82 = memref.load %arg1[%c0_69] : memref<54xf32, #tpu.memory_space<smem>>
    %c0_70 = arith.constant 0 : index
    %c2_71 = arith.constant 2 : index
    %c2_72 = arith.constant 2 : index
    %83 = vector.load %arg5[%c0_70, %c2_71, %c2_72] : memref<6x66x128xf32, #tpu.memory_space<vmem>>, vector<1x64x64xf32>
    %84 = vector.shape_cast %83 : vector<1x64x64xf32> to vector<64x64xf32>
    %85 = vector.broadcast %82 : f32 to vector<64x64xf32>
    %86 = arith.mulf %85, %84 : vector<64x64xf32>
    %87 = arith.addf %81, %86 : vector<64x64xf32>
    %c17 = arith.constant 17 : index
    %88 = memref.load %arg1[%c17] : memref<54xf32, #tpu.memory_space<smem>>
    %c1_73 = arith.constant 1 : index
    %c0_74 = arith.constant 0 : index
    %c0_75 = arith.constant 0 : index
    %89 = vector.load %arg5[%c1_73, %c0_74, %c0_75] : memref<6x66x128xf32, #tpu.memory_space<vmem>>, vector<1x64x64xf32>
    %90 = vector.shape_cast %89 : vector<1x64x64xf32> to vector<64x64xf32>
    %91 = vector.broadcast %88 : f32 to vector<64x64xf32>
    %92 = arith.mulf %91, %90 : vector<64x64xf32>
    %93 = arith.addf %87, %92 : vector<64x64xf32>
    %c16 = arith.constant 16 : index
    %94 = memref.load %arg1[%c16] : memref<54xf32, #tpu.memory_space<smem>>
    %c1_76 = arith.constant 1 : index
    %c0_77 = arith.constant 0 : index
    %c1_78 = arith.constant 1 : index
    %95 = vector.load %arg5[%c1_76, %c0_77, %c1_78] : memref<6x66x128xf32, #tpu.memory_space<vmem>>, vector<1x64x64xf32>
    %96 = vector.shape_cast %95 : vector<1x64x64xf32> to vector<64x64xf32>
    %97 = vector.broadcast %94 : f32 to vector<64x64xf32>
    %98 = arith.mulf %97, %96 : vector<64x64xf32>
    %99 = arith.addf %93, %98 : vector<64x64xf32>
    %c15 = arith.constant 15 : index
    %100 = memref.load %arg1[%c15] : memref<54xf32, #tpu.memory_space<smem>>
    %c1_79 = arith.constant 1 : index
    %c0_80 = arith.constant 0 : index
    %c2_81 = arith.constant 2 : index
    %101 = vector.load %arg5[%c1_79, %c0_80, %c2_81] : memref<6x66x128xf32, #tpu.memory_space<vmem>>, vector<1x64x64xf32>
    %102 = vector.shape_cast %101 : vector<1x64x64xf32> to vector<64x64xf32>
    %103 = vector.broadcast %100 : f32 to vector<64x64xf32>
    %104 = arith.mulf %103, %102 : vector<64x64xf32>
    %105 = arith.addf %99, %104 : vector<64x64xf32>
    %c14 = arith.constant 14 : index
    %106 = memref.load %arg1[%c14] : memref<54xf32, #tpu.memory_space<smem>>
    %c1_82 = arith.constant 1 : index
    %c1_83 = arith.constant 1 : index
    %c0_84 = arith.constant 0 : index
    %107 = vector.load %arg5[%c1_82, %c1_83, %c0_84] : memref<6x66x128xf32, #tpu.memory_space<vmem>>, vector<1x64x64xf32>
    %108 = vector.shape_cast %107 : vector<1x64x64xf32> to vector<64x64xf32>
    %109 = vector.broadcast %106 : f32 to vector<64x64xf32>
    %110 = arith.mulf %109, %108 : vector<64x64xf32>
    %111 = arith.addf %105, %110 : vector<64x64xf32>
    %c13 = arith.constant 13 : index
    %112 = memref.load %arg1[%c13] : memref<54xf32, #tpu.memory_space<smem>>
    %c1_85 = arith.constant 1 : index
    %c1_86 = arith.constant 1 : index
    %c1_87 = arith.constant 1 : index
    %113 = vector.load %arg5[%c1_85, %c1_86, %c1_87] : memref<6x66x128xf32, #tpu.memory_space<vmem>>, vector<1x64x64xf32>
    %114 = vector.shape_cast %113 : vector<1x64x64xf32> to vector<64x64xf32>
    %115 = vector.broadcast %112 : f32 to vector<64x64xf32>
    %116 = arith.mulf %115, %114 : vector<64x64xf32>
    %117 = arith.addf %111, %116 : vector<64x64xf32>
    %c12 = arith.constant 12 : index
    %118 = memref.load %arg1[%c12] : memref<54xf32, #tpu.memory_space<smem>>
    %c1_88 = arith.constant 1 : index
    %c1_89 = arith.constant 1 : index
    %c2_90 = arith.constant 2 : index
    %119 = vector.load %arg5[%c1_88, %c1_89, %c2_90] : memref<6x66x128xf32, #tpu.memory_space<vmem>>, vector<1x64x64xf32>
    %120 = vector.shape_cast %119 : vector<1x64x64xf32> to vector<64x64xf32>
    %121 = vector.broadcast %118 : f32 to vector<64x64xf32>
    %122 = arith.mulf %121, %120 : vector<64x64xf32>
    %123 = arith.addf %117, %122 : vector<64x64xf32>
    %c11 = arith.constant 11 : index
    %124 = memref.load %arg1[%c11] : memref<54xf32, #tpu.memory_space<smem>>
    %c1_91 = arith.constant 1 : index
    %c2_92 = arith.constant 2 : index
    %c0_93 = arith.constant 0 : index
    %125 = vector.load %arg5[%c1_91, %c2_92, %c0_93] : memref<6x66x128xf32, #tpu.memory_space<vmem>>, vector<1x64x64xf32>
    %126 = vector.shape_cast %125 : vector<1x64x64xf32> to vector<64x64xf32>
    %127 = vector.broadcast %124 : f32 to vector<64x64xf32>
    %128 = arith.mulf %127, %126 : vector<64x64xf32>
    %129 = arith.addf %123, %128 : vector<64x64xf32>
    %c10 = arith.constant 10 : index
    %130 = memref.load %arg1[%c10] : memref<54xf32, #tpu.memory_space<smem>>
    %c1_94 = arith.constant 1 : index
    %c2_95 = arith.constant 2 : index
    %c1_96 = arith.constant 1 : index
    %131 = vector.load %arg5[%c1_94, %c2_95, %c1_96] : memref<6x66x128xf32, #tpu.memory_space<vmem>>, vector<1x64x64xf32>
    %132 = vector.shape_cast %131 : vector<1x64x64xf32> to vector<64x64xf32>
    %133 = vector.broadcast %130 : f32 to vector<64x64xf32>
    %134 = arith.mulf %133, %132 : vector<64x64xf32>
    %135 = arith.addf %129, %134 : vector<64x64xf32>
    %c9 = arith.constant 9 : index
    %136 = memref.load %arg1[%c9] : memref<54xf32, #tpu.memory_space<smem>>
    %c1_97 = arith.constant 1 : index
    %c2_98 = arith.constant 2 : index
    %c2_99 = arith.constant 2 : index
    %137 = vector.load %arg5[%c1_97, %c2_98, %c2_99] : memref<6x66x128xf32, #tpu.memory_space<vmem>>, vector<1x64x64xf32>
    %138 = vector.shape_cast %137 : vector<1x64x64xf32> to vector<64x64xf32>
    %139 = vector.broadcast %136 : f32 to vector<64x64xf32>
    %140 = arith.mulf %139, %138 : vector<64x64xf32>
    %141 = arith.addf %135, %140 : vector<64x64xf32>
    %c26 = arith.constant 26 : index
    %142 = memref.load %arg1[%c26] : memref<54xf32, #tpu.memory_space<smem>>
    %c2_100 = arith.constant 2 : index
    %c0_101 = arith.constant 0 : index
    %c0_102 = arith.constant 0 : index
    %143 = vector.load %arg5[%c2_100, %c0_101, %c0_102] : memref<6x66x128xf32, #tpu.memory_space<vmem>>, vector<1x64x64xf32>
    %144 = vector.shape_cast %143 : vector<1x64x64xf32> to vector<64x64xf32>
    %145 = vector.broadcast %142 : f32 to vector<64x64xf32>
    %146 = arith.mulf %145, %144 : vector<64x64xf32>
    %147 = arith.addf %141, %146 : vector<64x64xf32>
    %c25 = arith.constant 25 : index
    %148 = memref.load %arg1[%c25] : memref<54xf32, #tpu.memory_space<smem>>
    %c2_103 = arith.constant 2 : index
    %c0_104 = arith.constant 0 : index
    %c1_105 = arith.constant 1 : index
    %149 = vector.load %arg5[%c2_103, %c0_104, %c1_105] : memref<6x66x128xf32, #tpu.memory_space<vmem>>, vector<1x64x64xf32>
    %150 = vector.shape_cast %149 : vector<1x64x64xf32> to vector<64x64xf32>
    %151 = vector.broadcast %148 : f32 to vector<64x64xf32>
    %152 = arith.mulf %151, %150 : vector<64x64xf32>
    %153 = arith.addf %147, %152 : vector<64x64xf32>
    %c24 = arith.constant 24 : index
    %154 = memref.load %arg1[%c24] : memref<54xf32, #tpu.memory_space<smem>>
    %c2_106 = arith.constant 2 : index
    %c0_107 = arith.constant 0 : index
    %c2_108 = arith.constant 2 : index
    %155 = vector.load %arg5[%c2_106, %c0_107, %c2_108] : memref<6x66x128xf32, #tpu.memory_space<vmem>>, vector<1x64x64xf32>
    %156 = vector.shape_cast %155 : vector<1x64x64xf32> to vector<64x64xf32>
    %157 = vector.broadcast %154 : f32 to vector<64x64xf32>
    %158 = arith.mulf %157, %156 : vector<64x64xf32>
    %159 = arith.addf %153, %158 : vector<64x64xf32>
    %c23 = arith.constant 23 : index
    %160 = memref.load %arg1[%c23] : memref<54xf32, #tpu.memory_space<smem>>
    %c2_109 = arith.constant 2 : index
    %c1_110 = arith.constant 1 : index
    %c0_111 = arith.constant 0 : index
    %161 = vector.load %arg5[%c2_109, %c1_110, %c0_111] : memref<6x66x128xf32, #tpu.memory_space<vmem>>, vector<1x64x64xf32>
    %162 = vector.shape_cast %161 : vector<1x64x64xf32> to vector<64x64xf32>
    %163 = vector.broadcast %160 : f32 to vector<64x64xf32>
    %164 = arith.mulf %163, %162 : vector<64x64xf32>
    %165 = arith.addf %159, %164 : vector<64x64xf32>
    %c22 = arith.constant 22 : index
    %166 = memref.load %arg1[%c22] : memref<54xf32, #tpu.memory_space<smem>>
    %c2_112 = arith.constant 2 : index
    %c1_113 = arith.constant 1 : index
    %c1_114 = arith.constant 1 : index
    %167 = vector.load %arg5[%c2_112, %c1_113, %c1_114] : memref<6x66x128xf32, #tpu.memory_space<vmem>>, vector<1x64x64xf32>
    %168 = vector.shape_cast %167 : vector<1x64x64xf32> to vector<64x64xf32>
    %169 = vector.broadcast %166 : f32 to vector<64x64xf32>
    %170 = arith.mulf %169, %168 : vector<64x64xf32>
    %171 = arith.addf %165, %170 : vector<64x64xf32>
    %c21 = arith.constant 21 : index
    %172 = memref.load %arg1[%c21] : memref<54xf32, #tpu.memory_space<smem>>
    %c2_115 = arith.constant 2 : index
    %c1_116 = arith.constant 1 : index
    %c2_117 = arith.constant 2 : index
    %173 = vector.load %arg5[%c2_115, %c1_116, %c2_117] : memref<6x66x128xf32, #tpu.memory_space<vmem>>, vector<1x64x64xf32>
    %174 = vector.shape_cast %173 : vector<1x64x64xf32> to vector<64x64xf32>
    %175 = vector.broadcast %172 : f32 to vector<64x64xf32>
    %176 = arith.mulf %175, %174 : vector<64x64xf32>
    %177 = arith.addf %171, %176 : vector<64x64xf32>
    %c20 = arith.constant 20 : index
    %178 = memref.load %arg1[%c20] : memref<54xf32, #tpu.memory_space<smem>>
    %c2_118 = arith.constant 2 : index
    %c2_119 = arith.constant 2 : index
    %c0_120 = arith.constant 0 : index
    %179 = vector.load %arg5[%c2_118, %c2_119, %c0_120] : memref<6x66x128xf32, #tpu.memory_space<vmem>>, vector<1x64x64xf32>
    %180 = vector.shape_cast %179 : vector<1x64x64xf32> to vector<64x64xf32>
    %181 = vector.broadcast %178 : f32 to vector<64x64xf32>
    %182 = arith.mulf %181, %180 : vector<64x64xf32>
    %183 = arith.addf %177, %182 : vector<64x64xf32>
    %c19 = arith.constant 19 : index
    %184 = memref.load %arg1[%c19] : memref<54xf32, #tpu.memory_space<smem>>
    %c2_121 = arith.constant 2 : index
    %c2_122 = arith.constant 2 : index
    %c1_123 = arith.constant 1 : index
    %185 = vector.load %arg5[%c2_121, %c2_122, %c1_123] : memref<6x66x128xf32, #tpu.memory_space<vmem>>, vector<1x64x64xf32>
    %186 = vector.shape_cast %185 : vector<1x64x64xf32> to vector<64x64xf32>
    %187 = vector.broadcast %184 : f32 to vector<64x64xf32>
    %188 = arith.mulf %187, %186 : vector<64x64xf32>
    %189 = arith.addf %183, %188 : vector<64x64xf32>
    %c18 = arith.constant 18 : index
    %190 = memref.load %arg1[%c18] : memref<54xf32, #tpu.memory_space<smem>>
    %c2_124 = arith.constant 2 : index
    %c2_125 = arith.constant 2 : index
    %c2_126 = arith.constant 2 : index
    %191 = vector.load %arg5[%c2_124, %c2_125, %c2_126] : memref<6x66x128xf32, #tpu.memory_space<vmem>>, vector<1x64x64xf32>
    %192 = vector.shape_cast %191 : vector<1x64x64xf32> to vector<64x64xf32>
    %193 = vector.broadcast %190 : f32 to vector<64x64xf32>
    %194 = arith.mulf %193, %192 : vector<64x64xf32>
    %195 = arith.addf %189, %194 : vector<64x64xf32>
    %c35 = arith.constant 35 : index
    %196 = memref.load %arg1[%c35] : memref<54xf32, #tpu.memory_space<smem>>
    %c3_127 = arith.constant 3 : index
    %c0_128 = arith.constant 0 : index
    %c0_129 = arith.constant 0 : index
    %197 = vector.load %arg5[%c3_127, %c0_128, %c0_129] : memref<6x66x128xf32, #tpu.memory_space<vmem>>, vector<1x64x64xf32>
    %198 = vector.shape_cast %197 : vector<1x64x64xf32> to vector<64x64xf32>
    %199 = vector.broadcast %196 : f32 to vector<64x64xf32>
    %200 = arith.mulf %199, %198 : vector<64x64xf32>
    %201 = arith.addf %195, %200 : vector<64x64xf32>
    %c34 = arith.constant 34 : index
    %202 = memref.load %arg1[%c34] : memref<54xf32, #tpu.memory_space<smem>>
    %c3_130 = arith.constant 3 : index
    %c0_131 = arith.constant 0 : index
    %c1_132 = arith.constant 1 : index
    %203 = vector.load %arg5[%c3_130, %c0_131, %c1_132] : memref<6x66x128xf32, #tpu.memory_space<vmem>>, vector<1x64x64xf32>
    %204 = vector.shape_cast %203 : vector<1x64x64xf32> to vector<64x64xf32>
    %205 = vector.broadcast %202 : f32 to vector<64x64xf32>
    %206 = arith.mulf %205, %204 : vector<64x64xf32>
    %207 = arith.addf %201, %206 : vector<64x64xf32>
    %c33 = arith.constant 33 : index
    %208 = memref.load %arg1[%c33] : memref<54xf32, #tpu.memory_space<smem>>
    %c3_133 = arith.constant 3 : index
    %c0_134 = arith.constant 0 : index
    %c2_135 = arith.constant 2 : index
    %209 = vector.load %arg5[%c3_133, %c0_134, %c2_135] : memref<6x66x128xf32, #tpu.memory_space<vmem>>, vector<1x64x64xf32>
    %210 = vector.shape_cast %209 : vector<1x64x64xf32> to vector<64x64xf32>
    %211 = vector.broadcast %208 : f32 to vector<64x64xf32>
    %212 = arith.mulf %211, %210 : vector<64x64xf32>
    %213 = arith.addf %207, %212 : vector<64x64xf32>
    %c32 = arith.constant 32 : index
    %214 = memref.load %arg1[%c32] : memref<54xf32, #tpu.memory_space<smem>>
    %c3_136 = arith.constant 3 : index
    %c1_137 = arith.constant 1 : index
    %c0_138 = arith.constant 0 : index
    %215 = vector.load %arg5[%c3_136, %c1_137, %c0_138] : memref<6x66x128xf32, #tpu.memory_space<vmem>>, vector<1x64x64xf32>
    %216 = vector.shape_cast %215 : vector<1x64x64xf32> to vector<64x64xf32>
    %217 = vector.broadcast %214 : f32 to vector<64x64xf32>
    %218 = arith.mulf %217, %216 : vector<64x64xf32>
    %219 = arith.addf %213, %218 : vector<64x64xf32>
    %c31 = arith.constant 31 : index
    %220 = memref.load %arg1[%c31] : memref<54xf32, #tpu.memory_space<smem>>
    %c3_139 = arith.constant 3 : index
    %c1_140 = arith.constant 1 : index
    %c1_141 = arith.constant 1 : index
    %221 = vector.load %arg5[%c3_139, %c1_140, %c1_141] : memref<6x66x128xf32, #tpu.memory_space<vmem>>, vector<1x64x64xf32>
    %222 = vector.shape_cast %221 : vector<1x64x64xf32> to vector<64x64xf32>
    %223 = vector.broadcast %220 : f32 to vector<64x64xf32>
    %224 = arith.mulf %223, %222 : vector<64x64xf32>
    %225 = arith.addf %219, %224 : vector<64x64xf32>
    %c30 = arith.constant 30 : index
    %226 = memref.load %arg1[%c30] : memref<54xf32, #tpu.memory_space<smem>>
    %c3_142 = arith.constant 3 : index
    %c1_143 = arith.constant 1 : index
    %c2_144 = arith.constant 2 : index
    %227 = vector.load %arg5[%c3_142, %c1_143, %c2_144] : memref<6x66x128xf32, #tpu.memory_space<vmem>>, vector<1x64x64xf32>
    %228 = vector.shape_cast %227 : vector<1x64x64xf32> to vector<64x64xf32>
    %229 = vector.broadcast %226 : f32 to vector<64x64xf32>
    %230 = arith.mulf %229, %228 : vector<64x64xf32>
    %231 = arith.addf %225, %230 : vector<64x64xf32>
    %c29 = arith.constant 29 : index
    %232 = memref.load %arg1[%c29] : memref<54xf32, #tpu.memory_space<smem>>
    %c3_145 = arith.constant 3 : index
    %c2_146 = arith.constant 2 : index
    %c0_147 = arith.constant 0 : index
    %233 = vector.load %arg5[%c3_145, %c2_146, %c0_147] : memref<6x66x128xf32, #tpu.memory_space<vmem>>, vector<1x64x64xf32>
    %234 = vector.shape_cast %233 : vector<1x64x64xf32> to vector<64x64xf32>
    %235 = vector.broadcast %232 : f32 to vector<64x64xf32>
    %236 = arith.mulf %235, %234 : vector<64x64xf32>
    %237 = arith.addf %231, %236 : vector<64x64xf32>
    %c28 = arith.constant 28 : index
    %238 = memref.load %arg1[%c28] : memref<54xf32, #tpu.memory_space<smem>>
    %c3_148 = arith.constant 3 : index
    %c2_149 = arith.constant 2 : index
    %c1_150 = arith.constant 1 : index
    %239 = vector.load %arg5[%c3_148, %c2_149, %c1_150] : memref<6x66x128xf32, #tpu.memory_space<vmem>>, vector<1x64x64xf32>
    %240 = vector.shape_cast %239 : vector<1x64x64xf32> to vector<64x64xf32>
    %241 = vector.broadcast %238 : f32 to vector<64x64xf32>
    %242 = arith.mulf %241, %240 : vector<64x64xf32>
    %243 = arith.addf %237, %242 : vector<64x64xf32>
    %c27 = arith.constant 27 : index
    %244 = memref.load %arg1[%c27] : memref<54xf32, #tpu.memory_space<smem>>
    %c3_151 = arith.constant 3 : index
    %c2_152 = arith.constant 2 : index
    %c2_153 = arith.constant 2 : index
    %245 = vector.load %arg5[%c3_151, %c2_152, %c2_153] : memref<6x66x128xf32, #tpu.memory_space<vmem>>, vector<1x64x64xf32>
    %246 = vector.shape_cast %245 : vector<1x64x64xf32> to vector<64x64xf32>
    %247 = vector.broadcast %244 : f32 to vector<64x64xf32>
    %248 = arith.mulf %247, %246 : vector<64x64xf32>
    %249 = arith.addf %243, %248 : vector<64x64xf32>
    %c44 = arith.constant 44 : index
    %250 = memref.load %arg1[%c44] : memref<54xf32, #tpu.memory_space<smem>>
    %c4_154 = arith.constant 4 : index
    %c0_155 = arith.constant 0 : index
    %c0_156 = arith.constant 0 : index
    %251 = vector.load %arg5[%c4_154, %c0_155, %c0_156] : memref<6x66x128xf32, #tpu.memory_space<vmem>>, vector<1x64x64xf32>
    %252 = vector.shape_cast %251 : vector<1x64x64xf32> to vector<64x64xf32>
    %253 = vector.broadcast %250 : f32 to vector<64x64xf32>
    %254 = arith.mulf %253, %252 : vector<64x64xf32>
    %255 = arith.addf %249, %254 : vector<64x64xf32>
    %c43 = arith.constant 43 : index
    %256 = memref.load %arg1[%c43] : memref<54xf32, #tpu.memory_space<smem>>
    %c4_157 = arith.constant 4 : index
    %c0_158 = arith.constant 0 : index
    %c1_159 = arith.constant 1 : index
    %257 = vector.load %arg5[%c4_157, %c0_158, %c1_159] : memref<6x66x128xf32, #tpu.memory_space<vmem>>, vector<1x64x64xf32>
    %258 = vector.shape_cast %257 : vector<1x64x64xf32> to vector<64x64xf32>
    %259 = vector.broadcast %256 : f32 to vector<64x64xf32>
    %260 = arith.mulf %259, %258 : vector<64x64xf32>
    %261 = arith.addf %255, %260 : vector<64x64xf32>
    %c42 = arith.constant 42 : index
    %262 = memref.load %arg1[%c42] : memref<54xf32, #tpu.memory_space<smem>>
    %c4_160 = arith.constant 4 : index
    %c0_161 = arith.constant 0 : index
    %c2_162 = arith.constant 2 : index
    %263 = vector.load %arg5[%c4_160, %c0_161, %c2_162] : memref<6x66x128xf32, #tpu.memory_space<vmem>>, vector<1x64x64xf32>
    %264 = vector.shape_cast %263 : vector<1x64x64xf32> to vector<64x64xf32>
    %265 = vector.broadcast %262 : f32 to vector<64x64xf32>
    %266 = arith.mulf %265, %264 : vector<64x64xf32>
    %267 = arith.addf %261, %266 : vector<64x64xf32>
    %c41 = arith.constant 41 : index
    %268 = memref.load %arg1[%c41] : memref<54xf32, #tpu.memory_space<smem>>
    %c4_163 = arith.constant 4 : index
    %c1_164 = arith.constant 1 : index
    %c0_165 = arith.constant 0 : index
    %269 = vector.load %arg5[%c4_163, %c1_164, %c0_165] : memref<6x66x128xf32, #tpu.memory_space<vmem>>, vector<1x64x64xf32>
    %270 = vector.shape_cast %269 : vector<1x64x64xf32> to vector<64x64xf32>
    %271 = vector.broadcast %268 : f32 to vector<64x64xf32>
    %272 = arith.mulf %271, %270 : vector<64x64xf32>
    %273 = arith.addf %267, %272 : vector<64x64xf32>
    %c40 = arith.constant 40 : index
    %274 = memref.load %arg1[%c40] : memref<54xf32, #tpu.memory_space<smem>>
    %c4_166 = arith.constant 4 : index
    %c1_167 = arith.constant 1 : index
    %c1_168 = arith.constant 1 : index
    %275 = vector.load %arg5[%c4_166, %c1_167, %c1_168] : memref<6x66x128xf32, #tpu.memory_space<vmem>>, vector<1x64x64xf32>
    %276 = vector.shape_cast %275 : vector<1x64x64xf32> to vector<64x64xf32>
    %277 = vector.broadcast %274 : f32 to vector<64x64xf32>
    %278 = arith.mulf %277, %276 : vector<64x64xf32>
    %279 = arith.addf %273, %278 : vector<64x64xf32>
    %c39 = arith.constant 39 : index
    %280 = memref.load %arg1[%c39] : memref<54xf32, #tpu.memory_space<smem>>
    %c4_169 = arith.constant 4 : index
    %c1_170 = arith.constant 1 : index
    %c2_171 = arith.constant 2 : index
    %281 = vector.load %arg5[%c4_169, %c1_170, %c2_171] : memref<6x66x128xf32, #tpu.memory_space<vmem>>, vector<1x64x64xf32>
    %282 = vector.shape_cast %281 : vector<1x64x64xf32> to vector<64x64xf32>
    %283 = vector.broadcast %280 : f32 to vector<64x64xf32>
    %284 = arith.mulf %283, %282 : vector<64x64xf32>
    %285 = arith.addf %279, %284 : vector<64x64xf32>
    %c38 = arith.constant 38 : index
    %286 = memref.load %arg1[%c38] : memref<54xf32, #tpu.memory_space<smem>>
    %c4_172 = arith.constant 4 : index
    %c2_173 = arith.constant 2 : index
    %c0_174 = arith.constant 0 : index
    %287 = vector.load %arg5[%c4_172, %c2_173, %c0_174] : memref<6x66x128xf32, #tpu.memory_space<vmem>>, vector<1x64x64xf32>
    %288 = vector.shape_cast %287 : vector<1x64x64xf32> to vector<64x64xf32>
    %289 = vector.broadcast %286 : f32 to vector<64x64xf32>
    %290 = arith.mulf %289, %288 : vector<64x64xf32>
    %291 = arith.addf %285, %290 : vector<64x64xf32>
    %c37 = arith.constant 37 : index
    %292 = memref.load %arg1[%c37] : memref<54xf32, #tpu.memory_space<smem>>
    %c4_175 = arith.constant 4 : index
    %c2_176 = arith.constant 2 : index
    %c1_177 = arith.constant 1 : index
    %293 = vector.load %arg5[%c4_175, %c2_176, %c1_177] : memref<6x66x128xf32, #tpu.memory_space<vmem>>, vector<1x64x64xf32>
    %294 = vector.shape_cast %293 : vector<1x64x64xf32> to vector<64x64xf32>
    %295 = vector.broadcast %292 : f32 to vector<64x64xf32>
    %296 = arith.mulf %295, %294 : vector<64x64xf32>
    %297 = arith.addf %291, %296 : vector<64x64xf32>
    %c36 = arith.constant 36 : index
    %298 = memref.load %arg1[%c36] : memref<54xf32, #tpu.memory_space<smem>>
    %c4_178 = arith.constant 4 : index
    %c2_179 = arith.constant 2 : index
    %c2_180 = arith.constant 2 : index
    %299 = vector.load %arg5[%c4_178, %c2_179, %c2_180] : memref<6x66x128xf32, #tpu.memory_space<vmem>>, vector<1x64x64xf32>
    %300 = vector.shape_cast %299 : vector<1x64x64xf32> to vector<64x64xf32>
    %301 = vector.broadcast %298 : f32 to vector<64x64xf32>
    %302 = arith.mulf %301, %300 : vector<64x64xf32>
    %303 = arith.addf %297, %302 : vector<64x64xf32>
    %c53 = arith.constant 53 : index
    %304 = memref.load %arg1[%c53] : memref<54xf32, #tpu.memory_space<smem>>
    %c5_181 = arith.constant 5 : index
    %c0_182 = arith.constant 0 : index
    %c0_183 = arith.constant 0 : index
    %305 = vector.load %arg5[%c5_181, %c0_182, %c0_183] : memref<6x66x128xf32, #tpu.memory_space<vmem>>, vector<1x64x64xf32>
    %306 = vector.shape_cast %305 : vector<1x64x64xf32> to vector<64x64xf32>
    %307 = vector.broadcast %304 : f32 to vector<64x64xf32>
    %308 = arith.mulf %307, %306 : vector<64x64xf32>
    %309 = arith.addf %303, %308 : vector<64x64xf32>
    %c52 = arith.constant 52 : index
    %310 = memref.load %arg1[%c52] : memref<54xf32, #tpu.memory_space<smem>>
    %c5_184 = arith.constant 5 : index
    %c0_185 = arith.constant 0 : index
    %c1_186 = arith.constant 1 : index
    %311 = vector.load %arg5[%c5_184, %c0_185, %c1_186] : memref<6x66x128xf32, #tpu.memory_space<vmem>>, vector<1x64x64xf32>
    %312 = vector.shape_cast %311 : vector<1x64x64xf32> to vector<64x64xf32>
    %313 = vector.broadcast %310 : f32 to vector<64x64xf32>
    %314 = arith.mulf %313, %312 : vector<64x64xf32>
    %315 = arith.addf %309, %314 : vector<64x64xf32>
    %c51 = arith.constant 51 : index
    %316 = memref.load %arg1[%c51] : memref<54xf32, #tpu.memory_space<smem>>
    %c5_187 = arith.constant 5 : index
    %c0_188 = arith.constant 0 : index
    %c2_189 = arith.constant 2 : index
    %317 = vector.load %arg5[%c5_187, %c0_188, %c2_189] : memref<6x66x128xf32, #tpu.memory_space<vmem>>, vector<1x64x64xf32>
    %318 = vector.shape_cast %317 : vector<1x64x64xf32> to vector<64x64xf32>
    %319 = vector.broadcast %316 : f32 to vector<64x64xf32>
    %320 = arith.mulf %319, %318 : vector<64x64xf32>
    %321 = arith.addf %315, %320 : vector<64x64xf32>
    %c50 = arith.constant 50 : index
    %322 = memref.load %arg1[%c50] : memref<54xf32, #tpu.memory_space<smem>>
    %c5_190 = arith.constant 5 : index
    %c1_191 = arith.constant 1 : index
    %c0_192 = arith.constant 0 : index
    %323 = vector.load %arg5[%c5_190, %c1_191, %c0_192] : memref<6x66x128xf32, #tpu.memory_space<vmem>>, vector<1x64x64xf32>
    %324 = vector.shape_cast %323 : vector<1x64x64xf32> to vector<64x64xf32>
    %325 = vector.broadcast %322 : f32 to vector<64x64xf32>
    %326 = arith.mulf %325, %324 : vector<64x64xf32>
    %327 = arith.addf %321, %326 : vector<64x64xf32>
    %c49 = arith.constant 49 : index
    %328 = memref.load %arg1[%c49] : memref<54xf32, #tpu.memory_space<smem>>
    %c5_193 = arith.constant 5 : index
    %c1_194 = arith.constant 1 : index
    %c1_195 = arith.constant 1 : index
    %329 = vector.load %arg5[%c5_193, %c1_194, %c1_195] : memref<6x66x128xf32, #tpu.memory_space<vmem>>, vector<1x64x64xf32>
    %330 = vector.shape_cast %329 : vector<1x64x64xf32> to vector<64x64xf32>
    %331 = vector.broadcast %328 : f32 to vector<64x64xf32>
    %332 = arith.mulf %331, %330 : vector<64x64xf32>
    %333 = arith.addf %327, %332 : vector<64x64xf32>
    %c48 = arith.constant 48 : index
    %334 = memref.load %arg1[%c48] : memref<54xf32, #tpu.memory_space<smem>>
    %c5_196 = arith.constant 5 : index
    %c1_197 = arith.constant 1 : index
    %c2_198 = arith.constant 2 : index
    %335 = vector.load %arg5[%c5_196, %c1_197, %c2_198] : memref<6x66x128xf32, #tpu.memory_space<vmem>>, vector<1x64x64xf32>
    %336 = vector.shape_cast %335 : vector<1x64x64xf32> to vector<64x64xf32>
    %337 = vector.broadcast %334 : f32 to vector<64x64xf32>
    %338 = arith.mulf %337, %336 : vector<64x64xf32>
    %339 = arith.addf %333, %338 : vector<64x64xf32>
    %c47 = arith.constant 47 : index
    %340 = memref.load %arg1[%c47] : memref<54xf32, #tpu.memory_space<smem>>
    %c5_199 = arith.constant 5 : index
    %c2_200 = arith.constant 2 : index
    %c0_201 = arith.constant 0 : index
    %341 = vector.load %arg5[%c5_199, %c2_200, %c0_201] : memref<6x66x128xf32, #tpu.memory_space<vmem>>, vector<1x64x64xf32>
    %342 = vector.shape_cast %341 : vector<1x64x64xf32> to vector<64x64xf32>
    %343 = vector.broadcast %340 : f32 to vector<64x64xf32>
    %344 = arith.mulf %343, %342 : vector<64x64xf32>
    %345 = arith.addf %339, %344 : vector<64x64xf32>
    %c46 = arith.constant 46 : index
    %346 = memref.load %arg1[%c46] : memref<54xf32, #tpu.memory_space<smem>>
    %c5_202 = arith.constant 5 : index
    %c2_203 = arith.constant 2 : index
    %c1_204 = arith.constant 1 : index
    %347 = vector.load %arg5[%c5_202, %c2_203, %c1_204] : memref<6x66x128xf32, #tpu.memory_space<vmem>>, vector<1x64x64xf32>
    %348 = vector.shape_cast %347 : vector<1x64x64xf32> to vector<64x64xf32>
    %349 = vector.broadcast %346 : f32 to vector<64x64xf32>
    %350 = arith.mulf %349, %348 : vector<64x64xf32>
    %351 = arith.addf %345, %350 : vector<64x64xf32>
    %c45 = arith.constant 45 : index
    %352 = memref.load %arg1[%c45] : memref<54xf32, #tpu.memory_space<smem>>
    %c5_205 = arith.constant 5 : index
    %c2_206 = arith.constant 2 : index
    %c2_207 = arith.constant 2 : index
    %353 = vector.load %arg5[%c5_205, %c2_206, %c2_207] : memref<6x66x128xf32, #tpu.memory_space<vmem>>, vector<1x64x64xf32>
    %354 = vector.shape_cast %353 : vector<1x64x64xf32> to vector<64x64xf32>
    %355 = vector.broadcast %352 : f32 to vector<64x64xf32>
    %356 = arith.mulf %355, %354 : vector<64x64xf32>
    %357 = arith.addf %351, %356 : vector<64x64xf32>
    %c0_208 = arith.constant 0 : index
    %c0_209 = arith.constant 0 : index
    %c0_210 = arith.constant 0 : index
    %c0_211 = arith.constant 0 : index
    %358 = vector.load %arg4[%c0_208, %c0_209, %c0_210, %c0_211] : memref<1x1x64x64xf32, #tpu.memory_space<vmem>>, vector<1x1x64x64xf32>
    %359 = vector.shape_cast %358 : vector<1x1x64x64xf32> to vector<64x64xf32>
    %360 = vector.shape_cast %357 : vector<64x64xf32> to vector<1x1x64x64xf32>
    tpu.vector_store %arg4[%c0_208, %c0_209, %c0_210, %c0_211], %360 {strides = array<i32>} : memref<1x1x64x64xf32, #tpu.memory_space<vmem>>, vector<1x1x64x64xf32>,
    return
  }
  func.func @transform_0(%arg0: i32, %arg1: memref<54xf32, #tpu.memory_space<smem>>, %arg2: memref<1xf32, #tpu.memory_space<smem>>) -> (i32, i32, i32, i32) {
    %c0_i32 = arith.constant 0 : i32
    %c0_i32_0 = arith.constant 0 : i32
    %c0_i32_1 = arith.constant 0 : i32
    %c0_i32_2 = arith.constant 0 : i32
    return %arg0, %c0_i32, %c0_i32_0, %c0_i32_1 : i32, i32, i32, i32
  }
  func.func @transform_1(%arg0: i32, %arg1: memref<54xf32, #tpu.memory_space<smem>>, %arg2: memref<1xf32, #tpu.memory_space<smem>>) -> (i32, i32, i32, i32) {
    %c0_i32 = arith.constant 0 : i32
    %c0_i32_0 = arith.constant 0 : i32
    %c0_i32_1 = arith.constant 0 : i32
    %c0_i32_2 = arith.constant 0 : i32
    return %arg0, %c0_i32, %c0_i32_0, %c0_i32_1 : i32, i32, i32, i32
  }
}

module attributes {stable_mosaic.version = 11 : i64} {
  func.func @fc_relu_kernel(%arg0: i32, %arg1: memref<2x256xf32, #tpu.memory_space<vmem>>, %arg2: memref<256x4096xf32, #tpu.memory_space<vmem>>, %arg3: memref<1x4096xf32, #tpu.memory_space<vmem>>, %arg4: memref<2x4096xf32, #tpu.memory_space<vmem>>) attributes {dimension_semantics = [#tpu.dimension_semantics<parallel>], iteration_bounds = array<i64: 6>, scalar_prefetch = 0 : i64, scratch_operands = 0 : i64, tpu.core_type = #tpu.core_type<tc>, window_params = [{pipeline_mode = #tpu.pipeline_mode<synchronous>, transform_indices = @transform_0, window_bounds = array<i64: 2, 256>}, {transform_indices = @transform_1, window_bounds = array<i64: 256, 4096>}, {transform_indices = @transform_2, window_bounds = array<i64: 1, 4096>}, {transform_indices = @transform_3, window_bounds = array<i64: 2, 4096>}]} {
    %c0 = arith.constant 0 : index
    %c0_0 = arith.constant 0 : index
    %0 = vector.load %arg1[%c0, %c0_0] : memref<2x256xf32, #tpu.memory_space<vmem>>, vector<2x256xf32>
    %c0_1 = arith.constant 0 : index
    %c0_2 = arith.constant 0 : index
    %1 = vector.load %arg2[%c0_1, %c0_2] : memref<256x4096xf32, #tpu.memory_space<vmem>>, vector<256x4096xf32>
    %cst = arith.constant dense<0.000000e+00> : vector<2x4096xf32>
    %2 = tpu.matmul %0, %1, %cst {dimension_numbers = #tpu.dot_dimension_numbers<[1], [0], [0], [1], [0, 0, 1, 1], [], []>} : vector<2x256xf32>, vector<256x4096xf32>, vector<2x4096xf32> -> vector<2x4096xf32>
    %c0_3 = arith.constant 0 : index
    %c0_4 = arith.constant 0 : index
    %3 = vector.load %arg3[%c0_3, %c0_4] : memref<1x4096xf32, #tpu.memory_space<vmem>>, vector<1x4096xf32>
    %4 = vector.broadcast %3 : vector<1x4096xf32> to vector<2x4096xf32>
    %5 = arith.addf %2, %4 : vector<2x4096xf32>
    %cst_5 = arith.constant 0.000000e+00 : f32
    %6 = vector.broadcast %cst_5 : f32 to vector<2x4096xf32>
    %7 = arith.maximumf %5, %6 : vector<2x4096xf32>
    %c0_6 = arith.constant 0 : index
    %c0_7 = arith.constant 0 : index
    %8 = vector.load %arg4[%c0_6, %c0_7] : memref<2x4096xf32, #tpu.memory_space<vmem>>, vector<2x4096xf32>
    tpu.vector_store %arg4[%c0_6, %c0_7], %7 {strides = array<i32>} : memref<2x4096xf32, #tpu.memory_space<vmem>>, vector<2x4096xf32>,
    return
  }
  func.func @transform_0(%arg0: i32) -> (i32, i32) {
    %c0_i32 = arith.constant 0 : i32
    %c0_i32_0 = arith.constant 0 : i32
    %c0_i32_1 = arith.constant 0 : i32
    return %c0_i32, %c0_i32_0 : i32, i32
  }
  func.func @transform_1(%arg0: i32) -> (i32, i32) {
    %c0_i32 = arith.constant 0 : i32
    %c0_i32_0 = arith.constant 0 : i32
    return %c0_i32, %arg0 : i32, i32
  }
  func.func @transform_2(%arg0: i32) -> (i32, i32) {
    %c0_i32 = arith.constant 0 : i32
    %c0_i32_0 = arith.constant 0 : i32
    return %c0_i32, %arg0 : i32, i32
  }
  func.func @transform_3(%arg0: i32) -> (i32, i32) {
    %c0_i32 = arith.constant 0 : i32
    %c0_i32_0 = arith.constant 0 : i32
    return %c0_i32, %arg0 : i32, i32
  }
}

</mosaic_0001>

<llo_original>
// kernel: decoder_forward.3
$region0: #{decoder_forward.3}
  #allocation0 [shape = 'u32[]', space=smem, size = 0x4, offset = 0x4, fixed_abs, tag = 'smem constant byte address 0x4 - core index']
  #allocation1 [shape = 'u32[72,128]{1,0:T(1,128)}', space=vmem, size = 0x9000, scoped, tag = 'internal scratch']
  #allocation2 [shape = 'f32[6,66,128]{2,1,0:T(8,128)}', space=vmem, size = 0x36000, scoped, tag = 'scratch operand']
  #allocation3 [shape = 's32[1]{0}', space=sflag, size = 0x4, scoped, tag = 'scoped memory for decoder_forward.3']
  #allocation4 [shape = 'u8[512]{0}', space=smem, size = 0x200, scoped, tag = 'prefetched SMEM operand 0']
  #allocation5 [shape = 'f32[1]{0:T(128)S(6)}', space=smem, size = 0x200, scoped, tag = 'prefetched SMEM operand 1']
  %s0 = inlined_call_operand.hbm [shape: f32[54], index: 0, kind: input, shape index: {}]
  %s1 = inlined_call_operand.<no memory space> [shape: f32[1], index: 1, kind: input, shape index: {}]
  %s2 = inlined_call_operand.vmem [shape: f32[2,6,62,62], index: 2, kind: input, shape index: {}]
  %s3 = inlined_call_operand.hbm [shape: f32[2,1,64,64], index: 3, kind: output, shape index: {}]
  %s4 = sld [smem:[#allocation0]]
  $region37: #{decoder_forward.3} parent=0
    _
  %s6 = ssub.s32 1, %s4
  %s7 = scalar_select 0, %s6, %s4
  %s9 = sshll.u32 %s0, 4
  %s10 = int_to_ptr.hbm [resolvable:$true] %s9
  %12 = dma.hbm_to_smem %s10, 16, [#allocation4], [#allocation3]
  %13 = sst [smem:[#allocation5]] %s1
  %15 = dma.done [#allocation3], 16
  %16 = sfence
  $region1: #{decoder_forward.3} parent=0
    #allocation6 [shape = 'u8[65536]{0}', space=vmem, size = 0x10000, scoped, tag = 'output window, operand 0']
    #allocation7 [shape = 's32[2]{0}', space=sflag, size = 0x8, scoped, tag = 'scoped memory for decoder_forward.3']
    %17 = vsyncpa [#allocation7], 0
    %s18 = scalar_lea.sflag [#allocation7], 1
    %19 = vsyncpa %s18, 0
    loop: start=0, step=1, limit=4
    $region2: #{decoder_forward.3} parent=1 // loop_pre_header
      _
    $region3: #{decoder_forward.3} parent=1 // loop_header
      %s21 = sphi 0, %s25
      %p22 = scmp.ge.s32.totalorder %s21, 4
      %s31 = sphi 0, %s33
      %s34 = sphi 0, %s31
      %s35 = sphi 0, %s34
      %s51 = sphi 0, %s35
      %s57 = sphi 0, %s59
      %s60 = sphi 0, %s57
      %s61 = sphi 0, %s60
      %s77 = sphi 0, %s61
    $region4: #{decoder_forward.3} parent=1 // loop_header_branch
      %24 = sbr.rel (%p22) target = $region8
    $region5: #{decoder_forward.3} parent=1 // loop_body
      %s26 = ssub.s32 %s21, 1
      %s27 = ssub.s32 %s21, 2
      %s28 = sadd.s32 %s21, 1
      %s29 = ssub.s32 %s21, %s28
      %p30 = scmp.eq.s32.totalorder %s29, 0
      %s32 = sadd.s32 %s31, 1
      %s33 = scalar_select %p30, %s31, %s32
      %p36 = pneg %p30
      %p37 = scmp.eq.s32.totalorder %s21, 1
      %p38 = por %p36, %p37
      %p39 = scmp.ne.s32.totalorder %s31, %s34
      %p40 = scmp.eq.s32.totalorder %s21, 0
      %p41 = por %p39, %p40
      %p42 = scmp.ne.s32.totalorder %s31, %s34
      %p43 = scmp.eq.s32.totalorder %s26, 1
      %p44 = por %p42, %p43
      %p45 = scmp.ne.s32.totalorder %s34, %s35
      %p46 = scmp.eq.s32.totalorder %s26, 0
      %p47 = por %p45, %p46
      %p48 = scmp.ne.s32.totalorder %s34, %s35
      %p49 = scmp.eq.s32.totalorder %s27, 1
      %p50 = por %p48, %p49
      %p52 = scmp.ne.s32.totalorder %s35, %s51
      %p53 = scmp.eq.s32.totalorder %s27, 0
      %p54 = por %p52, %p53
      %s55 = ssub.s32 %s21, %s28
      %p56 = scmp.eq.s32.totalorder %s55, 0
      %s58 = sadd.s32 %s57, 1
      %s59 = scalar_select %p56, %s57, %s58
      %p62 = pneg %p56
      %p63 = scmp.eq.s32.totalorder %s21, 1
      %p64 = por %p62, %p63
      %p65 = scmp.ne.s32.totalorder %s57, %s60
      %p66 = scmp.eq.s32.totalorder %s21, 0
      %p67 = por %p65, %p66
      %p68 = scmp.ne.s32.totalorder %s57, %s60
      %p69 = scmp.eq.s32.totalorder %s26, 1
      %p70 = por %p68, %p69
      %p71 = scmp.ne.s32.totalorder %s60, %s61
      %p72 = scmp.eq.s32.totalorder %s26, 0
      %p73 = por %p71, %p72
      %p74 = scmp.ne.s32.totalorder %s60, %s61
      %p75 = scmp.eq.s32.totalorder %s27, 1
      %p76 = por %p74, %p75
      %p78 = scmp.ne.s32.totalorder %s61, %s77
      %p79 = scmp.eq.s32.totalorder %s27, 0
      %p80 = por %p78, %p79
      %p81 = scmp.le.s32.totalorder 1, %s21
      %p82 = scmp.lt.s32.totalorder %s21, 3
      %p83 = pnand %p81, %p82
      %p84 = pneg %p83
      // Predicated region
      $region9: #{decoder_forward.3} parent=5 // pred_check
        _
      $region10: #{decoder_forward.3} parent=5 // pred_check_branch
        %86 = sbr.rel (%p83) target = $region12
      $region11: #{decoder_forward.3} parent=5 // pred_region
        %s87 = ssub.s32 %s21, 1
      $region12: #{decoder_forward.3} parent=5 // pred_fallthru
        _
      %p88 = scmp.lt.s32.totalorder %s21, 2
      // Predicated region
      $region13: #{decoder_forward.3} parent=5 // pred_check
        %p89 = pneg %p88
      $region14: #{decoder_forward.3} parent=5 // pred_check_branch
        %91 = sbr.rel (%p89) target = $region16
      $region15: #{decoder_forward.3} parent=5 // pred_region
        // Predicated region
        $region17: #{decoder_forward.3} parent=15 // pred_check
          %p92 = pneg %p41
        $region18: #{decoder_forward.3} parent=15 // pred_check_branch
          %94 = sbr.rel (%p92) target = $region20
        $region19: #{decoder_forward.3} parent=15 // pred_region
          %p95 = scmp.lt.s32.totalorder %s21, 1
          %s96 = scalar_select %p95, %s21, 1
          %s97 = smul.addr %s96, 48
          %s98 = smul.addr %s97, 8
          %s99 = scalar_lea.vmem %s2, %s98
        $region20: #{decoder_forward.3} parent=15 // pred_fallthru
          _
      $region16: #{decoder_forward.3} parent=5 // pred_fallthru
        _
      %p100 = scmp.le.s32.totalorder 1, %s21
      %p101 = scmp.lt.s32.totalorder %s21, 3
      %p102 = pnand %p100, %p101
      %p103 = pneg %p102
      // Predicated region
      $region21: #{decoder_forward.3} parent=5 // pred_check
        _
      $region22: #{decoder_forward.3} parent=5 // pred_check_branch
        %105 = sbr.rel (%p102) target = $region24
      $region23: #{decoder_forward.3} parent=5 // pred_region
        %s106 = ssub.s32 %s21, 1
        %p107 = scmp.lt.s32.totalorder %s26, 1
        %s108 = scalar_select %p107, %s26, 1
        %s109 = smul.addr %s108, 48
        %s110 = smul.addr %s109, 8
        %s111 = scalar_lea.vmem %s2, %s110
        %p112 = pneg %p47
        %p113 = pneg %p44
        %p114 = pneg %p73
        %p115 = pneg %p70
        %s116 = sand.u32 %s60, 1
        %s117 = scalar_lea.sflag [#allocation7], %s116
        %s118 = sand.u32 %s60, 1
        %s119 = smul.addr %s118, 64
        %s120 = scalar_lea.vmem [#allocation6], %s119
        %p121 = scmp.lt.s32.totalorder %s26, 1
        %s122 = scalar_select %p121, %s26, 1
        %s123 = smul.addr %s122, 48
        %s124 = smul.addr %s123, 8
        %s125 = scalar_lea.vmem %s2, %s124
        %126 = vst [vmem:[#allocation2] sm:$0xff] 0.0
        %127 = vst [vmem:[#allocation2 + $0x8] sm:$0xff] 0.0
        %128 = vst [vmem:[#allocation2 + $0x10] sm:$0xff] 0.0
        %129 = vst [vmem:[#allocation2 + $0x18] sm:$0xff] 0.0
        %130 = vst [vmem:[#allocation2 + $0x20] sm:$0xff] 0.0
        %131 = vst [vmem:[#allocation2 + $0x28] sm:$0xff] 0.0
        %132 = vst [vmem:[#allocation2 + $0x30] sm:$0xff] 0.0
        %133 = vst [vmem:[#allocation2 + $0x38] sm:$0xff] 0.0
        %134 = vst [vmem:[#allocation2 + $0x40] sm:$0x3] 0.0
        %135 = vst [vmem:[#allocation2 + $0x48] sm:$0xff] 0.0
        %136 = vst [vmem:[#allocation2 + $0x50] sm:$0xff] 0.0
        %137 = vst [vmem:[#allocation2 + $0x58] sm:$0xff] 0.0
        %138 = vst [vmem:[#allocation2 + $0x60] sm:$0xff] 0.0
        %139 = vst [vmem:[#allocation2 + $0x68] sm:$0xff] 0.0
        %140 = vst [vmem:[#allocation2 + $0x70] sm:$0xff] 0.0
        %141 = vst [vmem:[#allocation2 + $0x78] sm:$0xff] 0.0
        %142 = vst [vmem:[#allocation2 + $0x80] sm:$0xff] 0.0
        %143 = vst [vmem:[#allocation2 + $0x88] sm:$0x3] 0.0
        %144 = vst [vmem:[#allocation2 + $0x90] sm:$0xff] 0.0
        %145 = vst [vmem:[#allocation2 + $0x98] sm:$0xff] 0.0
        %146 = vst [vmem:[#allocation2 + $0xa0] sm:$0xff] 0.0
        %147 = vst [vmem:[#allocation2 + $0xa8] sm:$0xff] 0.0
        %148 = vst [vmem:[#allocation2 + $0xb0] sm:$0xff] 0.0
        %149 = vst [vmem:[#allocation2 + $0xb8] sm:$0xff] 0.0
        %150 = vst [vmem:[#allocation2 + $0xc0] sm:$0xff] 0.0
        %151 = vst [vmem:[#allocation2 + $0xc8] sm:$0xff] 0.0
        %152 = vst [vmem:[#allocation2 + $0xd0] sm:$0x3] 0.0
        %153 = vst [vmem:[#allocation2 + $0xd8] sm:$0xff] 0.0
        %154 = vst [vmem:[#allocation2 + $0xe0] sm:$0xff] 0.0
        %155 = vst [vmem:[#allocation2 + $0xe8] sm:$0xff] 0.0
        %156 = vst [vmem:[#allocation2 + $0xf0] sm:$0xff] 0.0
        %157 = vst [vmem:[#allocation2 + $0xf8] sm:$0xff] 0.0
        %158 = vst [vmem:[#allocation2 + $0x100] sm:$0xff] 0.0
        %159 = vst [vmem:[#allocation2 + $0x108] sm:$0xff] 0.0
        %160 = vst [vmem:[#allocation2 + $0x110] sm:$0xff] 0.0
        %161 = vst [vmem:[#allocation2 + $0x118] sm:$0x3] 0.0
        %162 = vst [vmem:[#allocation2 + $0x120] sm:$0xff] 0.0
        %163 = vst [vmem:[#allocation2 + $0x128] sm:$0xff] 0.0
        %164 = vst [vmem:[#allocation2 + $0x130] sm:$0xff] 0.0
        %165 = vst [vmem:[#allocation2 + $0x138] sm:$0xff] 0.0
        %166 = vst [vmem:[#allocation2 + $0x140] sm:$0xff] 0.0
        %167 = vst [vmem:[#allocation2 + $0x148] sm:$0xff] 0.0
        %168 = vst [vmem:[#allocation2 + $0x150] sm:$0xff] 0.0
        %169 = vst [vmem:[#allocation2 + $0x158] sm:$0xff] 0.0
        %170 = vst [vmem:[#allocation2 + $0x160] sm:$0x3] 0.0
        %171 = vst [vmem:[#allocation2 + $0x168] sm:$0xff] 0.0
        %172 = vst [vmem:[#allocation2 + $0x170] sm:$0xff] 0.0
        %173 = vst [vmem:[#allocation2 + $0x178] sm:$0xff] 0.0
        %174 = vst [vmem:[#allocation2 + $0x180] sm:$0xff] 0.0
        %175 = vst [vmem:[#allocation2 + $0x188] sm:$0xff] 0.0
        %176 = vst [vmem:[#allocation2 + $0x190] sm:$0xff] 0.0
        %177 = vst [vmem:[#allocation2 + $0x198] sm:$0xff] 0.0
        %178 = vst [vmem:[#allocation2 + $0x1a0] sm:$0xff] 0.0
        %179 = vst [vmem:[#allocation2 + $0x1a8] sm:$0x3] 0.0
        %v180 = vld [vmem:[%s125] sm:$0xff]
        %v181 = vld [vmem:[%s125 + $0x8] sm:$0xff]
        %v182 = vld [vmem:[%s125 + $0x10] sm:$0xff]
        %v183 = vld [vmem:[%s125 + $0x18] sm:$0xff]
        %v184 = vld [vmem:[%s125 + $0x20] sm:$0xff]
        %v185 = vld [vmem:[%s125 + $0x28] sm:$0xff]
        %v186 = vld [vmem:[%s125 + $0x30] sm:$0xff]
        %v187 = vld [vmem:[%s125 + $0x38] sm:$0x3f]
        %196 = vrot.lane.b32.xlu0 %v180, 2
        %v197 = vpop.permute.xlu0 %196
        %198 = vrot.lane.b32.xlu0 %v181, 2
        %v199 = vpop.permute.xlu0 %198
        %200 = vrot.lane.b32.xlu0 %v182, 2
        %v201 = vpop.permute.xlu0 %200
        %202 = vrot.lane.b32.xlu0 %v183, 2
        %v203 = vpop.permute.xlu0 %202
        %204 = vrot.lane.b32.xlu0 %v184, 2
        %v205 = vpop.permute.xlu0 %204
        %206 = vrot.lane.b32.xlu0 %v185, 2
        %v207 = vpop.permute.xlu0 %206
        %208 = vrot.lane.b32.xlu0 %v186, 2
        %v209 = vpop.permute.xlu0 %208
        %210 = vrot.lane.b32.xlu0 %v187, 2
        %v211 = vpop.permute.xlu0 %210
        %vm220 = vcmask 523280
        %221 = vst.msk [vmem:[#allocation2 + $0x2] sm:$0xff] %vm220, %v197
        %222 = vst.msk [vmem:[#allocation2 + $0xa] sm:$0xff] %vm220, %v199
        %223 = vst.msk [vmem:[#allocation2 + $0x12] sm:$0xff] %vm220, %v201
        %224 = vst.msk [vmem:[#allocation2 + $0x1a] sm:$0xff] %vm220, %v203
        %225 = vst.msk [vmem:[#allocation2 + $0x22] sm:$0xff] %vm220, %v205
        %226 = vst.msk [vmem:[#allocation2 + $0x2a] sm:$0xff] %vm220, %v207
        %227 = vst.msk [vmem:[#allocation2 + $0x32] sm:$0xff] %vm220, %v209
        %vm228 = vcmask 521232
        %229 = vst.msk [vmem:[#allocation2 + $0x3a] sm:$0x3f] %vm228, %v211
        %s230 = scalar_lea.vmem %s125, 64
        %v231 = vld [vmem:[%s230] sm:$0xff]
        %v232 = vld [vmem:[%s230 + $0x8] sm:$0xff]
        %v233 = vld [vmem:[%s230 + $0x10] sm:$0xff]
        %v234 = vld [vmem:[%s230 + $0x18] sm:$0xff]
        %v235 = vld [vmem:[%s230 + $0x20] sm:$0xff]
        %v236 = vld [vmem:[%s230 + $0x28] sm:$0xff]
        %v237 = vld [vmem:[%s230 + $0x30] sm:$0xff]
        %v238 = vld [vmem:[%s230 + $0x38] sm:$0x3f]
        %247 = vrot.lane.b32.xlu0 %v231, 2
        %v248 = vpop.permute.xlu0 %247
        %249 = vrot.lane.b32.xlu0 %v232, 2
        %v250 = vpop.permute.xlu0 %249
        %251 = vrot.lane.b32.xlu0 %v233, 2
        %v252 = vpop.permute.xlu0 %251
        %253 = vrot.lane.b32.xlu0 %v234, 2
        %v254 = vpop.permute.xlu0 %253
        %255 = vrot.lane.b32.xlu0 %v235, 2
        %v256 = vpop.permute.xlu0 %255
        %257 = vrot.lane.b32.xlu0 %v236, 2
        %v258 = vpop.permute.xlu0 %257
        %259 = vrot.lane.b32.xlu0 %v237, 2
        %v260 = vpop.permute.xlu0 %259
        %261 = vrot.lane.b32.xlu0 %v238, 2
        %v262 = vpop.permute.xlu0 %261
        %s271 = scalar_lea.vmem [#allocation2], 72
        %272 = vst.msk [vmem:[%s271 + $0x2] sm:$0xff] %vm220, %v248
        %273 = vst.msk [vmem:[%s271 + $0xa] sm:$0xff] %vm220, %v250
        %274 = vst.msk [vmem:[%s271 + $0x12] sm:$0xff] %vm220, %v252
        %275 = vst.msk [vmem:[%s271 + $0x1a] sm:$0xff] %vm220, %v254
        %276 = vst.msk [vmem:[%s271 + $0x22] sm:$0xff] %vm220, %v256
        %277 = vst.msk [vmem:[%s271 + $0x2a] sm:$0xff] %vm220, %v258
        %278 = vst.msk [vmem:[%s271 + $0x32] sm:$0xff] %vm220, %v260
        %279 = vst.msk [vmem:[%s271 + $0x3a] sm:$0x3f] %vm228, %v262
        %s280 = scalar_lea.vmem %s125, 128
        %v281 = vld [vmem:[%s280] sm:$0xff]
        %v282 = vld [vmem:[%s280 + $0x8] sm:$0xff]
        %v283 = vld [vmem:[%s280 + $0x10] sm:$0xff]
        %v284 = vld [vmem:[%s280 + $0x18] sm:$0xff]
        %v285 = vld [vmem:[%s280 + $0x20] sm:$0xff]
        %v286 = vld [vmem:[%s280 + $0x28] sm:$0xff]
        %v287 = vld [vmem:[%s280 + $0x30] sm:$0xff]
        %v288 = vld [vmem:[%s280 + $0x38] sm:$0x3f]
        %297 = vrot.lane.b32.xlu0 %v281, 2
        %v298 = vpop.permute.xlu0 %297
        %299 = vrot.lane.b32.xlu0 %v282, 2
        %v300 = vpop.permute.xlu0 %299
        %301 = vrot.lane.b32.xlu0 %v283, 2
        %v302 = vpop.permute.xlu0 %301
        %303 = vrot.lane.b32.xlu0 %v284, 2
        %v304 = vpop.permute.xlu0 %303
        %305 = vrot.lane.b32.xlu0 %v285, 2
        %v306 = vpop.permute.xlu0 %305
        %307 = vrot.lane.b32.xlu0 %v286, 2
        %v308 = vpop.permute.xlu0 %307
        %309 = vrot.lane.b32.xlu0 %v287, 2
        %v310 = vpop.permute.xlu0 %309
        %311 = vrot.lane.b32.xlu0 %v288, 2
        %v312 = vpop.permute.xlu0 %311
        %s321 = scalar_lea.vmem [#allocation2], 144
        %322 = vst.msk [vmem:[%s321 + $0x2] sm:$0xff] %vm220, %v298
        %323 = vst.msk [vmem:[%s321 + $0xa] sm:$0xff] %vm220, %v300
        %324 = vst.msk [vmem:[%s321 + $0x12] sm:$0xff] %vm220, %v302
        %325 = vst.msk [vmem:[%s321 + $0x1a] sm:$0xff] %vm220, %v304
        %326 = vst.msk [vmem:[%s321 + $0x22] sm:$0xff] %vm220, %v306
        %327 = vst.msk [vmem:[%s321 + $0x2a] sm:$0xff] %vm220, %v308
        %328 = vst.msk [vmem:[%s321 + $0x32] sm:$0xff] %vm220, %v310
        %329 = vst.msk [vmem:[%s321 + $0x3a] sm:$0x3f] %vm228, %v312
        %s330 = scalar_lea.vmem %s125, 192
        %v331 = vld [vmem:[%s330] sm:$0xff]
        %v332 = vld [vmem:[%s330 + $0x8] sm:$0xff]
        %v333 = vld [vmem:[%s330 + $0x10] sm:$0xff]
        %v334 = vld [vmem:[%s330 + $0x18] sm:$0xff]
        %v335 = vld [vmem:[%s330 + $0x20] sm:$0xff]
        %v336 = vld [vmem:[%s330 + $0x28] sm:$0xff]
        %v337 = vld [vmem:[%s330 + $0x30] sm:$0xff]
        %v338 = vld [vmem:[%s330 + $0x38] sm:$0x3f]
        %347 = vrot.lane.b32.xlu0 %v331, 2
        %v348 = vpop.permute.xlu0 %347
        %349 = vrot.lane.b32.xlu0 %v332, 2
        %v350 = vpop.permute.xlu0 %349
        %351 = vrot.lane.b32.xlu0 %v333, 2
        %v352 = vpop.permute.xlu0 %351
        %353 = vrot.lane.b32.xlu0 %v334, 2
        %v354 = vpop.permute.xlu0 %353
        %355 = vrot.lane.b32.xlu0 %v335, 2
        %v356 = vpop.permute.xlu0 %355
        %357 = vrot.lane.b32.xlu0 %v336, 2
        %v358 = vpop.permute.xlu0 %357
        %359 = vrot.lane.b32.xlu0 %v337, 2
        %v360 = vpop.permute.xlu0 %359
        %361 = vrot.lane.b32.xlu0 %v338, 2
        %v362 = vpop.permute.xlu0 %361
        %s371 = scalar_lea.vmem [#allocation2], 216
        %372 = vst.msk [vmem:[%s371 + $0x2] sm:$0xff] %vm220, %v348
        %373 = vst.msk [vmem:[%s371 + $0xa] sm:$0xff] %vm220, %v350
        %374 = vst.msk [vmem:[%s371 + $0x12] sm:$0xff] %vm220, %v352
        %375 = vst.msk [vmem:[%s371 + $0x1a] sm:$0xff] %vm220, %v354
        %376 = vst.msk [vmem:[%s371 + $0x22] sm:$0xff] %vm220, %v356
        %377 = vst.msk [vmem:[%s371 + $0x2a] sm:$0xff] %vm220, %v358
        %378 = vst.msk [vmem:[%s371 + $0x32] sm:$0xff] %vm220, %v360
        %379 = vst.msk [vmem:[%s371 + $0x3a] sm:$0x3f] %vm228, %v362
        %s380 = scalar_lea.vmem %s125, 256
        %v381 = vld [vmem:[%s380] sm:$0xff]
        %v382 = vld [vmem:[%s380 + $0x8] sm:$0xff]
        %v383 = vld [vmem:[%s380 + $0x10] sm:$0xff]
        %v384 = vld [vmem:[%s380 + $0x18] sm:$0xff]
        %v385 = vld [vmem:[%s380 + $0x20] sm:$0xff]
        %v386 = vld [vmem:[%s380 + $0x28] sm:$0xff]
        %v387 = vld [vmem:[%s380 + $0x30] sm:$0xff]
        %v388 = vld [vmem:[%s380 + $0x38] sm:$0x3f]
        %397 = vrot.lane.b32.xlu0 %v381, 2
        %v398 = vpop.permute.xlu0 %397
        %399 = vrot.lane.b32.xlu0 %v382, 2
        %v400 = vpop.permute.xlu0 %399
        %401 = vrot.lane.b32.xlu0 %v383, 2
        %v402 = vpop.permute.xlu0 %401
        %403 = vrot.lane.b32.xlu0 %v384, 2
        %v404 = vpop.permute.xlu0 %403
        %405 = vrot.lane.b32.xlu0 %v385, 2
        %v406 = vpop.permute.xlu0 %405
        %407 = vrot.lane.b32.xlu0 %v386, 2
        %v408 = vpop.permute.xlu0 %407
        %409 = vrot.lane.b32.xlu0 %v387, 2
        %v410 = vpop.permute.xlu0 %409
        %411 = vrot.lane.b32.xlu0 %v388, 2
        %v412 = vpop.permute.xlu0 %411
        %s421 = scalar_lea.vmem [#allocation2], 288
        %422 = vst.msk [vmem:[%s421 + $0x2] sm:$0xff] %vm220, %v398
        %423 = vst.msk [vmem:[%s421 + $0xa] sm:$0xff] %vm220, %v400
        %424 = vst.msk [vmem:[%s421 + $0x12] sm:$0xff] %vm220, %v402
        %425 = vst.msk [vmem:[%s421 + $0x1a] sm:$0xff] %vm220, %v404
        %426 = vst.msk [vmem:[%s421 + $0x22] sm:$0xff] %vm220, %v406
        %427 = vst.msk [vmem:[%s421 + $0x2a] sm:$0xff] %vm220, %v408
        %428 = vst.msk [vmem:[%s421 + $0x32] sm:$0xff] %vm220, %v410
        %429 = vst.msk [vmem:[%s421 + $0x3a] sm:$0x3f] %vm228, %v412
        %s430 = scalar_lea.vmem %s125, 320
        %v431 = vld [vmem:[%s430] sm:$0xff]
        %v432 = vld [vmem:[%s430 + $0x8] sm:$0xff]
        %v433 = vld [vmem:[%s430 + $0x10] sm:$0xff]
        %v434 = vld [vmem:[%s430 + $0x18] sm:$0xff]
        %v435 = vld [vmem:[%s430 + $0x20] sm:$0xff]
        %v436 = vld [vmem:[%s430 + $0x28] sm:$0xff]
        %v437 = vld [vmem:[%s430 + $0x30] sm:$0xff]
        %v438 = vld [vmem:[%s430 + $0x38] sm:$0x3f]
        %447 = vrot.lane.b32.xlu0 %v431, 2
        %v448 = vpop.permute.xlu0 %447
        %449 = vrot.lane.b32.xlu0 %v432, 2
        %v450 = vpop.permute.xlu0 %449
        %451 = vrot.lane.b32.xlu0 %v433, 2
        %v452 = vpop.permute.xlu0 %451
        %453 = vrot.lane.b32.xlu0 %v434, 2
        %v454 = vpop.permute.xlu0 %453
        %455 = vrot.lane.b32.xlu0 %v435, 2
        %v456 = vpop.permute.xlu0 %455
        %457 = vrot.lane.b32.xlu0 %v436, 2
        %v458 = vpop.permute.xlu0 %457
        %459 = vrot.lane.b32.xlu0 %v437, 2
        %v460 = vpop.permute.xlu0 %459
        %461 = vrot.lane.b32.xlu0 %v438, 2
        %v462 = vpop.permute.xlu0 %461
        %s471 = scalar_lea.vmem [#allocation2], 360
        %472 = vst.msk [vmem:[%s471 + $0x2] sm:$0xff] %vm220, %v448
        %473 = vst.msk [vmem:[%s471 + $0xa] sm:$0xff] %vm220, %v450
        %474 = vst.msk [vmem:[%s471 + $0x12] sm:$0xff] %vm220, %v452
        %475 = vst.msk [vmem:[%s471 + $0x1a] sm:$0xff] %vm220, %v454
        %476 = vst.msk [vmem:[%s471 + $0x22] sm:$0xff] %vm220, %v456
        %477 = vst.msk [vmem:[%s471 + $0x2a] sm:$0xff] %vm220, %v458
        %478 = vst.msk [vmem:[%s471 + $0x32] sm:$0xff] %vm220, %v460
        %479 = vst.msk [vmem:[%s471 + $0x3a] sm:$0x3f] %vm228, %v462
        %s480 = sld [smem:[#allocation5]]
        %v481 = vstv %s480
        %s482 = sld [smem:[#allocation4 + $0x8]]
        %v483 = vld [vmem:[#allocation2] sm:$0xff]
        %v484 = vld [vmem:[#allocation2 + $0x8] sm:$0xff]
        %v485 = vld [vmem:[#allocation2 + $0x10] sm:$0xff]
        %v486 = vld [vmem:[#allocation2 + $0x18] sm:$0xff]
        %v487 = vld [vmem:[#allocation2 + $0x20] sm:$0xff]
        %v488 = vld [vmem:[#allocation2 + $0x28] sm:$0xff]
        %v489 = vld [vmem:[#allocation2 + $0x30] sm:$0xff]
        %v490 = vld [vmem:[#allocation2 + $0x38] sm:$0xff]
        %v491 = vstv %s482
        %v492 = vmul.f32 %v491, %v483
        %v493 = vmul.f32 %v491, %v484
        %v494 = vmul.f32 %v491, %v485
        %v495 = vmul.f32 %v491, %v486
        %v496 = vmul.f32 %v491, %v487
        %v497 = vmul.f32 %v491, %v488
        %v498 = vmul.f32 %v491, %v489
        %v499 = vmul.f32 %v491, %v490
        %v500 = vadd.f32 %v481, %v492
        %v501 = vadd.f32 %v481, %v493
        %v502 = vadd.f32 %v481, %v494
        %v503 = vadd.f32 %v481, %v495
        %v504 = vadd.f32 %v481, %v496
        %v505 = vadd.f32 %v481, %v497
        %v506 = vadd.f32 %v481, %v498
        %v507 = vadd.f32 %v481, %v499
        %s508 = sld [smem:[#allocation4 + $0x7]]
        %v509 = vstv %s508
        %v510 = vmul.f32 %v509, %v483
        %v511 = vmul.f32 %v509, %v484
        %v512 = vmul.f32 %v509, %v485
        %v513 = vmul.f32 %v509, %v486
        %v514 = vmul.f32 %v509, %v487
        %v515 = vmul.f32 %v509, %v488
        %v516 = vmul.f32 %v509, %v489
        %v517 = vmul.f32 %v509, %v490
        %526 = vrot.lane.b32.xlu0 %v510, 127
        %v527 = vpop.permute.xlu0 %526
        %528 = vrot.lane.b32.xlu0 %v511, 127
        %v529 = vpop.permute.xlu0 %528
        %530 = vrot.lane.b32.xlu0 %v512, 127
        %v531 = vpop.permute.xlu0 %530
        %532 = vrot.lane.b32.xlu0 %v513, 127
        %v533 = vpop.permute.xlu0 %532
        %534 = vrot.lane.b32.xlu0 %v514, 127
        %v535 = vpop.permute.xlu0 %534
        %536 = vrot.lane.b32.xlu0 %v515, 127
        %v537 = vpop.permute.xlu0 %536
        %538 = vrot.lane.b32.xlu0 %v516, 127
        %v539 = vpop.permute.xlu0 %538
        %540 = vrot.lane.b32.xlu0 %v517, 127
        %v541 = vpop.permute.xlu0 %540
        %v550 = vadd.f32 %v500, %v527
        %v551 = vadd.f32 %v501, %v529
        %v552 = vadd.f32 %v502, %v531
        %v553 = vadd.f32 %v503, %v533
        %v554 = vadd.f32 %v504, %v535
        %v555 = vadd.f32 %v505, %v537
        %v556 = vadd.f32 %v506, %v539
        %v557 = vadd.f32 %v507, %v541
        %s558 = sld [smem:[#allocation4 + $0x6]]
        %v559 = vstv %s558
        %v560 = vmul.f32 %v559, %v483
        %v561 = vmul.f32 %v559, %v484
        %v562 = vmul.f32 %v559, %v485
        %v563 = vmul.f32 %v559, %v486
        %v564 = vmul.f32 %v559, %v487
        %v565 = vmul.f32 %v559, %v488
        %v566 = vmul.f32 %v559, %v489
        %v567 = vmul.f32 %v559, %v490
        %576 = vrot.lane.b32.xlu0 %v560, 126
        %v577 = vpop.permute.xlu0 %576
        %578 = vrot.lane.b32.xlu0 %v561, 126
        %v579 = vpop.permute.xlu0 %578
        %580 = vrot.lane.b32.xlu0 %v562, 126
        %v581 = vpop.permute.xlu0 %580
        %582 = vrot.lane.b32.xlu0 %v563, 126
        %v583 = vpop.permute.xlu0 %582
        %584 = vrot.lane.b32.xlu0 %v564, 126
        %v585 = vpop.permute.xlu0 %584
        %586 = vrot.lane.b32.xlu0 %v565, 126
        %v587 = vpop.permute.xlu0 %586
        %588 = vrot.lane.b32.xlu0 %v566, 126
        %v589 = vpop.permute.xlu0 %588
        %590 = vrot.lane.b32.xlu0 %v567, 126
        %v591 = vpop.permute.xlu0 %590
        %v600 = vadd.f32 %v550, %v577
        %v601 = vadd.f32 %v551, %v579
        %v602 = vadd.f32 %v552, %v581
        %v603 = vadd.f32 %v553, %v583
        %v604 = vadd.f32 %v554, %v585
        %v605 = vadd.f32 %v555, %v587
        %v606 = vadd.f32 %v556, %v589
        %v607 = vadd.f32 %v557, %v591
        %s608 = sld [smem:[#allocation4 + $0x5]]
        %v609 = vld [vmem:[#allocation2 + $0x1] sm:$0xff]
        %v610 = vld [vmem:[#allocation2 + $0x9] sm:$0xff]
        %v611 = vld [vmem:[#allocation2 + $0x11] sm:$0xff]
        %v612 = vld [vmem:[#allocation2 + $0x19] sm:$0xff]
        %v613 = vld [vmem:[#allocation2 + $0x21] sm:$0xff]
        %v614 = vld [vmem:[#allocation2 + $0x29] sm:$0xff]
        %v615 = vld [vmem:[#allocation2 + $0x31] sm:$0xff]
        %v616 = vld [vmem:[#allocation2 + $0x39] sm:$0xff]
        %v617 = vstv %s608
        %v618 = vmul.f32 %v617, %v609
        %v619 = vmul.f32 %v617, %v610
        %v620 = vmul.f32 %v617, %v611
        %v621 = vmul.f32 %v617, %v612
        %v622 = vmul.f32 %v617, %v613
        %v623 = vmul.f32 %v617, %v614
        %v624 = vmul.f32 %v617, %v615
        %v625 = vmul.f32 %v617, %v616
        %v626 = vadd.f32 %v600, %v618
        %v627 = vadd.f32 %v601, %v619
        %v628 = vadd.f32 %v602, %v620
        %v629 = vadd.f32 %v603, %v621
        %v630 = vadd.f32 %v604, %v622
        %v631 = vadd.f32 %v605, %v623
        %v632 = vadd.f32 %v606, %v624
        %v633 = vadd.f32 %v607, %v625
        %s634 = sld [smem:[#allocation4 + $0x4]]
        %v635 = vstv %s634
        %v636 = vmul.f32 %v635, %v609
        %v637 = vmul.f32 %v635, %v610
        %v638 = vmul.f32 %v635, %v611
        %v639 = vmul.f32 %v635, %v612
        %v640 = vmul.f32 %v635, %v613
        %v641 = vmul.f32 %v635, %v614
        %v642 = vmul.f32 %v635, %v615
        %v643 = vmul.f32 %v635, %v616
        %652 = vrot.lane.b32.xlu0 %v636, 127
        %v653 = vpop.permute.xlu0 %652
        %654 = vrot.lane.b32.xlu0 %v637, 127
        %v655 = vpop.permute.xlu0 %654
        %656 = vrot.lane.b32.xlu0 %v638, 127
        %v657 = vpop.permute.xlu0 %656
        %658 = vrot.lane.b32.xlu0 %v639, 127
        %v659 = vpop.permute.xlu0 %658
        %660 = vrot.lane.b32.xlu0 %v640, 127
        %v661 = vpop.permute.xlu0 %660
        %662 = vrot.lane.b32.xlu0 %v641, 127
        %v663 = vpop.permute.xlu0 %662
        %664 = vrot.lane.b32.xlu0 %v642, 127
        %v665 = vpop.permute.xlu0 %664
        %666 = vrot.lane.b32.xlu0 %v643, 127
        %v667 = vpop.permute.xlu0 %666
        %v676 = vadd.f32 %v626, %v653
        %v677 = vadd.f32 %v627, %v655
        %v678 = vadd.f32 %v628, %v657
        %v679 = vadd.f32 %v629, %v659
        %v680 = vadd.f32 %v630, %v661
        %v681 = vadd.f32 %v631, %v663
        %v682 = vadd.f32 %v632, %v665
        %v683 = vadd.f32 %v633, %v667
        %s684 = sld [smem:[#allocation4 + $0x3]]
        %v685 = vstv %s684
        %v686 = vmul.f32 %v685, %v609
        %v687 = vmul.f32 %v685, %v610
        %v688 = vmul.f32 %v685, %v611
        %v689 = vmul.f32 %v685, %v612
        %v690 = vmul.f32 %v685, %v613
        %v691 = vmul.f32 %v685, %v614
        %v692 = vmul.f32 %v685, %v615
        %v693 = vmul.f32 %v685, %v616
        %702 = vrot.lane.b32.xlu0 %v686, 126
        %v703 = vpop.permute.xlu0 %702
        %704 = vrot.lane.b32.xlu0 %v687, 126
        %v705 = vpop.permute.xlu0 %704
        %706 = vrot.lane.b32.xlu0 %v688, 126
        %v707 = vpop.permute.xlu0 %706
        %708 = vrot.lane.b32.xlu0 %v689, 126
        %v709 = vpop.permute.xlu0 %708
        %710 = vrot.lane.b32.xlu0 %v690, 126
        %v711 = vpop.permute.xlu0 %710
        %712 = vrot.lane.b32.xlu0 %v691, 126
        %v713 = vpop.permute.xlu0 %712
        %714 = vrot.lane.b32.xlu0 %v692, 126
        %v715 = vpop.permute.xlu0 %714
        %716 = vrot.lane.b32.xlu0 %v693, 126
        %v717 = vpop.permute.xlu0 %716
        %v726 = vadd.f32 %v676, %v703
        %v727 = vadd.f32 %v677, %v705
        %v728 = vadd.f32 %v678, %v707
        %v729 = vadd.f32 %v679, %v709
        %v730 = vadd.f32 %v680, %v711
        %v731 = vadd.f32 %v681, %v713
        %v732 = vadd.f32 %v682, %v715
        %v733 = vadd.f32 %v683, %v717
        %s734 = sld [smem:[#allocation4 + $0x2]]
        %v735 = vld [vmem:[#allocation2 + $0x2] sm:$0xff]
        %v736 = vld [vmem:[#allocation2 + $0xa] sm:$0xff]
        %v737 = vld [vmem:[#allocation2 + $0x12] sm:$0xff]
        %v738 = vld [vmem:[#allocation2 + $0x1a] sm:$0xff]
        %v739 = vld [vmem:[#allocation2 + $0x22] sm:$0xff]
        %v740 = vld [vmem:[#allocation2 + $0x2a] sm:$0xff]
        %v741 = vld [vmem:[#allocation2 + $0x32] sm:$0xff]
        %v742 = vld [vmem:[#allocation2 + $0x3a] sm:$0xff]
        %v743 = vstv %s734
        %v744 = vmul.f32 %v743, %v735
        %v745 = vmul.f32 %v743, %v736
        %v746 = vmul.f32 %v743, %v737
        %v747 = vmul.f32 %v743, %v738
        %v748 = vmul.f32 %v743, %v739
        %v749 = vmul.f32 %v743, %v740
        %v750 = vmul.f32 %v743, %v741
        %v751 = vmul.f32 %v743, %v742
        %v752 = vadd.f32 %v726, %v744
        %v753 = vadd.f32 %v727, %v745
        %v754 = vadd.f32 %v728, %v746
        %v755 = vadd.f32 %v729, %v747
        %v756 = vadd.f32 %v730, %v748
        %v757 = vadd.f32 %v731, %v749
        %v758 = vadd.f32 %v732, %v750
        %v759 = vadd.f32 %v733, %v751
        %s760 = sld [smem:[#allocation4 + $0x1]]
        %v761 = vstv %s760
        %v762 = vmul.f32 %v761, %v735
        %v763 = vmul.f32 %v761, %v736
        %v764 = vmul.f32 %v761, %v737
        %v765 = vmul.f32 %v761, %v738
        %v766 = vmul.f32 %v761, %v739
        %v767 = vmul.f32 %v761, %v740
        %v768 = vmul.f32 %v761, %v741
        %v769 = vmul.f32 %v761, %v742
        %778 = vrot.lane.b32.xlu0 %v762, 127
        %v779 = vpop.permute.xlu0 %778
        %780 = vrot.lane.b32.xlu0 %v763, 127
        %v781 = vpop.permute.xlu0 %780
        %782 = vrot.lane.b32.xlu0 %v764, 127
        %v783 = vpop.permute.xlu0 %782
        %784 = vrot.lane.b32.xlu0 %v765, 127
        %v785 = vpop.permute.xlu0 %784
        %786 = vrot.lane.b32.xlu0 %v766, 127
        %v787 = vpop.permute.xlu0 %786
        %788 = vrot.lane.b32.xlu0 %v767, 127
        %v789 = vpop.permute.xlu0 %788
        %790 = vrot.lane.b32.xlu0 %v768, 127
        %v791 = vpop.permute.xlu0 %790
        %792 = vrot.lane.b32.xlu0 %v769, 127
        %v793 = vpop.permute.xlu0 %792
        %v802 = vadd.f32 %v752, %v779
        %v803 = vadd.f32 %v753, %v781
        %v804 = vadd.f32 %v754, %v783
        %v805 = vadd.f32 %v755, %v785
        %v806 = vadd.f32 %v756, %v787
        %v807 = vadd.f32 %v757, %v789
        %v808 = vadd.f32 %v758, %v791
        %v809 = vadd.f32 %v759, %v793
        %s810 = sld [smem:[#allocation4]]
        %v811 = vstv %s810
        %v812 = vmul.f32 %v811, %v735
        %v813 = vmul.f32 %v811, %v736
        %v814 = vmul.f32 %v811, %v737
        %v815 = vmul.f32 %v811, %v738
        %v816 = vmul.f32 %v811, %v739
        %v817 = vmul.f32 %v811, %v740
        %v818 = vmul.f32 %v811, %v741
        %v819 = vmul.f32 %v811, %v742
        %828 = vrot.lane.b32.xlu0 %v812, 126
        %v829 = vpop.permute.xlu0 %828
        %830 = vrot.lane.b32.xlu0 %v813, 126
        %v831 = vpop.permute.xlu0 %830
        %832 = vrot.lane.b32.xlu0 %v814, 126
        %v833 = vpop.permute.xlu0 %832
        %834 = vrot.lane.b32.xlu0 %v815, 126
        %v835 = vpop.permute.xlu0 %834
        %836 = vrot.lane.b32.xlu0 %v816, 126
        %v837 = vpop.permute.xlu0 %836
        %838 = vrot.lane.b32.xlu0 %v817, 126
        %v839 = vpop.permute.xlu0 %838
        %840 = vrot.lane.b32.xlu0 %v818, 126
        %v841 = vpop.permute.xlu0 %840
        %842 = vrot.lane.b32.xlu0 %v819, 126
        %v843 = vpop.permute.xlu0 %842
        %v852 = vadd.f32 %v802, %v829
        %v853 = vadd.f32 %v803, %v831
        %v854 = vadd.f32 %v804, %v833
        %v855 = vadd.f32 %v805, %v835
        %v856 = vadd.f32 %v806, %v837
        %v857 = vadd.f32 %v807, %v839
        %v858 = vadd.f32 %v808, %v841
        %v859 = vadd.f32 %v809, %v843
        %s860 = sld [smem:[#allocation4 + $0x11]]
        %v861 = vld [vmem:[%s271] sm:$0xff]
        %v862 = vld [vmem:[%s271 + $0x8] sm:$0xff]
        %v863 = vld [vmem:[%s271 + $0x10] sm:$0xff]
        %v864 = vld [vmem:[%s271 + $0x18] sm:$0xff]
        %v865 = vld [vmem:[%s271 + $0x20] sm:$0xff]
        %v866 = vld [vmem:[%s271 + $0x28] sm:$0xff]
        %v867 = vld [vmem:[%s271 + $0x30] sm:$0xff]
        %v868 = vld [vmem:[%s271 + $0x38] sm:$0xff]
        %v869 = vstv %s860
        %v870 = vmul.f32 %v869, %v861
        %v871 = vmul.f32 %v869, %v862
        %v872 = vmul.f32 %v869, %v863
        %v873 = vmul.f32 %v869, %v864
        %v874 = vmul.f32 %v869, %v865
        %v875 = vmul.f32 %v869, %v866
        %v876 = vmul.f32 %v869, %v867
        %v877 = vmul.f32 %v869, %v868
        %v878 = vadd.f32 %v852, %v870
        %v879 = vadd.f32 %v853, %v871
        %v880 = vadd.f32 %v854, %v872
        %v881 = vadd.f32 %v855, %v873
        %v882 = vadd.f32 %v856, %v874
        %v883 = vadd.f32 %v857, %v875
        %v884 = vadd.f32 %v858, %v876
        %v885 = vadd.f32 %v859, %v877
        %s886 = sld [smem:[#allocation4 + $0x10]]
        %v887 = vstv %s886
        %v888 = vmul.f32 %v887, %v861
        %v889 = vmul.f32 %v887, %v862
        %v890 = vmul.f32 %v887, %v863
        %v891 = vmul.f32 %v887, %v864
        %v892 = vmul.f32 %v887, %v865
        %v893 = vmul.f32 %v887, %v866
        %v894 = vmul.f32 %v887, %v867
        %v895 = vmul.f32 %v887, %v868
        %904 = vrot.lane.b32.xlu0 %v888, 127
        %v905 = vpop.permute.xlu0 %904
        %906 = vrot.lane.b32.xlu0 %v889, 127
        %v907 = vpop.permute.xlu0 %906
        %908 = vrot.lane.b32.xlu0 %v890, 127
        %v909 = vpop.permute.xlu0 %908
        %910 = vrot.lane.b32.xlu0 %v891, 127
        %v911 = vpop.permute.xlu0 %910
        %912 = vrot.lane.b32.xlu0 %v892, 127
        %v913 = vpop.permute.xlu0 %912
        %914 = vrot.lane.b32.xlu0 %v893, 127
        %v915 = vpop.permute.xlu0 %914
        %916 = vrot.lane.b32.xlu0 %v894, 127
        %v917 = vpop.permute.xlu0 %916
        %918 = vrot.lane.b32.xlu0 %v895, 127
        %v919 = vpop.permute.xlu0 %918
        %v928 = vadd.f32 %v878, %v905
        %v929 = vadd.f32 %v879, %v907
        %v930 = vadd.f32 %v880, %v909
        %v931 = vadd.f32 %v881, %v911
        %v932 = vadd.f32 %v882, %v913
        %v933 = vadd.f32 %v883, %v915
        %v934 = vadd.f32 %v884, %v917
        %v935 = vadd.f32 %v885, %v919
        %s936 = sld [smem:[#allocation4 + $0xf]]
        %v937 = vstv %s936
        %v938 = vmul.f32 %v937, %v861
        %v939 = vmul.f32 %v937, %v862
        %v940 = vmul.f32 %v937, %v863
        %v941 = vmul.f32 %v937, %v864
        %v942 = vmul.f32 %v937, %v865
        %v943 = vmul.f32 %v937, %v866
        %v944 = vmul.f32 %v937, %v867
        %v945 = vmul.f32 %v937, %v868
        %954 = vrot.lane.b32.xlu0 %v938, 126
        %v955 = vpop.permute.xlu0 %954
        %956 = vrot.lane.b32.xlu0 %v939, 126
        %v957 = vpop.permute.xlu0 %956
        %958 = vrot.lane.b32.xlu0 %v940, 126
        %v959 = vpop.permute.xlu0 %958
        %960 = vrot.lane.b32.xlu0 %v941, 126
        %v961 = vpop.permute.xlu0 %960
        %962 = vrot.lane.b32.xlu0 %v942, 126
        %v963 = vpop.permute.xlu0 %962
        %964 = vrot.lane.b32.xlu0 %v943, 126
        %v965 = vpop.permute.xlu0 %964
        %966 = vrot.lane.b32.xlu0 %v944, 126
        %v967 = vpop.permute.xlu0 %966
        %968 = vrot.lane.b32.xlu0 %v945, 126
        %v969 = vpop.permute.xlu0 %968
        %v978 = vadd.f32 %v928, %v955
        %v979 = vadd.f32 %v929, %v957
        %v980 = vadd.f32 %v930, %v959
        %v981 = vadd.f32 %v931, %v961
        %v982 = vadd.f32 %v932, %v963
        %v983 = vadd.f32 %v933, %v965
        %v984 = vadd.f32 %v934, %v967
        %v985 = vadd.f32 %v935, %v969
        %s986 = sld [smem:[#allocation4 + $0xe]]
        %v987 = vld [vmem:[%s271 + $0x1] sm:$0xff]
        %v988 = vld [vmem:[%s271 + $0x9] sm:$0xff]
        %v989 = vld [vmem:[%s271 + $0x11] sm:$0xff]
        %v990 = vld [vmem:[%s271 + $0x19] sm:$0xff]
        %v991 = vld [vmem:[%s271 + $0x21] sm:$0xff]
        %v992 = vld [vmem:[%s271 + $0x29] sm:$0xff]
        %v993 = vld [vmem:[%s271 + $0x31] sm:$0xff]
        %v994 = vld [vmem:[%s271 + $0x39] sm:$0xff]
        %v995 = vstv %s986
        %v996 = vmul.f32 %v995, %v987
        %v997 = vmul.f32 %v995, %v988
        %v998 = vmul.f32 %v995, %v989
        %v999 = vmul.f32 %v995, %v990
        %v1000 = vmul.f32 %v995, %v991
        %v1001 = vmul.f32 %v995, %v992
        %v1002 = vmul.f32 %v995, %v993
        %v1003 = vmul.f32 %v995, %v994
        %v1004 = vadd.f32 %v978, %v996
        %v1005 = vadd.f32 %v979, %v997
        %v1006 = vadd.f32 %v980, %v998
        %v1007 = vadd.f32 %v981, %v999
        %v1008 = vadd.f32 %v982, %v1000
        %v1009 = vadd.f32 %v983, %v1001
        %v1010 = vadd.f32 %v984, %v1002
        %v1011 = vadd.f32 %v985, %v1003
        %s1012 = sld [smem:[#allocation4 + $0xd]]
        %v1013 = vstv %s1012
        %v1014 = vmul.f32 %v1013, %v987
        %v1015 = vmul.f32 %v1013, %v988
        %v1016 = vmul.f32 %v1013, %v989
        %v1017 = vmul.f32 %v1013, %v990
        %v1018 = vmul.f32 %v1013, %v991
        %v1019 = vmul.f32 %v1013, %v992
        %v1020 = vmul.f32 %v1013, %v993
        %v1021 = vmul.f32 %v1013, %v994
        %1030 = vrot.lane.b32.xlu0 %v1014, 127
        %v1031 = vpop.permute.xlu0 %1030
        %1032 = vrot.lane.b32.xlu0 %v1015, 127
        %v1033 = vpop.permute.xlu0 %1032
        %1034 = vrot.lane.b32.xlu0 %v1016, 127
        %v1035 = vpop.permute.xlu0 %1034
        %1036 = vrot.lane.b32.xlu0 %v1017, 127
        %v1037 = vpop.permute.xlu0 %1036
        %1038 = vrot.lane.b32.xlu0 %v1018, 127
        %v1039 = vpop.permute.xlu0 %1038
        %1040 = vrot.lane.b32.xlu0 %v1019, 127
        %v1041 = vpop.permute.xlu0 %1040
        %1042 = vrot.lane.b32.xlu0 %v1020, 127
        %v1043 = vpop.permute.xlu0 %1042
        %1044 = vrot.lane.b32.xlu0 %v1021, 127
        %v1045 = vpop.permute.xlu0 %1044
        %v1054 = vadd.f32 %v1004, %v1031
        %v1055 = vadd.f32 %v1005, %v1033
        %v1056 = vadd.f32 %v1006, %v1035
        %v1057 = vadd.f32 %v1007, %v1037
        %v1058 = vadd.f32 %v1008, %v1039
        %v1059 = vadd.f32 %v1009, %v1041
        %v1060 = vadd.f32 %v1010, %v1043
        %v1061 = vadd.f32 %v1011, %v1045
        %s1062 = sld [smem:[#allocation4 + $0xc]]
        %v1063 = vstv %s1062
        %v1064 = vmul.f32 %v1063, %v987
        %v1065 = vmul.f32 %v1063, %v988
        %v1066 = vmul.f32 %v1063, %v989
        %v1067 = vmul.f32 %v1063, %v990
        %v1068 = vmul.f32 %v1063, %v991
        %v1069 = vmul.f32 %v1063, %v992
        %v1070 = vmul.f32 %v1063, %v993
        %v1071 = vmul.f32 %v1063, %v994
        %1080 = vrot.lane.b32.xlu0 %v1064, 126
        %v1081 = vpop.permute.xlu0 %1080
        %1082 = vrot.lane.b32.xlu0 %v1065, 126
        %v1083 = vpop.permute.xlu0 %1082
        %1084 = vrot.lane.b32.xlu0 %v1066, 126
        %v1085 = vpop.permute.xlu0 %1084
        %1086 = vrot.lane.b32.xlu0 %v1067, 126
        %v1087 = vpop.permute.xlu0 %1086
        %1088 = vrot.lane.b32.xlu0 %v1068, 126
        %v1089 = vpop.permute.xlu0 %1088
        %1090 = vrot.lane.b32.xlu0 %v1069, 126
        %v1091 = vpop.permute.xlu0 %1090
        %1092 = vrot.lane.b32.xlu0 %v1070, 126
        %v1093 = vpop.permute.xlu0 %1092
        %1094 = vrot.lane.b32.xlu0 %v1071, 126
        %v1095 = vpop.permute.xlu0 %1094
        %v1104 = vadd.f32 %v1054, %v1081
        %v1105 = vadd.f32 %v1055, %v1083
        %v1106 = vadd.f32 %v1056, %v1085
        %v1107 = vadd.f32 %v1057, %v1087
        %v1108 = vadd.f32 %v1058, %v1089
        %v1109 = vadd.f32 %v1059, %v1091
        %v1110 = vadd.f32 %v1060, %v1093
        %v1111 = vadd.f32 %v1061, %v1095
        %s1112 = sld [smem:[#allocation4 + $0xb]]
        %v1113 = vld [vmem:[%s271 + $0x2] sm:$0xff]
        %v1114 = vld [vmem:[%s271 + $0xa] sm:$0xff]
        %v1115 = vld [vmem:[%s271 + $0x12] sm:$0xff]
        %v1116 = vld [vmem:[%s271 + $0x1a] sm:$0xff]
        %v1117 = vld [vmem:[%s271 + $0x22] sm:$0xff]
        %v1118 = vld [vmem:[%s271 + $0x2a] sm:$0xff]
        %v1119 = vld [vmem:[%s271 + $0x32] sm:$0xff]
        %v1120 = vld [vmem:[%s271 + $0x3a] sm:$0xff]
        %v1121 = vstv %s1112
        %v1122 = vmul.f32 %v1121, %v1113
        %v1123 = vmul.f32 %v1121, %v1114
        %v1124 = vmul.f32 %v1121, %v1115
        %v1125 = vmul.f32 %v1121, %v1116
        %v1126 = vmul.f32 %v1121, %v1117
        %v1127 = vmul.f32 %v1121, %v1118
        %v1128 = vmul.f32 %v1121, %v1119
        %v1129 = vmul.f32 %v1121, %v1120
        %v1130 = vadd.f32 %v1104, %v1122
        %v1131 = vadd.f32 %v1105, %v1123
        %v1132 = vadd.f32 %v1106, %v1124
        %v1133 = vadd.f32 %v1107, %v1125
        %v1134 = vadd.f32 %v1108, %v1126
        %v1135 = vadd.f32 %v1109, %v1127
        %v1136 = vadd.f32 %v1110, %v1128
        %v1137 = vadd.f32 %v1111, %v1129
        %s1138 = sld [smem:[#allocation4 + $0xa]]
        %v1139 = vstv %s1138
        %v1140 = vmul.f32 %v1139, %v1113
        %v1141 = vmul.f32 %v1139, %v1114
        %v1142 = vmul.f32 %v1139, %v1115
        %v1143 = vmul.f32 %v1139, %v1116
        %v1144 = vmul.f32 %v1139, %v1117
        %v1145 = vmul.f32 %v1139, %v1118
        %v1146 = vmul.f32 %v1139, %v1119
        %v1147 = vmul.f32 %v1139, %v1120
        %1156 = vrot.lane.b32.xlu0 %v1140, 127
        %v1157 = vpop.permute.xlu0 %1156
        %1158 = vrot.lane.b32.xlu0 %v1141, 127
        %v1159 = vpop.permute.xlu0 %1158
        %1160 = vrot.lane.b32.xlu0 %v1142, 127
        %v1161 = vpop.permute.xlu0 %1160
        %1162 = vrot.lane.b32.xlu0 %v1143, 127
        %v1163 = vpop.permute.xlu0 %1162
        %1164 = vrot.lane.b32.xlu0 %v1144, 127
        %v1165 = vpop.permute.xlu0 %1164
        %1166 = vrot.lane.b32.xlu0 %v1145, 127
        %v1167 = vpop.permute.xlu0 %1166
        %1168 = vrot.lane.b32.xlu0 %v1146, 127
        %v1169 = vpop.permute.xlu0 %1168
        %1170 = vrot.lane.b32.xlu0 %v1147, 127
        %v1171 = vpop.permute.xlu0 %1170
        %v1180 = vadd.f32 %v1130, %v1157
        %v1181 = vadd.f32 %v1131, %v1159
        %v1182 = vadd.f32 %v1132, %v1161
        %v1183 = vadd.f32 %v1133, %v1163
        %v1184 = vadd.f32 %v1134, %v1165
        %v1185 = vadd.f32 %v1135, %v1167
        %v1186 = vadd.f32 %v1136, %v1169
        %v1187 = vadd.f32 %v1137, %v1171
        %s1188 = sld [smem:[#allocation4 + $0x9]]
        %v1189 = vstv %s1188
        %v1190 = vmul.f32 %v1189, %v1113
        %v1191 = vmul.f32 %v1189, %v1114
        %v1192 = vmul.f32 %v1189, %v1115
        %v1193 = vmul.f32 %v1189, %v1116
        %v1194 = vmul.f32 %v1189, %v1117
        %v1195 = vmul.f32 %v1189, %v1118
        %v1196 = vmul.f32 %v1189, %v1119
        %v1197 = vmul.f32 %v1189, %v1120
        %1206 = vrot.lane.b32.xlu0 %v1190, 126
        %v1207 = vpop.permute.xlu0 %1206
        %1208 = vrot.lane.b32.xlu0 %v1191, 126
        %v1209 = vpop.permute.xlu0 %1208
        %1210 = vrot.lane.b32.xlu0 %v1192, 126
        %v1211 = vpop.permute.xlu0 %1210
        %1212 = vrot.lane.b32.xlu0 %v1193, 126
        %v1213 = vpop.permute.xlu0 %1212
        %1214 = vrot.lane.b32.xlu0 %v1194, 126
        %v1215 = vpop.permute.xlu0 %1214
        %1216 = vrot.lane.b32.xlu0 %v1195, 126
        %v1217 = vpop.permute.xlu0 %1216
        %1218 = vrot.lane.b32.xlu0 %v1196, 126
        %v1219 = vpop.permute.xlu0 %1218
        %1220 = vrot.lane.b32.xlu0 %v1197, 126
        %v1221 = vpop.permute.xlu0 %1220
        %v1230 = vadd.f32 %v1180, %v1207
        %v1231 = vadd.f32 %v1181, %v1209
        %v1232 = vadd.f32 %v1182, %v1211
        %v1233 = vadd.f32 %v1183, %v1213
        %v1234 = vadd.f32 %v1184, %v1215
        %v1235 = vadd.f32 %v1185, %v1217
        %v1236 = vadd.f32 %v1186, %v1219
        %v1237 = vadd.f32 %v1187, %v1221
        %s1238 = sld [smem:[#allocation4 + $0x1a]]
        %v1239 = vld [vmem:[%s321] sm:$0xff]
        %v1240 = vld [vmem:[%s321 + $0x8] sm:$0xff]
        %v1241 = vld [vmem:[%s321 + $0x10] sm:$0xff]
        %v1242 = vld [vmem:[%s321 + $0x18] sm:$0xff]
        %v1243 = vld [vmem:[%s321 + $0x20] sm:$0xff]
        %v1244 = vld [vmem:[%s321 + $0x28] sm:$0xff]
        %v1245 = vld [vmem:[%s321 + $0x30] sm:$0xff]
        %v1246 = vld [vmem:[%s321 + $0x38] sm:$0xff]
        %v1247 = vstv %s1238
        %v1248 = vmul.f32 %v1247, %v1239
        %v1249 = vmul.f32 %v1247, %v1240
        %v1250 = vmul.f32 %v1247, %v1241
        %v1251 = vmul.f32 %v1247, %v1242
        %v1252 = vmul.f32 %v1247, %v1243
        %v1253 = vmul.f32 %v1247, %v1244
        %v1254 = vmul.f32 %v1247, %v1245
        %v1255 = vmul.f32 %v1247, %v1246
        %v1256 = vadd.f32 %v1230, %v1248
        %v1257 = vadd.f32 %v1231, %v1249
        %v1258 = vadd.f32 %v1232, %v1250
        %v1259 = vadd.f32 %v1233, %v1251
        %v1260 = vadd.f32 %v1234, %v1252
        %v1261 = vadd.f32 %v1235, %v1253
        %v1262 = vadd.f32 %v1236, %v1254
        %v1263 = vadd.f32 %v1237, %v1255
        %s1264 = sld [smem:[#allocation4 + $0x19]]
        %v1265 = vstv %s1264
        %v1266 = vmul.f32 %v1265, %v1239
        %v1267 = vmul.f32 %v1265, %v1240
        %v1268 = vmul.f32 %v1265, %v1241
        %v1269 = vmul.f32 %v1265, %v1242
        %v1270 = vmul.f32 %v1265, %v1243
        %v1271 = vmul.f32 %v1265, %v1244
        %v1272 = vmul.f32 %v1265, %v1245
        %v1273 = vmul.f32 %v1265, %v1246
        %1282 = vrot.lane.b32.xlu0 %v1266, 127
        %v1283 = vpop.permute.xlu0 %1282
        %1284 = vrot.lane.b32.xlu0 %v1267, 127
        %v1285 = vpop.permute.xlu0 %1284
        %1286 = vrot.lane.b32.xlu0 %v1268, 127
        %v1287 = vpop.permute.xlu0 %1286
        %1288 = vrot.lane.b32.xlu0 %v1269, 127
        %v1289 = vpop.permute.xlu0 %1288
        %1290 = vrot.lane.b32.xlu0 %v1270, 127
        %v1291 = vpop.permute.xlu0 %1290
        %1292 = vrot.lane.b32.xlu0 %v1271, 127
        %v1293 = vpop.permute.xlu0 %1292
        %1294 = vrot.lane.b32.xlu0 %v1272, 127
        %v1295 = vpop.permute.xlu0 %1294
        %1296 = vrot.lane.b32.xlu0 %v1273, 127
        %v1297 = vpop.permute.xlu0 %1296
        %v1306 = vadd.f32 %v1256, %v1283
        %v1307 = vadd.f32 %v1257, %v1285
        %v1308 = vadd.f32 %v1258, %v1287
        %v1309 = vadd.f32 %v1259, %v1289
        %v1310 = vadd.f32 %v1260, %v1291
        %v1311 = vadd.f32 %v1261, %v1293
        %v1312 = vadd.f32 %v1262, %v1295
        %v1313 = vadd.f32 %v1263, %v1297
        %s1314 = sld [smem:[#allocation4 + $0x18]]
        %v1315 = vstv %s1314
        %v1316 = vmul.f32 %v1315, %v1239
        %v1317 = vmul.f32 %v1315, %v1240
        %v1318 = vmul.f32 %v1315, %v1241
        %v1319 = vmul.f32 %v1315, %v1242
        %v1320 = vmul.f32 %v1315, %v1243
        %v1321 = vmul.f32 %v1315, %v1244
        %v1322 = vmul.f32 %v1315, %v1245
        %v1323 = vmul.f32 %v1315, %v1246
        %1332 = vrot.lane.b32.xlu0 %v1316, 126
        %v1333 = vpop.permute.xlu0 %1332
        %1334 = vrot.lane.b32.xlu0 %v1317, 126
        %v1335 = vpop.permute.xlu0 %1334
        %1336 = vrot.lane.b32.xlu0 %v1318, 126
        %v1337 = vpop.permute.xlu0 %1336
        %1338 = vrot.lane.b32.xlu0 %v1319, 126
        %v1339 = vpop.permute.xlu0 %1338
        %1340 = vrot.lane.b32.xlu0 %v1320, 126
        %v1341 = vpop.permute.xlu0 %1340
        %1342 = vrot.lane.b32.xlu0 %v1321, 126
        %v1343 = vpop.permute.xlu0 %1342
        %1344 = vrot.lane.b32.xlu0 %v1322, 126
        %v1345 = vpop.permute.xlu0 %1344
        %1346 = vrot.lane.b32.xlu0 %v1323, 126
        %v1347 = vpop.permute.xlu0 %1346
        %v1356 = vadd.f32 %v1306, %v1333
        %v1357 = vadd.f32 %v1307, %v1335
        %v1358 = vadd.f32 %v1308, %v1337
        %v1359 = vadd.f32 %v1309, %v1339
        %v1360 = vadd.f32 %v1310, %v1341
        %v1361 = vadd.f32 %v1311, %v1343
        %v1362 = vadd.f32 %v1312, %v1345
        %v1363 = vadd.f32 %v1313, %v1347
        %s1364 = sld [smem:[#allocation4 + $0x17]]
        %v1365 = vld [vmem:[%s321 + $0x1] sm:$0xff]
        %v1366 = vld [vmem:[%s321 + $0x9] sm:$0xff]
        %v1367 = vld [vmem:[%s321 + $0x11] sm:$0xff]
        %v1368 = vld [vmem:[%s321 + $0x19] sm:$0xff]
        %v1369 = vld [vmem:[%s321 + $0x21] sm:$0xff]
        %v1370 = vld [vmem:[%s321 + $0x29] sm:$0xff]
        %v1371 = vld [vmem:[%s321 + $0x31] sm:$0xff]
        %v1372 = vld [vmem:[%s321 + $0x39] sm:$0xff]
        %v1373 = vstv %s1364
        %v1374 = vmul.f32 %v1373, %v1365
        %v1375 = vmul.f32 %v1373, %v1366
        %v1376 = vmul.f32 %v1373, %v1367
        %v1377 = vmul.f32 %v1373, %v1368
        %v1378 = vmul.f32 %v1373, %v1369
        %v1379 = vmul.f32 %v1373, %v1370
        %v1380 = vmul.f32 %v1373, %v1371
        %v1381 = vmul.f32 %v1373, %v1372
        %v1382 = vadd.f32 %v1356, %v1374
        %v1383 = vadd.f32 %v1357, %v1375
        %v1384 = vadd.f32 %v1358, %v1376
        %v1385 = vadd.f32 %v1359, %v1377
        %v1386 = vadd.f32 %v1360, %v1378
        %v1387 = vadd.f32 %v1361, %v1379
        %v1388 = vadd.f32 %v1362, %v1380
        %v1389 = vadd.f32 %v1363, %v1381
        %s1390 = sld [smem:[#allocation4 + $0x16]]
        %v1391 = vstv %s1390
        %v1392 = vmul.f32 %v1391, %v1365
        %v1393 = vmul.f32 %v1391, %v1366
        %v1394 = vmul.f32 %v1391, %v1367
        %v1395 = vmul.f32 %v1391, %v1368
        %v1396 = vmul.f32 %v1391, %v1369
        %v1397 = vmul.f32 %v1391, %v1370
        %v1398 = vmul.f32 %v1391, %v1371
        %v1399 = vmul.f32 %v1391, %v1372
        %1408 = vrot.lane.b32.xlu0 %v1392, 127
        %v1409 = vpop.permute.xlu0 %1408
        %1410 = vrot.lane.b32.xlu0 %v1393, 127
        %v1411 = vpop.permute.xlu0 %1410
        %1412 = vrot.lane.b32.xlu0 %v1394, 127
        %v1413 = vpop.permute.xlu0 %1412
        %1414 = vrot.lane.b32.xlu0 %v1395, 127
        %v1415 = vpop.permute.xlu0 %1414
        %1416 = vrot.lane.b32.xlu0 %v1396, 127
        %v1417 = vpop.permute.xlu0 %1416
        %1418 = vrot.lane.b32.xlu0 %v1397, 127
        %v1419 = vpop.permute.xlu0 %1418
        %1420 = vrot.lane.b32.xlu0 %v1398, 127
        %v1421 = vpop.permute.xlu0 %1420
        %1422 = vrot.lane.b32.xlu0 %v1399, 127
        %v1423 = vpop.permute.xlu0 %1422
        %v1432 = vadd.f32 %v1382, %v1409
        %v1433 = vadd.f32 %v1383, %v1411
        %v1434 = vadd.f32 %v1384, %v1413
        %v1435 = vadd.f32 %v1385, %v1415
        %v1436 = vadd.f32 %v1386, %v1417
        %v1437 = vadd.f32 %v1387, %v1419
        %v1438 = vadd.f32 %v1388, %v1421
        %v1439 = vadd.f32 %v1389, %v1423
        %s1440 = sld [smem:[#allocation4 + $0x15]]
        %v1441 = vstv %s1440
        %v1442 = vmul.f32 %v1441, %v1365
        %v1443 = vmul.f32 %v1441, %v1366
        %v1444 = vmul.f32 %v1441, %v1367
        %v1445 = vmul.f32 %v1441, %v1368
        %v1446 = vmul.f32 %v1441, %v1369
        %v1447 = vmul.f32 %v1441, %v1370
        %v1448 = vmul.f32 %v1441, %v1371
        %v1449 = vmul.f32 %v1441, %v1372
        %1458 = vrot.lane.b32.xlu0 %v1442, 126
        %v1459 = vpop.permute.xlu0 %1458
        %1460 = vrot.lane.b32.xlu0 %v1443, 126
        %v1461 = vpop.permute.xlu0 %1460
        %1462 = vrot.lane.b32.xlu0 %v1444, 126
        %v1463 = vpop.permute.xlu0 %1462
        %1464 = vrot.lane.b32.xlu0 %v1445, 126
        %v1465 = vpop.permute.xlu0 %1464
        %1466 = vrot.lane.b32.xlu0 %v1446, 126
        %v1467 = vpop.permute.xlu0 %1466
        %1468 = vrot.lane.b32.xlu0 %v1447, 126
        %v1469 = vpop.permute.xlu0 %1468
        %1470 = vrot.lane.b32.xlu0 %v1448, 126
        %v1471 = vpop.permute.xlu0 %1470
        %1472 = vrot.lane.b32.xlu0 %v1449, 126
        %v1473 = vpop.permute.xlu0 %1472
        %v1482 = vadd.f32 %v1432, %v1459
        %v1483 = vadd.f32 %v1433, %v1461
        %v1484 = vadd.f32 %v1434, %v1463
        %v1485 = vadd.f32 %v1435, %v1465
        %v1486 = vadd.f32 %v1436, %v1467
        %v1487 = vadd.f32 %v1437, %v1469
        %v1488 = vadd.f32 %v1438, %v1471
        %v1489 = vadd.f32 %v1439, %v1473
        %s1490 = sld [smem:[#allocation4 + $0x14]]
        %v1491 = vld [vmem:[%s321 + $0x2] sm:$0xff]
        %v1492 = vld [vmem:[%s321 + $0xa] sm:$0xff]
        %v1493 = vld [vmem:[%s321 + $0x12] sm:$0xff]
        %v1494 = vld [vmem:[%s321 + $0x1a] sm:$0xff]
        %v1495 = vld [vmem:[%s321 + $0x22] sm:$0xff]
        %v1496 = vld [vmem:[%s321 + $0x2a] sm:$0xff]
        %v1497 = vld [vmem:[%s321 + $0x32] sm:$0xff]
        %v1498 = vld [vmem:[%s321 + $0x3a] sm:$0xff]
        %v1499 = vstv %s1490
        %v1500 = vmul.f32 %v1499, %v1491
        %v1501 = vmul.f32 %v1499, %v1492
        %v1502 = vmul.f32 %v1499, %v1493
        %v1503 = vmul.f32 %v1499, %v1494
        %v1504 = vmul.f32 %v1499, %v1495
        %v1505 = vmul.f32 %v1499, %v1496
        %v1506 = vmul.f32 %v1499, %v1497
        %v1507 = vmul.f32 %v1499, %v1498
        %v1508 = vadd.f32 %v1482, %v1500
        %v1509 = vadd.f32 %v1483, %v1501
        %v1510 = vadd.f32 %v1484, %v1502
        %v1511 = vadd.f32 %v1485, %v1503
        %v1512 = vadd.f32 %v1486, %v1504
        %v1513 = vadd.f32 %v1487, %v1505
        %v1514 = vadd.f32 %v1488, %v1506
        %v1515 = vadd.f32 %v1489, %v1507
        %s1516 = sld [smem:[#allocation4 + $0x13]]
        %v1517 = vstv %s1516
        %v1518 = vmul.f32 %v1517, %v1491
        %v1519 = vmul.f32 %v1517, %v1492
        %v1520 = vmul.f32 %v1517, %v1493
        %v1521 = vmul.f32 %v1517, %v1494
        %v1522 = vmul.f32 %v1517, %v1495
        %v1523 = vmul.f32 %v1517, %v1496
        %v1524 = vmul.f32 %v1517, %v1497
        %v1525 = vmul.f32 %v1517, %v1498
        %1534 = vrot.lane.b32.xlu0 %v1518, 127
        %v1535 = vpop.permute.xlu0 %1534
        %1536 = vrot.lane.b32.xlu0 %v1519, 127
        %v1537 = vpop.permute.xlu0 %1536
        %1538 = vrot.lane.b32.xlu0 %v1520, 127
        %v1539 = vpop.permute.xlu0 %1538
        %1540 = vrot.lane.b32.xlu0 %v1521, 127
        %v1541 = vpop.permute.xlu0 %1540
        %1542 = vrot.lane.b32.xlu0 %v1522, 127
        %v1543 = vpop.permute.xlu0 %1542
        %1544 = vrot.lane.b32.xlu0 %v1523, 127
        %v1545 = vpop.permute.xlu0 %1544
        %1546 = vrot.lane.b32.xlu0 %v1524, 127
        %v1547 = vpop.permute.xlu0 %1546
        %1548 = vrot.lane.b32.xlu0 %v1525, 127
        %v1549 = vpop.permute.xlu0 %1548
        %v1558 = vadd.f32 %v1508, %v1535
        %v1559 = vadd.f32 %v1509, %v1537
        %v1560 = vadd.f32 %v1510, %v1539
        %v1561 = vadd.f32 %v1511, %v1541
        %v1562 = vadd.f32 %v1512, %v1543
        %v1563 = vadd.f32 %v1513, %v1545
        %v1564 = vadd.f32 %v1514, %v1547
        %v1565 = vadd.f32 %v1515, %v1549
        %s1566 = sld [smem:[#allocation4 + $0x12]]
        %v1567 = vstv %s1566
        %v1568 = vmul.f32 %v1567, %v1491
        %v1569 = vmul.f32 %v1567, %v1492
        %v1570 = vmul.f32 %v1567, %v1493
        %v1571 = vmul.f32 %v1567, %v1494
        %v1572 = vmul.f32 %v1567, %v1495
        %v1573 = vmul.f32 %v1567, %v1496
        %v1574 = vmul.f32 %v1567, %v1497
        %v1575 = vmul.f32 %v1567, %v1498
        %1584 = vrot.lane.b32.xlu0 %v1568, 126
        %v1585 = vpop.permute.xlu0 %1584
        %1586 = vrot.lane.b32.xlu0 %v1569, 126
        %v1587 = vpop.permute.xlu0 %1586
        %1588 = vrot.lane.b32.xlu0 %v1570, 126
        %v1589 = vpop.permute.xlu0 %1588
        %1590 = vrot.lane.b32.xlu0 %v1571, 126
        %v1591 = vpop.permute.xlu0 %1590
        %1592 = vrot.lane.b32.xlu0 %v1572, 126
        %v1593 = vpop.permute.xlu0 %1592
        %1594 = vrot.lane.b32.xlu0 %v1573, 126
        %v1595 = vpop.permute.xlu0 %1594
        %1596 = vrot.lane.b32.xlu0 %v1574, 126
        %v1597 = vpop.permute.xlu0 %1596
        %1598 = vrot.lane.b32.xlu0 %v1575, 126
        %v1599 = vpop.permute.xlu0 %1598
        %v1608 = vadd.f32 %v1558, %v1585
        %v1609 = vadd.f32 %v1559, %v1587
        %v1610 = vadd.f32 %v1560, %v1589
        %v1611 = vadd.f32 %v1561, %v1591
        %v1612 = vadd.f32 %v1562, %v1593
        %v1613 = vadd.f32 %v1563, %v1595
        %v1614 = vadd.f32 %v1564, %v1597
        %v1615 = vadd.f32 %v1565, %v1599
        %s1616 = sld [smem:[#allocation4 + $0x23]]
        %v1617 = vld [vmem:[%s371] sm:$0xff]
        %v1618 = vld [vmem:[%s371 + $0x8] sm:$0xff]
        %v1619 = vld [vmem:[%s371 + $0x10] sm:$0xff]
        %v1620 = vld [vmem:[%s371 + $0x18] sm:$0xff]
        %v1621 = vld [vmem:[%s371 + $0x20] sm:$0xff]
        %v1622 = vld [vmem:[%s371 + $0x28] sm:$0xff]
        %v1623 = vld [vmem:[%s371 + $0x30] sm:$0xff]
        %v1624 = vld [vmem:[%s371 + $0x38] sm:$0xff]
        %v1625 = vstv %s1616
        %v1626 = vmul.f32 %v1625, %v1617
        %v1627 = vmul.f32 %v1625, %v1618
        %v1628 = vmul.f32 %v1625, %v1619
        %v1629 = vmul.f32 %v1625, %v1620
        %v1630 = vmul.f32 %v1625, %v1621
        %v1631 = vmul.f32 %v1625, %v1622
        %v1632 = vmul.f32 %v1625, %v1623
        %v1633 = vmul.f32 %v1625, %v1624
        %v1634 = vadd.f32 %v1608, %v1626
        %v1635 = vadd.f32 %v1609, %v1627
        %v1636 = vadd.f32 %v1610, %v1628
        %v1637 = vadd.f32 %v1611, %v1629
        %v1638 = vadd.f32 %v1612, %v1630
        %v1639 = vadd.f32 %v1613, %v1631
        %v1640 = vadd.f32 %v1614, %v1632
        %v1641 = vadd.f32 %v1615, %v1633
        %s1642 = sld [smem:[#allocation4 + $0x22]]
        %v1643 = vstv %s1642
        %v1644 = vmul.f32 %v1643, %v1617
        %v1645 = vmul.f32 %v1643, %v1618
        %v1646 = vmul.f32 %v1643, %v1619
        %v1647 = vmul.f32 %v1643, %v1620
        %v1648 = vmul.f32 %v1643, %v1621
        %v1649 = vmul.f32 %v1643, %v1622
        %v1650 = vmul.f32 %v1643, %v1623
        %v1651 = vmul.f32 %v1643, %v1624
        %1660 = vrot.lane.b32.xlu0 %v1644, 127
        %v1661 = vpop.permute.xlu0 %1660
        %1662 = vrot.lane.b32.xlu0 %v1645, 127
        %v1663 = vpop.permute.xlu0 %1662
        %1664 = vrot.lane.b32.xlu0 %v1646, 127
        %v1665 = vpop.permute.xlu0 %1664
        %1666 = vrot.lane.b32.xlu0 %v1647, 127
        %v1667 = vpop.permute.xlu0 %1666
        %1668 = vrot.lane.b32.xlu0 %v1648, 127
        %v1669 = vpop.permute.xlu0 %1668
        %1670 = vrot.lane.b32.xlu0 %v1649, 127
        %v1671 = vpop.permute.xlu0 %1670
        %1672 = vrot.lane.b32.xlu0 %v1650, 127
        %v1673 = vpop.permute.xlu0 %1672
        %1674 = vrot.lane.b32.xlu0 %v1651, 127
        %v1675 = vpop.permute.xlu0 %1674
        %v1684 = vadd.f32 %v1634, %v1661
        %v1685 = vadd.f32 %v1635, %v1663
        %v1686 = vadd.f32 %v1636, %v1665
        %v1687 = vadd.f32 %v1637, %v1667
        %v1688 = vadd.f32 %v1638, %v1669
        %v1689 = vadd.f32 %v1639, %v1671
        %v1690 = vadd.f32 %v1640, %v1673
        %v1691 = vadd.f32 %v1641, %v1675
        %s1692 = sld [smem:[#allocation4 + $0x21]]
        %v1693 = vstv %s1692
        %v1694 = vmul.f32 %v1693, %v1617
        %v1695 = vmul.f32 %v1693, %v1618
        %v1696 = vmul.f32 %v1693, %v1619
        %v1697 = vmul.f32 %v1693, %v1620
        %v1698 = vmul.f32 %v1693, %v1621
        %v1699 = vmul.f32 %v1693, %v1622
        %v1700 = vmul.f32 %v1693, %v1623
        %v1701 = vmul.f32 %v1693, %v1624
        %1710 = vrot.lane.b32.xlu0 %v1694, 126
        %v1711 = vpop.permute.xlu0 %1710
        %1712 = vrot.lane.b32.xlu0 %v1695, 126
        %v1713 = vpop.permute.xlu0 %1712
        %1714 = vrot.lane.b32.xlu0 %v1696, 126
        %v1715 = vpop.permute.xlu0 %1714
        %1716 = vrot.lane.b32.xlu0 %v1697, 126
        %v1717 = vpop.permute.xlu0 %1716
        %1718 = vrot.lane.b32.xlu0 %v1698, 126
        %v1719 = vpop.permute.xlu0 %1718
        %1720 = vrot.lane.b32.xlu0 %v1699, 126
        %v1721 = vpop.permute.xlu0 %1720
        %1722 = vrot.lane.b32.xlu0 %v1700, 126
        %v1723 = vpop.permute.xlu0 %1722
        %1724 = vrot.lane.b32.xlu0 %v1701, 126
        %v1725 = vpop.permute.xlu0 %1724
        %v1734 = vadd.f32 %v1684, %v1711
        %v1735 = vadd.f32 %v1685, %v1713
        %v1736 = vadd.f32 %v1686, %v1715
        %v1737 = vadd.f32 %v1687, %v1717
        %v1738 = vadd.f32 %v1688, %v1719
        %v1739 = vadd.f32 %v1689, %v1721
        %v1740 = vadd.f32 %v1690, %v1723
        %v1741 = vadd.f32 %v1691, %v1725
        %s1742 = sld [smem:[#allocation4 + $0x20]]
        %v1743 = vld [vmem:[%s371 + $0x1] sm:$0xff]
        %v1744 = vld [vmem:[%s371 + $0x9] sm:$0xff]
        %v1745 = vld [vmem:[%s371 + $0x11] sm:$0xff]
        %v1746 = vld [vmem:[%s371 + $0x19] sm:$0xff]
        %v1747 = vld [vmem:[%s371 + $0x21] sm:$0xff]
        %v1748 = vld [vmem:[%s371 + $0x29] sm:$0xff]
        %v1749 = vld [vmem:[%s371 + $0x31] sm:$0xff]
        %v1750 = vld [vmem:[%s371 + $0x39] sm:$0xff]
        %v1751 = vstv %s1742
        %v1752 = vmul.f32 %v1751, %v1743
        %v1753 = vmul.f32 %v1751, %v1744
        %v1754 = vmul.f32 %v1751, %v1745
        %v1755 = vmul.f32 %v1751, %v1746
        %v1756 = vmul.f32 %v1751, %v1747
        %v1757 = vmul.f32 %v1751, %v1748
        %v1758 = vmul.f32 %v1751, %v1749
        %v1759 = vmul.f32 %v1751, %v1750
        %v1760 = vadd.f32 %v1734, %v1752
        %v1761 = vadd.f32 %v1735, %v1753
        %v1762 = vadd.f32 %v1736, %v1754
        %v1763 = vadd.f32 %v1737, %v1755
        %v1764 = vadd.f32 %v1738, %v1756
        %v1765 = vadd.f32 %v1739, %v1757
        %v1766 = vadd.f32 %v1740, %v1758
        %v1767 = vadd.f32 %v1741, %v1759
        %s1768 = sld [smem:[#allocation4 + $0x1f]]
        %v1769 = vstv %s1768
        %v1770 = vmul.f32 %v1769, %v1743
        %v1771 = vmul.f32 %v1769, %v1744
        %v1772 = vmul.f32 %v1769, %v1745
        %v1773 = vmul.f32 %v1769, %v1746
        %v1774 = vmul.f32 %v1769, %v1747
        %v1775 = vmul.f32 %v1769, %v1748
        %v1776 = vmul.f32 %v1769, %v1749
        %v1777 = vmul.f32 %v1769, %v1750
        %1786 = vrot.lane.b32.xlu0 %v1770, 127
        %v1787 = vpop.permute.xlu0 %1786
        %1788 = vrot.lane.b32.xlu0 %v1771, 127
        %v1789 = vpop.permute.xlu0 %1788
        %1790 = vrot.lane.b32.xlu0 %v1772, 127
        %v1791 = vpop.permute.xlu0 %1790
        %1792 = vrot.lane.b32.xlu0 %v1773, 127
        %v1793 = vpop.permute.xlu0 %1792
        %1794 = vrot.lane.b32.xlu0 %v1774, 127
        %v1795 = vpop.permute.xlu0 %1794
        %1796 = vrot.lane.b32.xlu0 %v1775, 127
        %v1797 = vpop.permute.xlu0 %1796
        %1798 = vrot.lane.b32.xlu0 %v1776, 127
        %v1799 = vpop.permute.xlu0 %1798
        %1800 = vrot.lane.b32.xlu0 %v1777, 127
        %v1801 = vpop.permute.xlu0 %1800
        %v1810 = vadd.f32 %v1760, %v1787
        %v1811 = vadd.f32 %v1761, %v1789
        %v1812 = vadd.f32 %v1762, %v1791
        %v1813 = vadd.f32 %v1763, %v1793
        %v1814 = vadd.f32 %v1764, %v1795
        %v1815 = vadd.f32 %v1765, %v1797
        %v1816 = vadd.f32 %v1766, %v1799
        %v1817 = vadd.f32 %v1767, %v1801
        %s1818 = sld [smem:[#allocation4 + $0x1e]]
        %v1819 = vstv %s1818
        %v1820 = vmul.f32 %v1819, %v1743
        %v1821 = vmul.f32 %v1819, %v1744
        %v1822 = vmul.f32 %v1819, %v1745
        %v1823 = vmul.f32 %v1819, %v1746
        %v1824 = vmul.f32 %v1819, %v1747
        %v1825 = vmul.f32 %v1819, %v1748
        %v1826 = vmul.f32 %v1819, %v1749
        %v1827 = vmul.f32 %v1819, %v1750
        %1836 = vrot.lane.b32.xlu0 %v1820, 126
        %v1837 = vpop.permute.xlu0 %1836
        %1838 = vrot.lane.b32.xlu0 %v1821, 126
        %v1839 = vpop.permute.xlu0 %1838
        %1840 = vrot.lane.b32.xlu0 %v1822, 126
        %v1841 = vpop.permute.xlu0 %1840
        %1842 = vrot.lane.b32.xlu0 %v1823, 126
        %v1843 = vpop.permute.xlu0 %1842
        %1844 = vrot.lane.b32.xlu0 %v1824, 126
        %v1845 = vpop.permute.xlu0 %1844
        %1846 = vrot.lane.b32.xlu0 %v1825, 126
        %v1847 = vpop.permute.xlu0 %1846
        %1848 = vrot.lane.b32.xlu0 %v1826, 126
        %v1849 = vpop.permute.xlu0 %1848
        %1850 = vrot.lane.b32.xlu0 %v1827, 126
        %v1851 = vpop.permute.xlu0 %1850
        %v1860 = vadd.f32 %v1810, %v1837
        %v1861 = vadd.f32 %v1811, %v1839
        %v1862 = vadd.f32 %v1812, %v1841
        %v1863 = vadd.f32 %v1813, %v1843
        %v1864 = vadd.f32 %v1814, %v1845
        %v1865 = vadd.f32 %v1815, %v1847
        %v1866 = vadd.f32 %v1816, %v1849
        %v1867 = vadd.f32 %v1817, %v1851
        %s1868 = sld [smem:[#allocation4 + $0x1d]]
        %v1869 = vld [vmem:[%s371 + $0x2] sm:$0xff]
        %v1870 = vld [vmem:[%s371 + $0xa] sm:$0xff]
        %v1871 = vld [vmem:[%s371 + $0x12] sm:$0xff]
        %v1872 = vld [vmem:[%s371 + $0x1a] sm:$0xff]
        %v1873 = vld [vmem:[%s371 + $0x22] sm:$0xff]
        %v1874 = vld [vmem:[%s371 + $0x2a] sm:$0xff]
        %v1875 = vld [vmem:[%s371 + $0x32] sm:$0xff]
        %v1876 = vld [vmem:[%s371 + $0x3a] sm:$0xff]
        %v1877 = vstv %s1868
        %v1878 = vmul.f32 %v1877, %v1869
        %v1879 = vmul.f32 %v1877, %v1870
        %v1880 = vmul.f32 %v1877, %v1871
        %v1881 = vmul.f32 %v1877, %v1872
        %v1882 = vmul.f32 %v1877, %v1873
        %v1883 = vmul.f32 %v1877, %v1874
        %v1884 = vmul.f32 %v1877, %v1875
        %v1885 = vmul.f32 %v1877, %v1876
        %v1886 = vadd.f32 %v1860, %v1878
        %v1887 = vadd.f32 %v1861, %v1879
        %v1888 = vadd.f32 %v1862, %v1880
        %v1889 = vadd.f32 %v1863, %v1881
        %v1890 = vadd.f32 %v1864, %v1882
        %v1891 = vadd.f32 %v1865, %v1883
        %v1892 = vadd.f32 %v1866, %v1884
        %v1893 = vadd.f32 %v1867, %v1885
        %s1894 = sld [smem:[#allocation4 + $0x1c]]
        %v1895 = vstv %s1894
        %v1896 = vmul.f32 %v1895, %v1869
        %v1897 = vmul.f32 %v1895, %v1870
        %v1898 = vmul.f32 %v1895, %v1871
        %v1899 = vmul.f32 %v1895, %v1872
        %v1900 = vmul.f32 %v1895, %v1873
        %v1901 = vmul.f32 %v1895, %v1874
        %v1902 = vmul.f32 %v1895, %v1875
        %v1903 = vmul.f32 %v1895, %v1876
        %1912 = vrot.lane.b32.xlu0 %v1896, 127
        %v1913 = vpop.permute.xlu0 %1912
        %1914 = vrot.lane.b32.xlu0 %v1897, 127
        %v1915 = vpop.permute.xlu0 %1914
        %1916 = vrot.lane.b32.xlu0 %v1898, 127
        %v1917 = vpop.permute.xlu0 %1916
        %1918 = vrot.lane.b32.xlu0 %v1899, 127
        %v1919 = vpop.permute.xlu0 %1918
        %1920 = vrot.lane.b32.xlu0 %v1900, 127
        %v1921 = vpop.permute.xlu0 %1920
        %1922 = vrot.lane.b32.xlu0 %v1901, 127
        %v1923 = vpop.permute.xlu0 %1922
        %1924 = vrot.lane.b32.xlu0 %v1902, 127
        %v1925 = vpop.permute.xlu0 %1924
        %1926 = vrot.lane.b32.xlu0 %v1903, 127
        %v1927 = vpop.permute.xlu0 %1926
        %v1936 = vadd.f32 %v1886, %v1913
        %v1937 = vadd.f32 %v1887, %v1915
        %v1938 = vadd.f32 %v1888, %v1917
        %v1939 = vadd.f32 %v1889, %v1919
        %v1940 = vadd.f32 %v1890, %v1921
        %v1941 = vadd.f32 %v1891, %v1923
        %v1942 = vadd.f32 %v1892, %v1925
        %v1943 = vadd.f32 %v1893, %v1927
        %s1944 = sld [smem:[#allocation4 + $0x1b]]
        %v1945 = vstv %s1944
        %v1946 = vmul.f32 %v1945, %v1869
        %v1947 = vmul.f32 %v1945, %v1870
        %v1948 = vmul.f32 %v1945, %v1871
        %v1949 = vmul.f32 %v1945, %v1872
        %v1950 = vmul.f32 %v1945, %v1873
        %v1951 = vmul.f32 %v1945, %v1874
        %v1952 = vmul.f32 %v1945, %v1875
        %v1953 = vmul.f32 %v1945, %v1876
        %1962 = vrot.lane.b32.xlu0 %v1946, 126
        %v1963 = vpop.permute.xlu0 %1962
        %1964 = vrot.lane.b32.xlu0 %v1947, 126
        %v1965 = vpop.permute.xlu0 %1964
        %1966 = vrot.lane.b32.xlu0 %v1948, 126
        %v1967 = vpop.permute.xlu0 %1966
        %1968 = vrot.lane.b32.xlu0 %v1949, 126
        %v1969 = vpop.permute.xlu0 %1968
        %1970 = vrot.lane.b32.xlu0 %v1950, 126
        %v1971 = vpop.permute.xlu0 %1970
        %1972 = vrot.lane.b32.xlu0 %v1951, 126
        %v1973 = vpop.permute.xlu0 %1972
        %1974 = vrot.lane.b32.xlu0 %v1952, 126
        %v1975 = vpop.permute.xlu0 %1974
        %1976 = vrot.lane.b32.xlu0 %v1953, 126
        %v1977 = vpop.permute.xlu0 %1976
        %v1986 = vadd.f32 %v1936, %v1963
        %v1987 = vadd.f32 %v1937, %v1965
        %v1988 = vadd.f32 %v1938, %v1967
        %v1989 = vadd.f32 %v1939, %v1969
        %v1990 = vadd.f32 %v1940, %v1971
        %v1991 = vadd.f32 %v1941, %v1973
        %v1992 = vadd.f32 %v1942, %v1975
        %v1993 = vadd.f32 %v1943, %v1977
        %s1994 = sld [smem:[#allocation4 + $0x2c]]
        %v1995 = vld [vmem:[%s421] sm:$0xff]
        %v1996 = vld [vmem:[%s421 + $0x8] sm:$0xff]
        %v1997 = vld [vmem:[%s421 + $0x10] sm:$0xff]
        %v1998 = vld [vmem:[%s421 + $0x18] sm:$0xff]
        %v1999 = vld [vmem:[%s421 + $0x20] sm:$0xff]
        %v2000 = vld [vmem:[%s421 + $0x28] sm:$0xff]
        %v2001 = vld [vmem:[%s421 + $0x30] sm:$0xff]
        %v2002 = vld [vmem:[%s421 + $0x38] sm:$0xff]
        %v2003 = vstv %s1994
        %v2004 = vmul.f32 %v2003, %v1995
        %v2005 = vmul.f32 %v2003, %v1996
        %v2006 = vmul.f32 %v2003, %v1997
        %v2007 = vmul.f32 %v2003, %v1998
        %v2008 = vmul.f32 %v2003, %v1999
        %v2009 = vmul.f32 %v2003, %v2000
        %v2010 = vmul.f32 %v2003, %v2001
        %v2011 = vmul.f32 %v2003, %v2002
        %v2012 = vadd.f32 %v1986, %v2004
        %v2013 = vadd.f32 %v1987, %v2005
        %v2014 = vadd.f32 %v1988, %v2006
        %v2015 = vadd.f32 %v1989, %v2007
        %v2016 = vadd.f32 %v1990, %v2008
        %v2017 = vadd.f32 %v1991, %v2009
        %v2018 = vadd.f32 %v1992, %v2010
        %v2019 = vadd.f32 %v1993, %v2011
        %s2020 = sld [smem:[#allocation4 + $0x2b]]
        %v2021 = vstv %s2020
        %v2022 = vmul.f32 %v2021, %v1995
        %v2023 = vmul.f32 %v2021, %v1996
        %v2024 = vmul.f32 %v2021, %v1997
        %v2025 = vmul.f32 %v2021, %v1998
        %v2026 = vmul.f32 %v2021, %v1999
        %v2027 = vmul.f32 %v2021, %v2000
        %v2028 = vmul.f32 %v2021, %v2001
        %v2029 = vmul.f32 %v2021, %v2002
        %2038 = vrot.lane.b32.xlu0 %v2022, 127
        %v2039 = vpop.permute.xlu0 %2038
        %2040 = vrot.lane.b32.xlu0 %v2023, 127
        %v2041 = vpop.permute.xlu0 %2040
        %2042 = vrot.lane.b32.xlu0 %v2024, 127
        %v2043 = vpop.permute.xlu0 %2042
        %2044 = vrot.lane.b32.xlu0 %v2025, 127
        %v2045 = vpop.permute.xlu0 %2044
        %2046 = vrot.lane.b32.xlu0 %v2026, 127
        %v2047 = vpop.permute.xlu0 %2046
        %2048 = vrot.lane.b32.xlu0 %v2027, 127
        %v2049 = vpop.permute.xlu0 %2048
        %2050 = vrot.lane.b32.xlu0 %v2028, 127
        %v2051 = vpop.permute.xlu0 %2050
        %2052 = vrot.lane.b32.xlu0 %v2029, 127
        %v2053 = vpop.permute.xlu0 %2052
        %v2062 = vadd.f32 %v2012, %v2039
        %v2063 = vadd.f32 %v2013, %v2041
        %v2064 = vadd.f32 %v2014, %v2043
        %v2065 = vadd.f32 %v2015, %v2045
        %v2066 = vadd.f32 %v2016, %v2047
        %v2067 = vadd.f32 %v2017, %v2049
        %v2068 = vadd.f32 %v2018, %v2051
        %v2069 = vadd.f32 %v2019, %v2053
        %s2070 = sld [smem:[#allocation4 + $0x2a]]
        %v2071 = vstv %s2070
        %v2072 = vmul.f32 %v2071, %v1995
        %v2073 = vmul.f32 %v2071, %v1996
        %v2074 = vmul.f32 %v2071, %v1997
        %v2075 = vmul.f32 %v2071, %v1998
        %v2076 = vmul.f32 %v2071, %v1999
        %v2077 = vmul.f32 %v2071, %v2000
        %v2078 = vmul.f32 %v2071, %v2001
        %v2079 = vmul.f32 %v2071, %v2002
        %2088 = vrot.lane.b32.xlu0 %v2072, 126
        %v2089 = vpop.permute.xlu0 %2088
        %2090 = vrot.lane.b32.xlu0 %v2073, 126
        %v2091 = vpop.permute.xlu0 %2090
        %2092 = vrot.lane.b32.xlu0 %v2074, 126
        %v2093 = vpop.permute.xlu0 %2092
        %2094 = vrot.lane.b32.xlu0 %v2075, 126
        %v2095 = vpop.permute.xlu0 %2094
        %2096 = vrot.lane.b32.xlu0 %v2076, 126
        %v2097 = vpop.permute.xlu0 %2096
        %2098 = vrot.lane.b32.xlu0 %v2077, 126
        %v2099 = vpop.permute.xlu0 %2098
        %2100 = vrot.lane.b32.xlu0 %v2078, 126
        %v2101 = vpop.permute.xlu0 %2100
        %2102 = vrot.lane.b32.xlu0 %v2079, 126
        %v2103 = vpop.permute.xlu0 %2102
        %v2112 = vadd.f32 %v2062, %v2089
        %v2113 = vadd.f32 %v2063, %v2091
        %v2114 = vadd.f32 %v2064, %v2093
        %v2115 = vadd.f32 %v2065, %v2095
        %v2116 = vadd.f32 %v2066, %v2097
        %v2117 = vadd.f32 %v2067, %v2099
        %v2118 = vadd.f32 %v2068, %v2101
        %v2119 = vadd.f32 %v2069, %v2103
        %s2120 = sld [smem:[#allocation4 + $0x29]]
        %v2121 = vld [vmem:[%s421 + $0x1] sm:$0xff]
        %v2122 = vld [vmem:[%s421 + $0x9] sm:$0xff]
        %v2123 = vld [vmem:[%s421 + $0x11] sm:$0xff]
        %v2124 = vld [vmem:[%s421 + $0x19] sm:$0xff]
        %v2125 = vld [vmem:[%s421 + $0x21] sm:$0xff]
        %v2126 = vld [vmem:[%s421 + $0x29] sm:$0xff]
        %v2127 = vld [vmem:[%s421 + $0x31] sm:$0xff]
        %v2128 = vld [vmem:[%s421 + $0x39] sm:$0xff]
        %v2129 = vstv %s2120
        %v2130 = vmul.f32 %v2129, %v2121
        %v2131 = vmul.f32 %v2129, %v2122
        %v2132 = vmul.f32 %v2129, %v2123
        %v2133 = vmul.f32 %v2129, %v2124
        %v2134 = vmul.f32 %v2129, %v2125
        %v2135 = vmul.f32 %v2129, %v2126
        %v2136 = vmul.f32 %v2129, %v2127
        %v2137 = vmul.f32 %v2129, %v2128
        %v2138 = vadd.f32 %v2112, %v2130
        %v2139 = vadd.f32 %v2113, %v2131
        %v2140 = vadd.f32 %v2114, %v2132
        %v2141 = vadd.f32 %v2115, %v2133
        %v2142 = vadd.f32 %v2116, %v2134
        %v2143 = vadd.f32 %v2117, %v2135
        %v2144 = vadd.f32 %v2118, %v2136
        %v2145 = vadd.f32 %v2119, %v2137
        %s2146 = sld [smem:[#allocation4 + $0x28]]
        %v2147 = vstv %s2146
        %v2148 = vmul.f32 %v2147, %v2121
        %v2149 = vmul.f32 %v2147, %v2122
        %v2150 = vmul.f32 %v2147, %v2123
        %v2151 = vmul.f32 %v2147, %v2124
        %v2152 = vmul.f32 %v2147, %v2125
        %v2153 = vmul.f32 %v2147, %v2126
        %v2154 = vmul.f32 %v2147, %v2127
        %v2155 = vmul.f32 %v2147, %v2128
        %2164 = vrot.lane.b32.xlu0 %v2148, 127
        %v2165 = vpop.permute.xlu0 %2164
        %2166 = vrot.lane.b32.xlu0 %v2149, 127
        %v2167 = vpop.permute.xlu0 %2166
        %2168 = vrot.lane.b32.xlu0 %v2150, 127
        %v2169 = vpop.permute.xlu0 %2168
        %2170 = vrot.lane.b32.xlu0 %v2151, 127
        %v2171 = vpop.permute.xlu0 %2170
        %2172 = vrot.lane.b32.xlu0 %v2152, 127
        %v2173 = vpop.permute.xlu0 %2172
        %2174 = vrot.lane.b32.xlu0 %v2153, 127
        %v2175 = vpop.permute.xlu0 %2174
        %2176 = vrot.lane.b32.xlu0 %v2154, 127
        %v2177 = vpop.permute.xlu0 %2176
        %2178 = vrot.lane.b32.xlu0 %v2155, 127
        %v2179 = vpop.permute.xlu0 %2178
        %v2188 = vadd.f32 %v2138, %v2165
        %v2189 = vadd.f32 %v2139, %v2167
        %v2190 = vadd.f32 %v2140, %v2169
        %v2191 = vadd.f32 %v2141, %v2171
        %v2192 = vadd.f32 %v2142, %v2173
        %v2193 = vadd.f32 %v2143, %v2175
        %v2194 = vadd.f32 %v2144, %v2177
        %v2195 = vadd.f32 %v2145, %v2179
        %s2196 = sld [smem:[#allocation4 + $0x27]]
        %v2197 = vstv %s2196
        %v2198 = vmul.f32 %v2197, %v2121
        %v2199 = vmul.f32 %v2197, %v2122
        %v2200 = vmul.f32 %v2197, %v2123
        %v2201 = vmul.f32 %v2197, %v2124
        %v2202 = vmul.f32 %v2197, %v2125
        %v2203 = vmul.f32 %v2197, %v2126
        %v2204 = vmul.f32 %v2197, %v2127
        %v2205 = vmul.f32 %v2197, %v2128
        %2214 = vrot.lane.b32.xlu0 %v2198, 126
        %v2215 = vpop.permute.xlu0 %2214
        %2216 = vrot.lane.b32.xlu0 %v2199, 126
        %v2217 = vpop.permute.xlu0 %2216
        %2218 = vrot.lane.b32.xlu0 %v2200, 126
        %v2219 = vpop.permute.xlu0 %2218
        %2220 = vrot.lane.b32.xlu0 %v2201, 126
        %v2221 = vpop.permute.xlu0 %2220
        %2222 = vrot.lane.b32.xlu0 %v2202, 126
        %v2223 = vpop.permute.xlu0 %2222
        %2224 = vrot.lane.b32.xlu0 %v2203, 126
        %v2225 = vpop.permute.xlu0 %2224
        %2226 = vrot.lane.b32.xlu0 %v2204, 126
        %v2227 = vpop.permute.xlu0 %2226
        %2228 = vrot.lane.b32.xlu0 %v2205, 126
        %v2229 = vpop.permute.xlu0 %2228
        %v2238 = vadd.f32 %v2188, %v2215
        %v2239 = vadd.f32 %v2189, %v2217
        %v2240 = vadd.f32 %v2190, %v2219
        %v2241 = vadd.f32 %v2191, %v2221
        %v2242 = vadd.f32 %v2192, %v2223
        %v2243 = vadd.f32 %v2193, %v2225
        %v2244 = vadd.f32 %v2194, %v2227
        %v2245 = vadd.f32 %v2195, %v2229
        %s2246 = sld [smem:[#allocation4 + $0x26]]
        %v2247 = vld [vmem:[%s421 + $0x2] sm:$0xff]
        %v2248 = vld [vmem:[%s421 + $0xa] sm:$0xff]
        %v2249 = vld [vmem:[%s421 + $0x12] sm:$0xff]
        %v2250 = vld [vmem:[%s421 + $0x1a] sm:$0xff]
        %v2251 = vld [vmem:[%s421 + $0x22] sm:$0xff]
        %v2252 = vld [vmem:[%s421 + $0x2a] sm:$0xff]
        %v2253 = vld [vmem:[%s421 + $0x32] sm:$0xff]
        %v2254 = vld [vmem:[%s421 + $0x3a] sm:$0xff]
        %v2255 = vstv %s2246
        %v2256 = vmul.f32 %v2255, %v2247
        %v2257 = vmul.f32 %v2255, %v2248
        %v2258 = vmul.f32 %v2255, %v2249
        %v2259 = vmul.f32 %v2255, %v2250
        %v2260 = vmul.f32 %v2255, %v2251
        %v2261 = vmul.f32 %v2255, %v2252
        %v2262 = vmul.f32 %v2255, %v2253
        %v2263 = vmul.f32 %v2255, %v2254
        %v2264 = vadd.f32 %v2238, %v2256
        %v2265 = vadd.f32 %v2239, %v2257
        %v2266 = vadd.f32 %v2240, %v2258
        %v2267 = vadd.f32 %v2241, %v2259
        %v2268 = vadd.f32 %v2242, %v2260
        %v2269 = vadd.f32 %v2243, %v2261
        %v2270 = vadd.f32 %v2244, %v2262
        %v2271 = vadd.f32 %v2245, %v2263
        %s2272 = sld [smem:[#allocation4 + $0x25]]
        %v2273 = vstv %s2272
        %v2274 = vmul.f32 %v2273, %v2247
        %v2275 = vmul.f32 %v2273, %v2248
        %v2276 = vmul.f32 %v2273, %v2249
        %v2277 = vmul.f32 %v2273, %v2250
        %v2278 = vmul.f32 %v2273, %v2251
        %v2279 = vmul.f32 %v2273, %v2252
        %v2280 = vmul.f32 %v2273, %v2253
        %v2281 = vmul.f32 %v2273, %v2254
        %2290 = vrot.lane.b32.xlu0 %v2274, 127
        %v2291 = vpop.permute.xlu0 %2290
        %2292 = vrot.lane.b32.xlu0 %v2275, 127
        %v2293 = vpop.permute.xlu0 %2292
        %2294 = vrot.lane.b32.xlu0 %v2276, 127
        %v2295 = vpop.permute.xlu0 %2294
        %2296 = vrot.lane.b32.xlu0 %v2277, 127
        %v2297 = vpop.permute.xlu0 %2296
        %2298 = vrot.lane.b32.xlu0 %v2278, 127
        %v2299 = vpop.permute.xlu0 %2298
        %2300 = vrot.lane.b32.xlu0 %v2279, 127
        %v2301 = vpop.permute.xlu0 %2300
        %2302 = vrot.lane.b32.xlu0 %v2280, 127
        %v2303 = vpop.permute.xlu0 %2302
        %2304 = vrot.lane.b32.xlu0 %v2281, 127
        %v2305 = vpop.permute.xlu0 %2304
        %v2314 = vadd.f32 %v2264, %v2291
        %v2315 = vadd.f32 %v2265, %v2293
        %v2316 = vadd.f32 %v2266, %v2295
        %v2317 = vadd.f32 %v2267, %v2297
        %v2318 = vadd.f32 %v2268, %v2299
        %v2319 = vadd.f32 %v2269, %v2301
        %v2320 = vadd.f32 %v2270, %v2303
        %v2321 = vadd.f32 %v2271, %v2305
        %s2322 = sld [smem:[#allocation4 + $0x24]]
        %v2323 = vstv %s2322
        %v2324 = vmul.f32 %v2323, %v2247
        %v2325 = vmul.f32 %v2323, %v2248
        %v2326 = vmul.f32 %v2323, %v2249
        %v2327 = vmul.f32 %v2323, %v2250
        %v2328 = vmul.f32 %v2323, %v2251
        %v2329 = vmul.f32 %v2323, %v2252
        %v2330 = vmul.f32 %v2323, %v2253
        %v2331 = vmul.f32 %v2323, %v2254
        %2340 = vrot.lane.b32.xlu0 %v2324, 126
        %v2341 = vpop.permute.xlu0 %2340
        %2342 = vrot.lane.b32.xlu0 %v2325, 126
        %v2343 = vpop.permute.xlu0 %2342
        %2344 = vrot.lane.b32.xlu0 %v2326, 126
        %v2345 = vpop.permute.xlu0 %2344
        %2346 = vrot.lane.b32.xlu0 %v2327, 126
        %v2347 = vpop.permute.xlu0 %2346
        %2348 = vrot.lane.b32.xlu0 %v2328, 126
        %v2349 = vpop.permute.xlu0 %2348
        %2350 = vrot.lane.b32.xlu0 %v2329, 126
        %v2351 = vpop.permute.xlu0 %2350
        %2352 = vrot.lane.b32.xlu0 %v2330, 126
        %v2353 = vpop.permute.xlu0 %2352
        %2354 = vrot.lane.b32.xlu0 %v2331, 126
        %v2355 = vpop.permute.xlu0 %2354
        %v2364 = vadd.f32 %v2314, %v2341
        %v2365 = vadd.f32 %v2315, %v2343
        %v2366 = vadd.f32 %v2316, %v2345
        %v2367 = vadd.f32 %v2317, %v2347
        %v2368 = vadd.f32 %v2318, %v2349
        %v2369 = vadd.f32 %v2319, %v2351
        %v2370 = vadd.f32 %v2320, %v2353
        %v2371 = vadd.f32 %v2321, %v2355
        %s2372 = sld [smem:[#allocation4 + $0x35]]
        %v2373 = vld [vmem:[%s471] sm:$0xff]
        %v2374 = vld [vmem:[%s471 + $0x8] sm:$0xff]
        %v2375 = vld [vmem:[%s471 + $0x10] sm:$0xff]
        %v2376 = vld [vmem:[%s471 + $0x18] sm:$0xff]
        %v2377 = vld [vmem:[%s471 + $0x20] sm:$0xff]
        %v2378 = vld [vmem:[%s471 + $0x28] sm:$0xff]
        %v2379 = vld [vmem:[%s471 + $0x30] sm:$0xff]
        %v2380 = vld [vmem:[%s471 + $0x38] sm:$0xff]
        %v2381 = vstv %s2372
        %v2382 = vmul.f32 %v2381, %v2373
        %v2383 = vmul.f32 %v2381, %v2374
        %v2384 = vmul.f32 %v2381, %v2375
        %v2385 = vmul.f32 %v2381, %v2376
        %v2386 = vmul.f32 %v2381, %v2377
        %v2387 = vmul.f32 %v2381, %v2378
        %v2388 = vmul.f32 %v2381, %v2379
        %v2389 = vmul.f32 %v2381, %v2380
        %v2390 = vadd.f32 %v2364, %v2382
        %v2391 = vadd.f32 %v2365, %v2383
        %v2392 = vadd.f32 %v2366, %v2384
        %v2393 = vadd.f32 %v2367, %v2385
        %v2394 = vadd.f32 %v2368, %v2386
        %v2395 = vadd.f32 %v2369, %v2387
        %v2396 = vadd.f32 %v2370, %v2388
        %v2397 = vadd.f32 %v2371, %v2389
        %s2398 = sld [smem:[#allocation4 + $0x34]]
        %v2399 = vstv %s2398
        %v2400 = vmul.f32 %v2399, %v2373
        %v2401 = vmul.f32 %v2399, %v2374
        %v2402 = vmul.f32 %v2399, %v2375
        %v2403 = vmul.f32 %v2399, %v2376
        %v2404 = vmul.f32 %v2399, %v2377
        %v2405 = vmul.f32 %v2399, %v2378
        %v2406 = vmul.f32 %v2399, %v2379
        %v2407 = vmul.f32 %v2399, %v2380
        %2416 = vrot.lane.b32.xlu0 %v2400, 127
        %v2417 = vpop.permute.xlu0 %2416
        %2418 = vrot.lane.b32.xlu0 %v2401, 127
        %v2419 = vpop.permute.xlu0 %2418
        %2420 = vrot.lane.b32.xlu0 %v2402, 127
        %v2421 = vpop.permute.xlu0 %2420
        %2422 = vrot.lane.b32.xlu0 %v2403, 127
        %v2423 = vpop.permute.xlu0 %2422
        %2424 = vrot.lane.b32.xlu0 %v2404, 127
        %v2425 = vpop.permute.xlu0 %2424
        %2426 = vrot.lane.b32.xlu0 %v2405, 127
        %v2427 = vpop.permute.xlu0 %2426
        %2428 = vrot.lane.b32.xlu0 %v2406, 127
        %v2429 = vpop.permute.xlu0 %2428
        %2430 = vrot.lane.b32.xlu0 %v2407, 127
        %v2431 = vpop.permute.xlu0 %2430
        %v2440 = vadd.f32 %v2390, %v2417
        %v2441 = vadd.f32 %v2391, %v2419
        %v2442 = vadd.f32 %v2392, %v2421
        %v2443 = vadd.f32 %v2393, %v2423
        %v2444 = vadd.f32 %v2394, %v2425
        %v2445 = vadd.f32 %v2395, %v2427
        %v2446 = vadd.f32 %v2396, %v2429
        %v2447 = vadd.f32 %v2397, %v2431
        %s2448 = sld [smem:[#allocation4 + $0x33]]
        %v2449 = vstv %s2448
        %v2450 = vmul.f32 %v2449, %v2373
        %v2451 = vmul.f32 %v2449, %v2374
        %v2452 = vmul.f32 %v2449, %v2375
        %v2453 = vmul.f32 %v2449, %v2376
        %v2454 = vmul.f32 %v2449, %v2377
        %v2455 = vmul.f32 %v2449, %v2378
        %v2456 = vmul.f32 %v2449, %v2379
        %v2457 = vmul.f32 %v2449, %v2380
        %2466 = vrot.lane.b32.xlu0 %v2450, 126
        %v2467 = vpop.permute.xlu0 %2466
        %2468 = vrot.lane.b32.xlu0 %v2451, 126
        %v2469 = vpop.permute.xlu0 %2468
        %2470 = vrot.lane.b32.xlu0 %v2452, 126
        %v2471 = vpop.permute.xlu0 %2470
        %2472 = vrot.lane.b32.xlu0 %v2453, 126
        %v2473 = vpop.permute.xlu0 %2472
        %2474 = vrot.lane.b32.xlu0 %v2454, 126
        %v2475 = vpop.permute.xlu0 %2474
        %2476 = vrot.lane.b32.xlu0 %v2455, 126
        %v2477 = vpop.permute.xlu0 %2476
        %2478 = vrot.lane.b32.xlu0 %v2456, 126
        %v2479 = vpop.permute.xlu0 %2478
        %2480 = vrot.lane.b32.xlu0 %v2457, 126
        %v2481 = vpop.permute.xlu0 %2480
        %v2490 = vadd.f32 %v2440, %v2467
        %v2491 = vadd.f32 %v2441, %v2469
        %v2492 = vadd.f32 %v2442, %v2471
        %v2493 = vadd.f32 %v2443, %v2473
        %v2494 = vadd.f32 %v2444, %v2475
        %v2495 = vadd.f32 %v2445, %v2477
        %v2496 = vadd.f32 %v2446, %v2479
        %v2497 = vadd.f32 %v2447, %v2481
        %s2498 = sld [smem:[#allocation4 + $0x32]]
        %v2499 = vld [vmem:[%s471 + $0x1] sm:$0xff]
        %v2500 = vld [vmem:[%s471 + $0x9] sm:$0xff]
        %v2501 = vld [vmem:[%s471 + $0x11] sm:$0xff]
        %v2502 = vld [vmem:[%s471 + $0x19] sm:$0xff]
        %v2503 = vld [vmem:[%s471 + $0x21] sm:$0xff]
        %v2504 = vld [vmem:[%s471 + $0x29] sm:$0xff]
        %v2505 = vld [vmem:[%s471 + $0x31] sm:$0xff]
        %v2506 = vld [vmem:[%s471 + $0x39] sm:$0xff]
        %v2507 = vstv %s2498
        %v2508 = vmul.f32 %v2507, %v2499
        %v2509 = vmul.f32 %v2507, %v2500
        %v2510 = vmul.f32 %v2507, %v2501
        %v2511 = vmul.f32 %v2507, %v2502
        %v2512 = vmul.f32 %v2507, %v2503
        %v2513 = vmul.f32 %v2507, %v2504
        %v2514 = vmul.f32 %v2507, %v2505
        %v2515 = vmul.f32 %v2507, %v2506
        %v2516 = vadd.f32 %v2490, %v2508
        %v2517 = vadd.f32 %v2491, %v2509
        %v2518 = vadd.f32 %v2492, %v2510
        %v2519 = vadd.f32 %v2493, %v2511
        %v2520 = vadd.f32 %v2494, %v2512
        %v2521 = vadd.f32 %v2495, %v2513
        %v2522 = vadd.f32 %v2496, %v2514
        %v2523 = vadd.f32 %v2497, %v2515
        %s2524 = sld [smem:[#allocation4 + $0x31]]
        %v2525 = vstv %s2524
        %v2526 = vmul.f32 %v2525, %v2499
        %v2527 = vmul.f32 %v2525, %v2500
        %v2528 = vmul.f32 %v2525, %v2501
        %v2529 = vmul.f32 %v2525, %v2502
        %v2530 = vmul.f32 %v2525, %v2503
        %v2531 = vmul.f32 %v2525, %v2504
        %v2532 = vmul.f32 %v2525, %v2505
        %v2533 = vmul.f32 %v2525, %v2506
        %2542 = vrot.lane.b32.xlu0 %v2526, 127
        %v2543 = vpop.permute.xlu0 %2542
        %2544 = vrot.lane.b32.xlu0 %v2527, 127
        %v2545 = vpop.permute.xlu0 %2544
        %2546 = vrot.lane.b32.xlu0 %v2528, 127
        %v2547 = vpop.permute.xlu0 %2546
        %2548 = vrot.lane.b32.xlu0 %v2529, 127
        %v2549 = vpop.permute.xlu0 %2548
        %2550 = vrot.lane.b32.xlu0 %v2530, 127
        %v2551 = vpop.permute.xlu0 %2550
        %2552 = vrot.lane.b32.xlu0 %v2531, 127
        %v2553 = vpop.permute.xlu0 %2552
        %2554 = vrot.lane.b32.xlu0 %v2532, 127
        %v2555 = vpop.permute.xlu0 %2554
        %2556 = vrot.lane.b32.xlu0 %v2533, 127
        %v2557 = vpop.permute.xlu0 %2556
        %v2566 = vadd.f32 %v2516, %v2543
        %v2567 = vadd.f32 %v2517, %v2545
        %v2568 = vadd.f32 %v2518, %v2547
        %v2569 = vadd.f32 %v2519, %v2549
        %v2570 = vadd.f32 %v2520, %v2551
        %v2571 = vadd.f32 %v2521, %v2553
        %v2572 = vadd.f32 %v2522, %v2555
        %v2573 = vadd.f32 %v2523, %v2557
        %s2574 = sld [smem:[#allocation4 + $0x30]]
        %v2575 = vstv %s2574
        %v2576 = vmul.f32 %v2575, %v2499
        %v2577 = vmul.f32 %v2575, %v2500
        %v2578 = vmul.f32 %v2575, %v2501
        %v2579 = vmul.f32 %v2575, %v2502
        %v2580 = vmul.f32 %v2575, %v2503
        %v2581 = vmul.f32 %v2575, %v2504
        %v2582 = vmul.f32 %v2575, %v2505
        %v2583 = vmul.f32 %v2575, %v2506
        %2592 = vrot.lane.b32.xlu0 %v2576, 126
        %v2593 = vpop.permute.xlu0 %2592
        %2594 = vrot.lane.b32.xlu0 %v2577, 126
        %v2595 = vpop.permute.xlu0 %2594
        %2596 = vrot.lane.b32.xlu0 %v2578, 126
        %v2597 = vpop.permute.xlu0 %2596
        %2598 = vrot.lane.b32.xlu0 %v2579, 126
        %v2599 = vpop.permute.xlu0 %2598
        %2600 = vrot.lane.b32.xlu0 %v2580, 126
        %v2601 = vpop.permute.xlu0 %2600
        %2602 = vrot.lane.b32.xlu0 %v2581, 126
        %v2603 = vpop.permute.xlu0 %2602
        %2604 = vrot.lane.b32.xlu0 %v2582, 126
        %v2605 = vpop.permute.xlu0 %2604
        %2606 = vrot.lane.b32.xlu0 %v2583, 126
        %v2607 = vpop.permute.xlu0 %2606
        %v2616 = vadd.f32 %v2566, %v2593
        %v2617 = vadd.f32 %v2567, %v2595
        %v2618 = vadd.f32 %v2568, %v2597
        %v2619 = vadd.f32 %v2569, %v2599
        %v2620 = vadd.f32 %v2570, %v2601
        %v2621 = vadd.f32 %v2571, %v2603
        %v2622 = vadd.f32 %v2572, %v2605
        %v2623 = vadd.f32 %v2573, %v2607
        %s2624 = sld [smem:[#allocation4 + $0x2f]]
        %v2625 = vld [vmem:[%s471 + $0x2] sm:$0xff]
        %v2626 = vld [vmem:[%s471 + $0xa] sm:$0xff]
        %v2627 = vld [vmem:[%s471 + $0x12] sm:$0xff]
        %v2628 = vld [vmem:[%s471 + $0x1a] sm:$0xff]
        %v2629 = vld [vmem:[%s471 + $0x22] sm:$0xff]
        %v2630 = vld [vmem:[%s471 + $0x2a] sm:$0xff]
        %v2631 = vld [vmem:[%s471 + $0x32] sm:$0xff]
        %v2632 = vld [vmem:[%s471 + $0x3a] sm:$0xff]
        %v2633 = vstv %s2624
        %v2634 = vmul.f32 %v2633, %v2625
        %v2635 = vmul.f32 %v2633, %v2626
        %v2636 = vmul.f32 %v2633, %v2627
        %v2637 = vmul.f32 %v2633, %v2628
        %v2638 = vmul.f32 %v2633, %v2629
        %v2639 = vmul.f32 %v2633, %v2630
        %v2640 = vmul.f32 %v2633, %v2631
        %v2641 = vmul.f32 %v2633, %v2632
        %v2642 = vadd.f32 %v2616, %v2634
        %v2643 = vadd.f32 %v2617, %v2635
        %v2644 = vadd.f32 %v2618, %v2636
        %v2645 = vadd.f32 %v2619, %v2637
        %v2646 = vadd.f32 %v2620, %v2638
        %v2647 = vadd.f32 %v2621, %v2639
        %v2648 = vadd.f32 %v2622, %v2640
        %v2649 = vadd.f32 %v2623, %v2641
        %s2650 = sld [smem:[#allocation4 + $0x2e]]
        %v2651 = vstv %s2650
        %v2652 = vmul.f32 %v2651, %v2625
        %v2653 = vmul.f32 %v2651, %v2626
        %v2654 = vmul.f32 %v2651, %v2627
        %v2655 = vmul.f32 %v2651, %v2628
        %v2656 = vmul.f32 %v2651, %v2629
        %v2657 = vmul.f32 %v2651, %v2630
        %v2658 = vmul.f32 %v2651, %v2631
        %v2659 = vmul.f32 %v2651, %v2632
        %2668 = vrot.lane.b32.xlu0 %v2652, 127
        %v2669 = vpop.permute.xlu0 %2668
        %2670 = vrot.lane.b32.xlu0 %v2653, 127
        %v2671 = vpop.permute.xlu0 %2670
        %2672 = vrot.lane.b32.xlu0 %v2654, 127
        %v2673 = vpop.permute.xlu0 %2672
        %2674 = vrot.lane.b32.xlu0 %v2655, 127
        %v2675 = vpop.permute.xlu0 %2674
        %2676 = vrot.lane.b32.xlu0 %v2656, 127
        %v2677 = vpop.permute.xlu0 %2676
        %2678 = vrot.lane.b32.xlu0 %v2657, 127
        %v2679 = vpop.permute.xlu0 %2678
        %2680 = vrot.lane.b32.xlu0 %v2658, 127
        %v2681 = vpop.permute.xlu0 %2680
        %2682 = vrot.lane.b32.xlu0 %v2659, 127
        %v2683 = vpop.permute.xlu0 %2682
        %v2692 = vadd.f32 %v2642, %v2669
        %v2693 = vadd.f32 %v2643, %v2671
        %v2694 = vadd.f32 %v2644, %v2673
        %v2695 = vadd.f32 %v2645, %v2675
        %v2696 = vadd.f32 %v2646, %v2677
        %v2697 = vadd.f32 %v2647, %v2679
        %v2698 = vadd.f32 %v2648, %v2681
        %v2699 = vadd.f32 %v2649, %v2683
        %s2700 = sld [smem:[#allocation4 + $0x2d]]
        %v2701 = vstv %s2700
        %v2702 = vmul.f32 %v2701, %v2625
        %v2703 = vmul.f32 %v2701, %v2626
        %v2704 = vmul.f32 %v2701, %v2627
        %v2705 = vmul.f32 %v2701, %v2628
        %v2706 = vmul.f32 %v2701, %v2629
        %v2707 = vmul.f32 %v2701, %v2630
        %v2708 = vmul.f32 %v2701, %v2631
        %v2709 = vmul.f32 %v2701, %v2632
        %2718 = vrot.lane.b32.xlu0 %v2702, 126
        %v2719 = vpop.permute.xlu0 %2718
        %2720 = vrot.lane.b32.xlu0 %v2703, 126
        %v2721 = vpop.permute.xlu0 %2720
        %2722 = vrot.lane.b32.xlu0 %v2704, 126
        %v2723 = vpop.permute.xlu0 %2722
        %2724 = vrot.lane.b32.xlu0 %v2705, 126
        %v2725 = vpop.permute.xlu0 %2724
        %2726 = vrot.lane.b32.xlu0 %v2706, 126
        %v2727 = vpop.permute.xlu0 %2726
        %2728 = vrot.lane.b32.xlu0 %v2707, 126
        %v2729 = vpop.permute.xlu0 %2728
        %2730 = vrot.lane.b32.xlu0 %v2708, 126
        %v2731 = vpop.permute.xlu0 %2730
        %2732 = vrot.lane.b32.xlu0 %v2709, 126
        %v2733 = vpop.permute.xlu0 %2732
        %v2742 = vadd.f32 %v2692, %v2719
        %v2743 = vadd.f32 %v2693, %v2721
        %v2744 = vadd.f32 %v2694, %v2723
        %v2745 = vadd.f32 %v2695, %v2725
        %v2746 = vadd.f32 %v2696, %v2727
        %v2747 = vadd.f32 %v2697, %v2729
        %v2748 = vadd.f32 %v2698, %v2731
        %v2749 = vadd.f32 %v2699, %v2733
        %vm2750 = vcmask 523264
        %2751 = vst.msk [vmem:[%s120] sm:$0xff] %vm2750, %v2742
        %2752 = vst.msk [vmem:[%s120 + $0x8] sm:$0xff] %vm2750, %v2743
        %2753 = vst.msk [vmem:[%s120 + $0x10] sm:$0xff] %vm2750, %v2744
        %2754 = vst.msk [vmem:[%s120 + $0x18] sm:$0xff] %vm2750, %v2745
        %2755 = vst.msk [vmem:[%s120 + $0x20] sm:$0xff] %vm2750, %v2746
        %2756 = vst.msk [vmem:[%s120 + $0x28] sm:$0xff] %vm2750, %v2747
        %2757 = vst.msk [vmem:[%s120 + $0x30] sm:$0xff] %vm2750, %v2748
        %2758 = vst.msk [vmem:[%s120 + $0x38] sm:$0xff] %vm2750, %v2749
        %s2759 = sand.u32 %s60, 1
        %s2760 = scalar_lea.sflag [#allocation7], %s2759
        %s2761 = sand.u32 %s60, 1
        %s2762 = smul.addr %s2761, 64
        %s2763 = scalar_lea.vmem [#allocation6], %s2762
        // Predicated region
        $region25: #{decoder_forward.3} parent=23 // pred_check
          %p2764 = pneg %p70
        $region26: #{decoder_forward.3} parent=23 // pred_check_branch
          %2766 = sbr.rel (%p2764) target = $region28
        $region27: #{decoder_forward.3} parent=23 // pred_region
          %2768 = vsyncadd %s2760, 0
          %s2769 = smul.addr %s26, 8
          %s2770 = smul.addr %s2769, 8
          %s2771 = scalar_lea.hbm %s3, %s2770
          %s2772 = sshll.u32 %s2763, 4
          %s2773 = int_to_ptr.vmem [resolvable:$true] %s2772
          %s2774 = sshll.u32 %s2771, 4
          %s2775 = int_to_ptr.hbm [resolvable:$true] %s2774
          %2780 = dma.vmem_to_hbm [thread:$0]  %s2773, 1024, %s2775, %s2760, 128, 128, 8
        $region28: #{decoder_forward.3} parent=23 // pred_fallthru
          _
      $region24: #{decoder_forward.3} parent=5 // pred_fallthru
        _
      %p2781 = scmp.le.s32.totalorder 2, %s21
      // Predicated region
      $region29: #{decoder_forward.3} parent=5 // pred_check
        %p2782 = pneg %p2781
      $region30: #{decoder_forward.3} parent=5 // pred_check_branch
        %2784 = sbr.rel (%p2782) target = $region32
      $region31: #{decoder_forward.3} parent=5 // pred_region
        %s2785 = ssub.s32 %s21, 2
        // Predicated region
        $region33: #{decoder_forward.3} parent=31 // pred_check
          %p2786 = pneg %p76
        $region34: #{decoder_forward.3} parent=31 // pred_check_branch
          %2788 = sbr.rel (%p2786) target = $region36
        $region35: #{decoder_forward.3} parent=31 // pred_region
          %s2789 = sand.u32 %s61, 1
          %s2790 = scalar_lea.sflag [#allocation7], %s2789
          %s2791 = sand.u32 %s61, 1
          %s2792 = smul.addr %s2791, 64
          %s2793 = scalar_lea.vmem [#allocation6], %s2792
          %2795 = dma.done %s2790, 1024
        $region36: #{decoder_forward.3} parent=31 // pred_fallthru
          _
      $region32: #{decoder_forward.3} parent=5 // pred_fallthru
        _
    $region6: #{decoder_forward.3} parent=1 // loop_footer
      %s25 = sadd.s32 1, %s21
    $region7: #{decoder_forward.3} parent=1 // loop_footer_branch
      %20 = sbr.rel target = $region3
    $region8: #{decoder_forward.3} parent=1 // loop_exit
      _
    %2796 = vsyncpa [#allocation7], 1
    %s2797 = scalar_lea.sflag [#allocation7], 1
    %2798 = vsyncpa %s2797, 1

// kernel: decoder_forward.2
$region0: #{decoder_forward.2}
  #allocation0 [shape = 'u32[]', space=smem, size = 0x4, offset = 0x4, fixed_abs, tag = 'smem constant byte address 0x4 - core index']
  #allocation1 [shape = 'u32[72,128]{1,0:T(1,128)}', space=vmem, size = 0x9000, scoped, tag = 'internal scratch']
  %s0 = inlined_call_operand.hbm [shape: f32[2,256], index: 0, kind: input, shape index: {}]
  %s1 = inlined_call_operand.hbm [shape: f32[256,24576], index: 1, kind: input, shape index: {}]
  %s2 = inlined_call_operand.hbm [shape: f32[1,24576], index: 2, kind: input, shape index: {}]
  %s3 = inlined_call_operand.vmem [shape: f32[2,24576], index: 3, kind: output, shape index: {}]
  %s4 = sld [smem:[#allocation0]]
  $region57: #{decoder_forward.2} parent=0
    _
  %s6 = ssub.s32 1, %s4
  %s7 = scalar_select 0, %s6, %s4
  $region1: #{decoder_forward.2} parent=0
    #allocation2 [shape = 'u8[2048]{0}', space=vmem, size = 0x800, scoped, tag = 'input window, operand 0, single buffered']
    #allocation3 [shape = 's32[2]{0}', space=sflag, size = 0x8, scoped, tag = 'scoped memory for decoder_forward.2']
    #allocation4 [shape = 'u8[8388608]{0}', space=vmem, size = 0x800000, scoped, tag = 'input window, operand 1']
    #allocation5 [shape = 's32[2]{0}', space=sflag, size = 0x8, scoped, tag = 'scoped memory for decoder_forward.2']
    #allocation6 [shape = 'u8[32768]{0}', space=vmem, size = 0x8000, scoped, tag = 'input window, operand 2']
    %8 = vsyncpa [#allocation3], 0
    %9 = vsyncpa [#allocation5], 0
    %s10 = scalar_lea.sflag [#allocation5], 1
    %11 = vsyncpa %s10, 0
    loop: start=0, step=1, limit=8
    $region2: #{decoder_forward.2} parent=1 // loop_pre_header
      _
    $region3: #{decoder_forward.2} parent=1 // loop_header
      %s13 = sphi 0, %s17
      %p14 = scmp.ge.s32.totalorder %s13, 8
      %s21 = sphi 0, %s21
      %s23 = sphi 0, %s21
      %s24 = sphi 0, %s23
      %s38 = sphi 0, %s24
      %s44 = sphi 0, %s46
      %s47 = sphi 0, %s44
      %s48 = sphi 0, %s47
      %s64 = sphi 0, %s48
      %s70 = sphi 0, %s72
      %s73 = sphi 0, %s70
      %s74 = sphi 0, %s73
      %s90 = sphi 0, %s74
      %s96 = sphi 0, %s98
      %s99 = sphi 0, %s96
      %s100 = sphi 0, %s99
      %s116 = sphi 0, %s100
    $region4: #{decoder_forward.2} parent=1 // loop_header_branch
      %16 = sbr.rel (%p14) target = $region8
    $region5: #{decoder_forward.2} parent=1 // loop_body
      %s18 = ssub.s32 %s13, 1
      %s19 = ssub.s32 %s13, 2
      %s20 = sadd.s32 %s13, 1
      %s22 = sadd.s32 %s21, 1
      %p25 = scmp.eq.s32.totalorder %s13, 5
      %p26 = scmp.ne.s32.totalorder %s21, %s23
      %p27 = scmp.eq.s32.totalorder %s13, 0
      %p28 = por %p26, %p27
      %p29 = scmp.ne.s32.totalorder %s21, %s23
      %p30 = scmp.eq.s32.totalorder %s18, 5
      %p31 = por %p29, %p30
      %p32 = scmp.ne.s32.totalorder %s23, %s24
      %p33 = scmp.eq.s32.totalorder %s18, 0
      %p34 = por %p32, %p33
      %p35 = scmp.ne.s32.totalorder %s23, %s24
      %p36 = scmp.eq.s32.totalorder %s19, 5
      %p37 = por %p35, %p36
      %p39 = scmp.ne.s32.totalorder %s24, %s38
      %p40 = scmp.eq.s32.totalorder %s19, 0
      %p41 = por %p39, %p40
      %s42 = ssub.s32 %s13, %s20
      %p43 = scmp.eq.s32.totalorder %s42, 0
      %s45 = sadd.s32 %s44, 1
      %s46 = scalar_select %p43, %s44, %s45
      %p49 = pneg %p43
      %p50 = scmp.eq.s32.totalorder %s13, 5
      %p51 = por %p49, %p50
      %p52 = scmp.ne.s32.totalorder %s44, %s47
      %p53 = scmp.eq.s32.totalorder %s13, 0
      %p54 = por %p52, %p53
      %p55 = scmp.ne.s32.totalorder %s44, %s47
      %p56 = scmp.eq.s32.totalorder %s18, 5
      %p57 = por %p55, %p56
      %p58 = scmp.ne.s32.totalorder %s47, %s48
      %p59 = scmp.eq.s32.totalorder %s18, 0
      %p60 = por %p58, %p59
      %p61 = scmp.ne.s32.totalorder %s47, %s48
      %p62 = scmp.eq.s32.totalorder %s19, 5
      %p63 = por %p61, %p62
      %p65 = scmp.ne.s32.totalorder %s48, %s64
      %p66 = scmp.eq.s32.totalorder %s19, 0
      %p67 = por %p65, %p66
      %s68 = ssub.s32 %s13, %s20
      %p69 = scmp.eq.s32.totalorder %s68, 0
      %s71 = sadd.s32 %s70, 1
      %s72 = scalar_select %p69, %s70, %s71
      %p75 = pneg %p69
      %p76 = scmp.eq.s32.totalorder %s13, 5
      %p77 = por %p75, %p76
      %p78 = scmp.ne.s32.totalorder %s70, %s73
      %p79 = scmp.eq.s32.totalorder %s13, 0
      %p80 = por %p78, %p79
      %p81 = scmp.ne.s32.totalorder %s70, %s73
      %p82 = scmp.eq.s32.totalorder %s18, 5
      %p83 = por %p81, %p82
      %p84 = scmp.ne.s32.totalorder %s73, %s74
      %p85 = scmp.eq.s32.totalorder %s18, 0
      %p86 = por %p84, %p85
      %p87 = scmp.ne.s32.totalorder %s73, %s74
      %p88 = scmp.eq.s32.totalorder %s19, 5
      %p89 = por %p87, %p88
      %p91 = scmp.ne.s32.totalorder %s74, %s90
      %p92 = scmp.eq.s32.totalorder %s19, 0
      %p93 = por %p91, %p92
      %s94 = ssub.s32 %s13, %s20
      %p95 = scmp.eq.s32.totalorder %s94, 0
      %s97 = sadd.s32 %s96, 1
      %s98 = scalar_select %p95, %s96, %s97
      %p101 = pneg %p95
      %p102 = scmp.eq.s32.totalorder %s13, 5
      %p103 = por %p101, %p102
      %p104 = scmp.ne.s32.totalorder %s96, %s99
      %p105 = scmp.eq.s32.totalorder %s13, 0
      %p106 = por %p104, %p105
      %p107 = scmp.ne.s32.totalorder %s96, %s99
      %p108 = scmp.eq.s32.totalorder %s18, 5
      %p109 = por %p107, %p108
      %p110 = scmp.ne.s32.totalorder %s99, %s100
      %p111 = scmp.eq.s32.totalorder %s18, 0
      %p112 = por %p110, %p111
      %p113 = scmp.ne.s32.totalorder %s99, %s100
      %p114 = scmp.eq.s32.totalorder %s19, 5
      %p115 = por %p113, %p114
      %p117 = scmp.ne.s32.totalorder %s100, %s116
      %p118 = scmp.eq.s32.totalorder %s19, 0
      %p119 = por %p117, %p118
      %p120 = scmp.le.s32.totalorder 1, %s13
      %p121 = scmp.lt.s32.totalorder %s13, 7
      %p122 = pnand %p120, %p121
      %p123 = pneg %p122
      // Predicated region
      $region9: #{decoder_forward.2} parent=5 // pred_check
        _
      $region10: #{decoder_forward.2} parent=5 // pred_check_branch
        %125 = sbr.rel (%p122) target = $region12
      $region11: #{decoder_forward.2} parent=5 // pred_region
        %s126 = ssub.s32 %s13, 1
        // Predicated region
        $region13: #{decoder_forward.2} parent=11 // pred_check
          %p127 = pneg %p34
        $region14: #{decoder_forward.2} parent=11 // pred_check_branch
          %129 = sbr.rel (%p127) target = $region16
        $region15: #{decoder_forward.2} parent=11 // pred_region
          %131 = vsyncadd [#allocation3], 0
          %s133 = sshll.u32 %s0, 4
          %s134 = int_to_ptr.hbm [resolvable:$true] %s133
          %s135 = sshll.u32 [#allocation2], 4
          %s136 = int_to_ptr.vmem [resolvable:$true] %s135
          %138 = dma.hbm_to_vmem [thread:$0]  %s134, 64, %s136, [#allocation3]
        $region16: #{decoder_forward.2} parent=11 // pred_fallthru
          _
      $region12: #{decoder_forward.2} parent=5 // pred_fallthru
        _
      %p139 = scmp.lt.s32.totalorder %s13, 6
      // Predicated region
      $region17: #{decoder_forward.2} parent=5 // pred_check
        %p140 = pneg %p139
      $region18: #{decoder_forward.2} parent=5 // pred_check_branch
        %142 = sbr.rel (%p140) target = $region20
      $region19: #{decoder_forward.2} parent=5 // pred_region
        // Predicated region
        $region21: #{decoder_forward.2} parent=19 // pred_check
          %p143 = pneg %p54
        $region22: #{decoder_forward.2} parent=19 // pred_check_branch
          %145 = sbr.rel (%p143) target = $region24
        $region23: #{decoder_forward.2} parent=19 // pred_region
          %s146 = sand.u32 %s13, 1
          %s147 = scalar_lea.sflag [#allocation5], %s146
          %s148 = sand.u32 %s44, 1
          %s149 = smul.addr %s148, 8192
          %s150 = scalar_lea.vmem [#allocation4], %s149
          %s151 = smul.u32 32, %s13
          %153 = vsyncadd %s147, 0
          %s154 = smul.addr %s151, 8
          %s155 = scalar_lea.hbm %s1, %s154
          %s156 = sshll.u32 %s155, 4
          %s157 = int_to_ptr.hbm [resolvable:$true] %s156
          %s158 = sshll.u32 %s150, 4
          %s159 = int_to_ptr.vmem [resolvable:$true] %s158
          %164 = dma.hbm_to_vmem [thread:$0]  %s157, 131072, %s159, %s147, 24576, 4096, 256
        $region24: #{decoder_forward.2} parent=19 // pred_fallthru
          _
        // Predicated region
        $region25: #{decoder_forward.2} parent=19 // pred_check
          %p165 = pneg %p80
        $region26: #{decoder_forward.2} parent=19 // pred_check_branch
          %167 = sbr.rel (%p165) target = $region28
        $region27: #{decoder_forward.2} parent=19 // pred_region
          %s168 = sand.u32 %s13, 1
          %s169 = scalar_lea.sflag [#allocation5], %s168
          %s170 = sand.u32 %s70, 1
          %s171 = smul.addr %s170, 32
          %s172 = scalar_lea.vmem [#allocation6], %s171
          %s173 = smul.u32 32, %s13
          %175 = vsyncadd %s169, 0
          %s176 = scalar_lea.hbm %s2, %s173
          %s178 = sshll.u32 %s176, 4
          %s179 = int_to_ptr.hbm [resolvable:$true] %s178
          %s180 = sshll.u32 %s172, 4
          %s181 = int_to_ptr.vmem [resolvable:$true] %s180
          %183 = dma.hbm_to_vmem [thread:$0]  %s179, 512, %s181, %s169
        $region28: #{decoder_forward.2} parent=19 // pred_fallthru
          _
      $region20: #{decoder_forward.2} parent=5 // pred_fallthru
        _
      %p184 = scmp.le.s32.totalorder 1, %s13
      %p185 = scmp.lt.s32.totalorder %s13, 7
      %p186 = pnand %p184, %p185
      %p187 = pneg %p186
      // Predicated region
      $region29: #{decoder_forward.2} parent=5 // pred_check
        _
      $region30: #{decoder_forward.2} parent=5 // pred_check_branch
        %189 = sbr.rel (%p186) target = $region32
      $region31: #{decoder_forward.2} parent=5 // pred_region
        %s190 = ssub.s32 %s13, 1
        // Predicated region
        $region33: #{decoder_forward.2} parent=31 // pred_check
          %p191 = pneg %p34
        $region34: #{decoder_forward.2} parent=31 // pred_check_branch
          %193 = sbr.rel (%p191) target = $region36
        $region35: #{decoder_forward.2} parent=31 // pred_region
          %195 = dma.done [#allocation3], 64
        $region36: #{decoder_forward.2} parent=31 // pred_fallthru
          _
        %s196 = sand.u32 %s18, 1
        %s197 = scalar_lea.sflag [#allocation5], %s196
        %s198 = sand.u32 %s47, 1
        %s199 = smul.addr %s198, 8192
        %s200 = scalar_lea.vmem [#allocation4], %s199
        // Predicated region
        $region37: #{decoder_forward.2} parent=31 // pred_check
          %p201 = pneg %p60
        $region38: #{decoder_forward.2} parent=31 // pred_check_branch
          %203 = sbr.rel (%p201) target = $region40
        $region39: #{decoder_forward.2} parent=31 // pred_region
          %205 = dma.done %s197, 131072
        $region40: #{decoder_forward.2} parent=31 // pred_fallthru
          _
        %s206 = sand.u32 %s18, 1
        %s207 = scalar_lea.sflag [#allocation5], %s206
        %s208 = sand.u32 %s73, 1
        %s209 = smul.addr %s208, 32
        %s210 = scalar_lea.vmem [#allocation6], %s209
        // Predicated region
        $region41: #{decoder_forward.2} parent=31 // pred_check
          %p211 = pneg %p86
        $region42: #{decoder_forward.2} parent=31 // pred_check_branch
          %213 = sbr.rel (%p211) target = $region44
        $region43: #{decoder_forward.2} parent=31 // pred_region
          %215 = dma.done %s207, 512
        $region44: #{decoder_forward.2} parent=31 // pred_fallthru
          _
        %p216 = pneg %p34
        %p217 = pneg %p31
        %s218 = sand.u32 %s18, 1
        %s219 = scalar_lea.sflag [#allocation5], %s218
        %s220 = sand.u32 %s47, 1
        %s221 = smul.addr %s220, 8192
        %s222 = scalar_lea.vmem [#allocation4], %s221
        %p223 = pneg %p60
        %p224 = pneg %p57
        %s225 = sand.u32 %s18, 1
        %s226 = scalar_lea.sflag [#allocation5], %s225
        %s227 = sand.u32 %s73, 1
        %s228 = smul.addr %s227, 32
        %s229 = scalar_lea.vmem [#allocation6], %s228
        %p230 = pneg %p86
        %p231 = pneg %p83
        %p232 = pneg %p112
        %p233 = pneg %p109
        %s234 = smul.u32 32, %s18
        %p235 = scmp.lt.s32.totalorder %s234, 191
        %s236 = scalar_select %p235, %s234, 191
        %s237 = smul.addr %s236, 2
        %s238 = scalar_lea.vmem %s3, %s237
        %s239 = smul.u32 32, %s18
        %s240 = smul.u32 32, %s18
        %s241 = smul.u32 32, %s18
        %p242 = scmp.lt.s32.totalorder %s241, 191
        %s243 = scalar_select %p242, %s241, 191
        %s244 = smul.addr %s243, 2
        %s245 = scalar_lea.vmem %s3, %s244
        %s246 = smul.u32 32, %s18
        %v247 = vld [vmem:[#allocation2] sm:$0xf]
        %v248 = vld [vmem:[%s200] sm:$0xff]
        %v249 = vld [vmem:[%s200 + $0x8] sm:$0xff]
        %v250 = vld [vmem:[%s200 + $0x10] sm:$0xff]
        %v251 = vld [vmem:[%s200 + $0x18] sm:$0xff]
        %v252 = vld [vmem:[%s200 + $0x20] sm:$0xff]
        %v253 = vld [vmem:[%s200 + $0x28] sm:$0xff]
        %v254 = vld [vmem:[%s200 + $0x30] sm:$0xff]
        %v255 = vld [vmem:[%s200 + $0x38] sm:$0xff]
        %v256 = vld [vmem:[%s200 + $0x40] sm:$0xff]
        %v257 = vld [vmem:[%s200 + $0x48] sm:$0xff]
        %v258 = vld [vmem:[%s200 + $0x50] sm:$0xff]
        %v259 = vld [vmem:[%s200 + $0x58] sm:$0xff]
        %v260 = vld [vmem:[%s200 + $0x60] sm:$0xff]
        %v261 = vld [vmem:[%s200 + $0x68] sm:$0xff]
        %v262 = vld [vmem:[%s200 + $0x70] sm:$0xff]
        %v263 = vld [vmem:[%s200 + $0x78] sm:$0xff]
        %v264 = vld [vmem:[%s200 + $0x80] sm:$0xff]
        %v265 = vld [vmem:[%s200 + $0x88] sm:$0xff]
        %v266 = vld [vmem:[%s200 + $0x90] sm:$0xff]
        %v267 = vld [vmem:[%s200 + $0x98] sm:$0xff]
        %v268 = vld [vmem:[%s200 + $0xa0] sm:$0xff]
        %v269 = vld [vmem:[%s200 + $0xa8] sm:$0xff]
        %v270 = vld [vmem:[%s200 + $0xb0] sm:$0xff]
        %v271 = vld [vmem:[%s200 + $0xb8] sm:$0xff]
        %v272 = vld [vmem:[%s200 + $0xc0] sm:$0xff]
        %v273 = vld [vmem:[%s200 + $0xc8] sm:$0xff]
        %v274 = vld [vmem:[%s200 + $0xd0] sm:$0xff]
        %v275 = vld [vmem:[%s200 + $0xd8] sm:$0xff]
        %v276 = vld [vmem:[%s200 + $0xe0] sm:$0xff]
        %v277 = vld [vmem:[%s200 + $0xe8] sm:$0xff]
        %v278 = vld [vmem:[%s200 + $0xf0] sm:$0xff]
        %v279 = vld [vmem:[%s200 + $0xf8] sm:$0xff]
        %v280 = vld [vmem:[%s200 + $0x100] sm:$0xff]
        %v281 = vld [vmem:[%s200 + $0x108] sm:$0xff]
        %v282 = vld [vmem:[%s200 + $0x110] sm:$0xff]
        %v283 = vld [vmem:[%s200 + $0x118] sm:$0xff]
        %v284 = vld [vmem:[%s200 + $0x120] sm:$0xff]
        %v285 = vld [vmem:[%s200 + $0x128] sm:$0xff]
        %v286 = vld [vmem:[%s200 + $0x130] sm:$0xff]
        %v287 = vld [vmem:[%s200 + $0x138] sm:$0xff]
        %v288 = vld [vmem:[%s200 + $0x140] sm:$0xff]
        %v289 = vld [vmem:[%s200 + $0x148] sm:$0xff]
        %v290 = vld [vmem:[%s200 + $0x150] sm:$0xff]
        %v291 = vld [vmem:[%s200 + $0x158] sm:$0xff]
        %v292 = vld [vmem:[%s200 + $0x160] sm:$0xff]
        %v293 = vld [vmem:[%s200 + $0x168] sm:$0xff]
        %v294 = vld [vmem:[%s200 + $0x170] sm:$0xff]
        %v295 = vld [vmem:[%s200 + $0x178] sm:$0xff]
        %v296 = vld [vmem:[%s200 + $0x180] sm:$0xff]
        %v297 = vld [vmem:[%s200 + $0x188] sm:$0xff]
        %v298 = vld [vmem:[%s200 + $0x190] sm:$0xff]
        %v299 = vld [vmem:[%s200 + $0x198] sm:$0xff]
        %v300 = vld [vmem:[%s200 + $0x1a0] sm:$0xff]
        %v301 = vld [vmem:[%s200 + $0x1a8] sm:$0xff]
        %v302 = vld [vmem:[%s200 + $0x1b0] sm:$0xff]
        %v303 = vld [vmem:[%s200 + $0x1b8] sm:$0xff]
        %v304 = vld [vmem:[%s200 + $0x1c0] sm:$0xff]
        %v305 = vld [vmem:[%s200 + $0x1c8] sm:$0xff]
        %v306 = vld [vmem:[%s200 + $0x1d0] sm:$0xff]
        %v307 = vld [vmem:[%s200 + $0x1d8] sm:$0xff]
        %v308 = vld [vmem:[%s200 + $0x1e0] sm:$0xff]
        %v309 = vld [vmem:[%s200 + $0x1e8] sm:$0xff]
        %v310 = vld [vmem:[%s200 + $0x1f0] sm:$0xff]
        %v311 = vld [vmem:[%s200 + $0x1f8] sm:$0xff]
        %v312 = vld [vmem:[%s200 + $0x200] sm:$0xff]
        %v313 = vld [vmem:[%s200 + $0x208] sm:$0xff]
        %v314 = vld [vmem:[%s200 + $0x210] sm:$0xff]
        %v315 = vld [vmem:[%s200 + $0x218] sm:$0xff]
        %v316 = vld [vmem:[%s200 + $0x220] sm:$0xff]
        %v317 = vld [vmem:[%s200 + $0x228] sm:$0xff]
        %v318 = vld [vmem:[%s200 + $0x230] sm:$0xff]
        %v319 = vld [vmem:[%s200 + $0x238] sm:$0xff]
        %v320 = vld [vmem:[%s200 + $0x240] sm:$0xff]
        %v321 = vld [vmem:[%s200 + $0x248] sm:$0xff]
        %v322 = vld [vmem:[%s200 + $0x250] sm:$0xff]
        %v323 = vld [vmem:[%s200 + $0x258] sm:$0xff]
        %v324 = vld [vmem:[%s200 + $0x260] sm:$0xff]
        %v325 = vld [vmem:[%s200 + $0x268] sm:$0xff]
        %v326 = vld [vmem:[%s200 + $0x270] sm:$0xff]
        %v327 = vld [vmem:[%s200 + $0x278] sm:$0xff]
        %v328 = vld [vmem:[%s200 + $0x280] sm:$0xff]
        %v329 = vld [vmem:[%s200 + $0x288] sm:$0xff]
        %v330 = vld [vmem:[%s200 + $0x290] sm:$0xff]
        %v331 = vld [vmem:[%s200 + $0x298] sm:$0xff]
        %v332 = vld [vmem:[%s200 + $0x2a0] sm:$0xff]
        %v333 = vld [vmem:[%s200 + $0x2a8] sm:$0xff]
        %v334 = vld [vmem:[%s200 + $0x2b0] sm:$0xff]
        %v335 = vld [vmem:[%s200 + $0x2b8] sm:$0xff]
        %v336 = vld [vmem:[%s200 + $0x2c0] sm:$0xff]
        %v337 = vld [vmem:[%s200 + $0x2c8] sm:$0xff]
        %v338 = vld [vmem:[%s200 + $0x2d0] sm:$0xff]
        %v339 = vld [vmem:[%s200 + $0x2d8] sm:$0xff]
        %v340 = vld [vmem:[%s200 + $0x2e0] sm:$0xff]
        %v341 = vld [vmem:[%s200 + $0x2e8] sm:$0xff]
        %v342 = vld [vmem:[%s200 + $0x2f0] sm:$0xff]
        %v343 = vld [vmem:[%s200 + $0x2f8] sm:$0xff]
        %v344 = vld [vmem:[%s200 + $0x300] sm:$0xff]
        %v345 = vld [vmem:[%s200 + $0x308] sm:$0xff]
        %v346 = vld [vmem:[%s200 + $0x310] sm:$0xff]
        %v347 = vld [vmem:[%s200 + $0x318] sm:$0xff]
        %v348 = vld [vmem:[%s200 + $0x320] sm:$0xff]
        %v349 = vld [vmem:[%s200 + $0x328] sm:$0xff]
        %v350 = vld [vmem:[%s200 + $0x330] sm:$0xff]
        %v351 = vld [vmem:[%s200 + $0x338] sm:$0xff]
        %v352 = vld [vmem:[%s200 + $0x340] sm:$0xff]
        %v353 = vld [vmem:[%s200 + $0x348] sm:$0xff]
        %v354 = vld [vmem:[%s200 + $0x350] sm:$0xff]
        %v355 = vld [vmem:[%s200 + $0x358] sm:$0xff]
        %v356 = vld [vmem:[%s200 + $0x360] sm:$0xff]
        %v357 = vld [vmem:[%s200 + $0x368] sm:$0xff]
        %v358 = vld [vmem:[%s200 + $0x370] sm:$0xff]
        %v359 = vld [vmem:[%s200 + $0x378] sm:$0xff]
        %v360 = vld [vmem:[%s200 + $0x380] sm:$0xff]
        %v361 = vld [vmem:[%s200 + $0x388] sm:$0xff]
        %v362 = vld [vmem:[%s200 + $0x390] sm:$0xff]
        %v363 = vld [vmem:[%s200 + $0x398] sm:$0xff]
        %v364 = vld [vmem:[%s200 + $0x3a0] sm:$0xff]
        %v365 = vld [vmem:[%s200 + $0x3a8] sm:$0xff]
        %v366 = vld [vmem:[%s200 + $0x3b0] sm:$0xff]
        %v367 = vld [vmem:[%s200 + $0x3b8] sm:$0xff]
        %v368 = vld [vmem:[%s200 + $0x3c0] sm:$0xff]
        %v369 = vld [vmem:[%s200 + $0x3c8] sm:$0xff]
        %v370 = vld [vmem:[%s200 + $0x3d0] sm:$0xff]
        %v371 = vld [vmem:[%s200 + $0x3d8] sm:$0xff]
        %v372 = vld [vmem:[%s200 + $0x3e0] sm:$0xff]
        %v373 = vld [vmem:[%s200 + $0x3e8] sm:$0xff]
        %v374 = vld [vmem:[%s200 + $0x3f0] sm:$0xff]
        %v375 = vld [vmem:[%s200 + $0x3f8] sm:$0xff]
        %v376 = vld [vmem:[%s200 + $0x400] sm:$0xff]
        %v377 = vld [vmem:[%s200 + $0x408] sm:$0xff]
        %v378 = vld [vmem:[%s200 + $0x410] sm:$0xff]
        %v379 = vld [vmem:[%s200 + $0x418] sm:$0xff]
        %v380 = vld [vmem:[%s200 + $0x420] sm:$0xff]
        %v381 = vld [vmem:[%s200 + $0x428] sm:$0xff]
        %v382 = vld [vmem:[%s200 + $0x430] sm:$0xff]
        %v383 = vld [vmem:[%s200 + $0x438] sm:$0xff]
        %v384 = vld [vmem:[%s200 + $0x440] sm:$0xff]
        %v385 = vld [vmem:[%s200 + $0x448] sm:$0xff]
        %v386 = vld [vmem:[%s200 + $0x450] sm:$0xff]
        %v387 = vld [vmem:[%s200 + $0x458] sm:$0xff]
        %v388 = vld [vmem:[%s200 + $0x460] sm:$0xff]
        %v389 = vld [vmem:[%s200 + $0x468] sm:$0xff]
        %v390 = vld [vmem:[%s200 + $0x470] sm:$0xff]
        %v391 = vld [vmem:[%s200 + $0x478] sm:$0xff]
        %v392 = vld [vmem:[%s200 + $0x480] sm:$0xff]
        %v393 = vld [vmem:[%s200 + $0x488] sm:$0xff]
        %v394 = vld [vmem:[%s200 + $0x490] sm:$0xff]
        %v395 = vld [vmem:[%s200 + $0x498] sm:$0xff]
        %v396 = vld [vmem:[%s200 + $0x4a0] sm:$0xff]
        %v397 = vld [vmem:[%s200 + $0x4a8] sm:$0xff]
        %v398 = vld [vmem:[%s200 + $0x4b0] sm:$0xff]
        %v399 = vld [vmem:[%s200 + $0x4b8] sm:$0xff]
        %v400 = vld [vmem:[%s200 + $0x4c0] sm:$0xff]
        %v401 = vld [vmem:[%s200 + $0x4c8] sm:$0xff]
        %v402 = vld [vmem:[%s200 + $0x4d0] sm:$0xff]
        %v403 = vld [vmem:[%s200 + $0x4d8] sm:$0xff]
        %v404 = vld [vmem:[%s200 + $0x4e0] sm:$0xff]
        %v405 = vld [vmem:[%s200 + $0x4e8] sm:$0xff]
        %v406 = vld [vmem:[%s200 + $0x4f0] sm:$0xff]
        %v407 = vld [vmem:[%s200 + $0x4f8] sm:$0xff]
        %v408 = vld [vmem:[%s200 + $0x500] sm:$0xff]
        %v409 = vld [vmem:[%s200 + $0x508] sm:$0xff]
        %v410 = vld [vmem:[%s200 + $0x510] sm:$0xff]
        %v411 = vld [vmem:[%s200 + $0x518] sm:$0xff]
        %v412 = vld [vmem:[%s200 + $0x520] sm:$0xff]
        %v413 = vld [vmem:[%s200 + $0x528] sm:$0xff]
        %v414 = vld [vmem:[%s200 + $0x530] sm:$0xff]
        %v415 = vld [vmem:[%s200 + $0x538] sm:$0xff]
        %v416 = vld [vmem:[%s200 + $0x540] sm:$0xff]
        %v417 = vld [vmem:[%s200 + $0x548] sm:$0xff]
        %v418 = vld [vmem:[%s200 + $0x550] sm:$0xff]
        %v419 = vld [vmem:[%s200 + $0x558] sm:$0xff]
        %v420 = vld [vmem:[%s200 + $0x560] sm:$0xff]
        %v421 = vld [vmem:[%s200 + $0x568] sm:$0xff]
        %v422 = vld [vmem:[%s200 + $0x570] sm:$0xff]
        %v423 = vld [vmem:[%s200 + $0x578] sm:$0xff]
        %v424 = vld [vmem:[%s200 + $0x580] sm:$0xff]
        %v425 = vld [vmem:[%s200 + $0x588] sm:$0xff]
        %v426 = vld [vmem:[%s200 + $0x590] sm:$0xff]
        %v427 = vld [vmem:[%s200 + $0x598] sm:$0xff]
        %v428 = vld [vmem:[%s200 + $0x5a0] sm:$0xff]
        %v429 = vld [vmem:[%s200 + $0x5a8] sm:$0xff]
        %v430 = vld [vmem:[%s200 + $0x5b0] sm:$0xff]
        %v431 = vld [vmem:[%s200 + $0x5b8] sm:$0xff]
        %v432 = vld [vmem:[%s200 + $0x5c0] sm:$0xff]
        %v433 = vld [vmem:[%s200 + $0x5c8] sm:$0xff]
        %v434 = vld [vmem:[%s200 + $0x5d0] sm:$0xff]
        %v435 = vld [vmem:[%s200 + $0x5d8] sm:$0xff]
        %v436 = vld [vmem:[%s200 + $0x5e0] sm:$0xff]
        %v437 = vld [vmem:[%s200 + $0x5e8] sm:$0xff]
        %v438 = vld [vmem:[%s200 + $0x5f0] sm:$0xff]
        %v439 = vld [vmem:[%s200 + $0x5f8] sm:$0xff]
        %v440 = vld [vmem:[%s200 + $0x600] sm:$0xff]
        %v441 = vld [vmem:[%s200 + $0x608] sm:$0xff]
        %v442 = vld [vmem:[%s200 + $0x610] sm:$0xff]
        %v443 = vld [vmem:[%s200 + $0x618] sm:$0xff]
        %v444 = vld [vmem:[%s200 + $0x620] sm:$0xff]
        %v445 = vld [vmem:[%s200 + $0x628] sm:$0xff]
        %v446 = vld [vmem:[%s200 + $0x630] sm:$0xff]
        %v447 = vld [vmem:[%s200 + $0x638] sm:$0xff]
        %v448 = vld [vmem:[%s200 + $0x640] sm:$0xff]
        %v449 = vld [vmem:[%s200 + $0x648] sm:$0xff]
        %v450 = vld [vmem:[%s200 + $0x650] sm:$0xff]
        %v451 = vld [vmem:[%s200 + $0x658] sm:$0xff]
        %v452 = vld [vmem:[%s200 + $0x660] sm:$0xff]
        %v453 = vld [vmem:[%s200 + $0x668] sm:$0xff]
        %v454 = vld [vmem:[%s200 + $0x670] sm:$0xff]
        %v455 = vld [vmem:[%s200 + $0x678] sm:$0xff]
        %v456 = vld [vmem:[%s200 + $0x680] sm:$0xff]
        %v457 = vld [vmem:[%s200 + $0x688] sm:$0xff]
        %v458 = vld [vmem:[%s200 + $0x690] sm:$0xff]
        %v459 = vld [vmem:[%s200 + $0x698] sm:$0xff]
        %v460 = vld [vmem:[%s200 + $0x6a0] sm:$0xff]
        %v461 = vld [vmem:[%s200 + $0x6a8] sm:$0xff]
        %v462 = vld [vmem:[%s200 + $0x6b0] sm:$0xff]
        %v463 = vld [vmem:[%s200 + $0x6b8] sm:$0xff]
        %v464 = vld [vmem:[%s200 + $0x6c0] sm:$0xff]
        %v465 = vld [vmem:[%s200 + $0x6c8] sm:$0xff]
        %v466 = vld [vmem:[%s200 + $0x6d0] sm:$0xff]
        %v467 = vld [vmem:[%s200 + $0x6d8] sm:$0xff]
        %v468 = vld [vmem:[%s200 + $0x6e0] sm:$0xff]
        %v469 = vld [vmem:[%s200 + $0x6e8] sm:$0xff]
        %v470 = vld [vmem:[%s200 + $0x6f0] sm:$0xff]
        %v471 = vld [vmem:[%s200 + $0x6f8] sm:$0xff]
        %v472 = vld [vmem:[%s200 + $0x700] sm:$0xff]
        %v473 = vld [vmem:[%s200 + $0x708] sm:$0xff]
        %v474 = vld [vmem:[%s200 + $0x710] sm:$0xff]
        %v475 = vld [vmem:[%s200 + $0x718] sm:$0xff]
        %v476 = vld [vmem:[%s200 + $0x720] sm:$0xff]
        %v477 = vld [vmem:[%s200 + $0x728] sm:$0xff]
        %v478 = vld [vmem:[%s200 + $0x730] sm:$0xff]
        %v479 = vld [vmem:[%s200 + $0x738] sm:$0xff]
        %v480 = vld [vmem:[%s200 + $0x740] sm:$0xff]
        %v481 = vld [vmem:[%s200 + $0x748] sm:$0xff]
        %v482 = vld [vmem:[%s200 + $0x750] sm:$0xff]
        %v483 = vld [vmem:[%s200 + $0x758] sm:$0xff]
        %v484 = vld [vmem:[%s200 + $0x760] sm:$0xff]
        %v485 = vld [vmem:[%s200 + $0x768] sm:$0xff]
        %v486 = vld [vmem:[%s200 + $0x770] sm:$0xff]
        %v487 = vld [vmem:[%s200 + $0x778] sm:$0xff]
        %v488 = vld [vmem:[%s200 + $0x780] sm:$0xff]
        %v489 = vld [vmem:[%s200 + $0x788] sm:$0xff]
        %v490 = vld [vmem:[%s200 + $0x790] sm:$0xff]
        %v491 = vld [vmem:[%s200 + $0x798] sm:$0xff]
        %v492 = vld [vmem:[%s200 + $0x7a0] sm:$0xff]
        %v493 = vld [vmem:[%s200 + $0x7a8] sm:$0xff]
        %v494 = vld [vmem:[%s200 + $0x7b0] sm:$0xff]
        %v495 = vld [vmem:[%s200 + $0x7b8] sm:$0xff]
        %v496 = vld [vmem:[%s200 + $0x7c0] sm:$0xff]
        %v497 = vld [vmem:[%s200 + $0x7c8] sm:$0xff]
        %v498 = vld [vmem:[%s200 + $0x7d0] sm:$0xff]
        %v499 = vld [vmem:[%s200 + $0x7d8] sm:$0xff]
        %v500 = vld [vmem:[%s200 + $0x7e0] sm:$0xff]
        %v501 = vld [vmem:[%s200 + $0x7e8] sm:$0xff]
        %v502 = vld [vmem:[%s200 + $0x7f0] sm:$0xff]
        %v503 = vld [vmem:[%s200 + $0x7f8] sm:$0xff]
        %v504 = vld [vmem:[%s200 + $0x800] sm:$0xff]
        %v505 = vld [vmem:[%s200 + $0x808] sm:$0xff]
        %v506 = vld [vmem:[%s200 + $0x810] sm:$0xff]
        %v507 = vld [vmem:[%s200 + $0x818] sm:$0xff]
        %v508 = vld [vmem:[%s200 + $0x820] sm:$0xff]
        %v509 = vld [vmem:[%s200 + $0x828] sm:$0xff]
        %v510 = vld [vmem:[%s200 + $0x830] sm:$0xff]
        %v511 = vld [vmem:[%s200 + $0x838] sm:$0xff]
        %v512 = vld [vmem:[%s200 + $0x840] sm:$0xff]
        %v513 = vld [vmem:[%s200 + $0x848] sm:$0xff]
        %v514 = vld [vmem:[%s200 + $0x850] sm:$0xff]
        %v515 = vld [vmem:[%s200 + $0x858] sm:$0xff]
        %v516 = vld [vmem:[%s200 + $0x860] sm:$0xff]
        %v517 = vld [vmem:[%s200 + $0x868] sm:$0xff]
        %v518 = vld [vmem:[%s200 + $0x870] sm:$0xff]
        %v519 = vld [vmem:[%s200 + $0x878] sm:$0xff]
        %v520 = vld [vmem:[%s200 + $0x880] sm:$0xff]
        %v521 = vld [vmem:[%s200 + $0x888] sm:$0xff]
        %v522 = vld [vmem:[%s200 + $0x890] sm:$0xff]
        %v523 = vld [vmem:[%s200 + $0x898] sm:$0xff]
        %v524 = vld [vmem:[%s200 + $0x8a0] sm:$0xff]
        %v525 = vld [vmem:[%s200 + $0x8a8] sm:$0xff]
        %v526 = vld [vmem:[%s200 + $0x8b0] sm:$0xff]
        %v527 = vld [vmem:[%s200 + $0x8b8] sm:$0xff]
        %v528 = vld [vmem:[%s200 + $0x8c0] sm:$0xff]
        %v529 = vld [vmem:[%s200 + $0x8c8] sm:$0xff]
        %v530 = vld [vmem:[%s200 + $0x8d0] sm:$0xff]
        %v531 = vld [vmem:[%s200 + $0x8d8] sm:$0xff]
        %v532 = vld [vmem:[%s200 + $0x8e0] sm:$0xff]
        %v533 = vld [vmem:[%s200 + $0x8e8] sm:$0xff]
        %v534 = vld [vmem:[%s200 + $0x8f0] sm:$0xff]
        %v535 = vld [vmem:[%s200 + $0x8f8] sm:$0xff]
        %v536 = vld [vmem:[%s200 + $0x900] sm:$0xff]
        %v537 = vld [vmem:[%s200 + $0x908] sm:$0xff]
        %v538 = vld [vmem:[%s200 + $0x910] sm:$0xff]
        %v539 = vld [vmem:[%s200 + $0x918] sm:$0xff]
        %v540 = vld [vmem:[%s200 + $0x920] sm:$0xff]
        %v541 = vld [vmem:[%s200 + $0x928] sm:$0xff]
        %v542 = vld [vmem:[%s200 + $0x930] sm:$0xff]
        %v543 = vld [vmem:[%s200 + $0x938] sm:$0xff]
        %v544 = vld [vmem:[%s200 + $0x940] sm:$0xff]
        %v545 = vld [vmem:[%s200 + $0x948] sm:$0xff]
        %v546 = vld [vmem:[%s200 + $0x950] sm:$0xff]
        %v547 = vld [vmem:[%s200 + $0x958] sm:$0xff]
        %v548 = vld [vmem:[%s200 + $0x960] sm:$0xff]
        %v549 = vld [vmem:[%s200 + $0x968] sm:$0xff]
        %v550 = vld [vmem:[%s200 + $0x970] sm:$0xff]
        %v551 = vld [vmem:[%s200 + $0x978] sm:$0xff]
        %v552 = vld [vmem:[%s200 + $0x980] sm:$0xff]
        %v553 = vld [vmem:[%s200 + $0x988] sm:$0xff]
        %v554 = vld [vmem:[%s200 + $0x990] sm:$0xff]
        %v555 = vld [vmem:[%s200 + $0x998] sm:$0xff]
        %v556 = vld [vmem:[%s200 + $0x9a0] sm:$0xff]
        %v557 = vld [vmem:[%s200 + $0x9a8] sm:$0xff]
        %v558 = vld [vmem:[%s200 + $0x9b0] sm:$0xff]
        %v559 = vld [vmem:[%s200 + $0x9b8] sm:$0xff]
        %v560 = vld [vmem:[%s200 + $0x9c0] sm:$0xff]
        %v561 = vld [vmem:[%s200 + $0x9c8] sm:$0xff]
        %v562 = vld [vmem:[%s200 + $0x9d0] sm:$0xff]
        %v563 = vld [vmem:[%s200 + $0x9d8] sm:$0xff]
        %v564 = vld [vmem:[%s200 + $0x9e0] sm:$0xff]
        %v565 = vld [vmem:[%s200 + $0x9e8] sm:$0xff]
        %v566 = vld [vmem:[%s200 + $0x9f0] sm:$0xff]
        %v567 = vld [vmem:[%s200 + $0x9f8] sm:$0xff]
        %v568 = vld [vmem:[%s200 + $0xa00] sm:$0xff]
        %v569 = vld [vmem:[%s200 + $0xa08] sm:$0xff]
        %v570 = vld [vmem:[%s200 + $0xa10] sm:$0xff]
        %v571 = vld [vmem:[%s200 + $0xa18] sm:$0xff]
        %v572 = vld [vmem:[%s200 + $0xa20] sm:$0xff]
        %v573 = vld [vmem:[%s200 + $0xa28] sm:$0xff]
        %v574 = vld [vmem:[%s200 + $0xa30] sm:$0xff]
        %v575 = vld [vmem:[%s200 + $0xa38] sm:$0xff]
        %v576 = vld [vmem:[%s200 + $0xa40] sm:$0xff]
        %v577 = vld [vmem:[%s200 + $0xa48] sm:$0xff]
        %v578 = vld [vmem:[%s200 + $0xa50] sm:$0xff]
        %v579 = vld [vmem:[%s200 + $0xa58] sm:$0xff]
        %v580 = vld [vmem:[%s200 + $0xa60] sm:$0xff]
        %v581 = vld [vmem:[%s200 + $0xa68] sm:$0xff]
        %v582 = vld [vmem:[%s200 + $0xa70] sm:$0xff]
        %v583 = vld [vmem:[%s200 + $0xa78] sm:$0xff]
        %v584 = vld [vmem:[%s200 + $0xa80] sm:$0xff]
        %v585 = vld [vmem:[%s200 + $0xa88] sm:$0xff]
        %v586 = vld [vmem:[%s200 + $0xa90] sm:$0xff]
        %v587 = vld [vmem:[%s200 + $0xa98] sm:$0xff]
        %v588 = vld [vmem:[%s200 + $0xaa0] sm:$0xff]
        %v589 = vld [vmem:[%s200 + $0xaa8] sm:$0xff]
        %v590 = vld [vmem:[%s200 + $0xab0] sm:$0xff]
        %v591 = vld [vmem:[%s200 + $0xab8] sm:$0xff]
        %v592 = vld [vmem:[%s200 + $0xac0] sm:$0xff]
        %v593 = vld [vmem:[%s200 + $0xac8] sm:$0xff]
        %v594 = vld [vmem:[%s200 + $0xad0] sm:$0xff]
        %v595 = vld [vmem:[%s200 + $0xad8] sm:$0xff]
        %v596 = vld [vmem:[%s200 + $0xae0] sm:$0xff]
        %v597 = vld [vmem:[%s200 + $0xae8] sm:$0xff]
        %v598 = vld [vmem:[%s200 + $0xaf0] sm:$0xff]
        %v599 = vld [vmem:[%s200 + $0xaf8] sm:$0xff]
        %v600 = vld [vmem:[%s200 + $0xb00] sm:$0xff]
        %v601 = vld [vmem:[%s200 + $0xb08] sm:$0xff]
        %v602 = vld [vmem:[%s200 + $0xb10] sm:$0xff]
        %v603 = vld [vmem:[%s200 + $0xb18] sm:$0xff]
        %v604 = vld [vmem:[%s200 + $0xb20] sm:$0xff]
        %v605 = vld [vmem:[%s200 + $0xb28] sm:$0xff]
        %v606 = vld [vmem:[%s200 + $0xb30] sm:$0xff]
        %v607 = vld [vmem:[%s200 + $0xb38] sm:$0xff]
        %v608 = vld [vmem:[%s200 + $0xb40] sm:$0xff]
        %v609 = vld [vmem:[%s200 + $0xb48] sm:$0xff]
        %v610 = vld [vmem:[%s200 + $0xb50] sm:$0xff]
        %v611 = vld [vmem:[%s200 + $0xb58] sm:$0xff]
        %v612 = vld [vmem:[%s200 + $0xb60] sm:$0xff]
        %v613 = vld [vmem:[%s200 + $0xb68] sm:$0xff]
        %v614 = vld [vmem:[%s200 + $0xb70] sm:$0xff]
        %v615 = vld [vmem:[%s200 + $0xb78] sm:$0xff]
        %v616 = vld [vmem:[%s200 + $0xb80] sm:$0xff]
        %v617 = vld [vmem:[%s200 + $0xb88] sm:$0xff]
        %v618 = vld [vmem:[%s200 + $0xb90] sm:$0xff]
        %v619 = vld [vmem:[%s200 + $0xb98] sm:$0xff]
        %v620 = vld [vmem:[%s200 + $0xba0] sm:$0xff]
        %v621 = vld [vmem:[%s200 + $0xba8] sm:$0xff]
        %v622 = vld [vmem:[%s200 + $0xbb0] sm:$0xff]
        %v623 = vld [vmem:[%s200 + $0xbb8] sm:$0xff]
        %v624 = vld [vmem:[%s200 + $0xbc0] sm:$0xff]
        %v625 = vld [vmem:[%s200 + $0xbc8] sm:$0xff]
        %v626 = vld [vmem:[%s200 + $0xbd0] sm:$0xff]
        %v627 = vld [vmem:[%s200 + $0xbd8] sm:$0xff]
        %v628 = vld [vmem:[%s200 + $0xbe0] sm:$0xff]
        %v629 = vld [vmem:[%s200 + $0xbe8] sm:$0xff]
        %v630 = vld [vmem:[%s200 + $0xbf0] sm:$0xff]
        %v631 = vld [vmem:[%s200 + $0xbf8] sm:$0xff]
        %v632 = vld [vmem:[%s200 + $0xc00] sm:$0xff]
        %v633 = vld [vmem:[%s200 + $0xc08] sm:$0xff]
        %v634 = vld [vmem:[%s200 + $0xc10] sm:$0xff]
        %v635 = vld [vmem:[%s200 + $0xc18] sm:$0xff]
        %v636 = vld [vmem:[%s200 + $0xc20] sm:$0xff]
        %v637 = vld [vmem:[%s200 + $0xc28] sm:$0xff]
        %v638 = vld [vmem:[%s200 + $0xc30] sm:$0xff]
        %v639 = vld [vmem:[%s200 + $0xc38] sm:$0xff]
        %v640 = vld [vmem:[%s200 + $0xc40] sm:$0xff]
        %v641 = vld [vmem:[%s200 + $0xc48] sm:$0xff]
        %v642 = vld [vmem:[%s200 + $0xc50] sm:$0xff]
        %v643 = vld [vmem:[%s200 + $0xc58] sm:$0xff]
        %v644 = vld [vmem:[%s200 + $0xc60] sm:$0xff]
        %v645 = vld [vmem:[%s200 + $0xc68] sm:$0xff]
        %v646 = vld [vmem:[%s200 + $0xc70] sm:$0xff]
        %v647 = vld [vmem:[%s200 + $0xc78] sm:$0xff]
        %v648 = vld [vmem:[%s200 + $0xc80] sm:$0xff]
        %v649 = vld [vmem:[%s200 + $0xc88] sm:$0xff]
        %v650 = vld [vmem:[%s200 + $0xc90] sm:$0xff]
        %v651 = vld [vmem:[%s200 + $0xc98] sm:$0xff]
        %v652 = vld [vmem:[%s200 + $0xca0] sm:$0xff]
        %v653 = vld [vmem:[%s200 + $0xca8] sm:$0xff]
        %v654 = vld [vmem:[%s200 + $0xcb0] sm:$0xff]
        %v655 = vld [vmem:[%s200 + $0xcb8] sm:$0xff]
        %v656 = vld [vmem:[%s200 + $0xcc0] sm:$0xff]
        %v657 = vld [vmem:[%s200 + $0xcc8] sm:$0xff]
        %v658 = vld [vmem:[%s200 + $0xcd0] sm:$0xff]
        %v659 = vld [vmem:[%s200 + $0xcd8] sm:$0xff]
        %v660 = vld [vmem:[%s200 + $0xce0] sm:$0xff]
        %v661 = vld [vmem:[%s200 + $0xce8] sm:$0xff]
        %v662 = vld [vmem:[%s200 + $0xcf0] sm:$0xff]
        %v663 = vld [vmem:[%s200 + $0xcf8] sm:$0xff]
        %v664 = vld [vmem:[%s200 + $0xd00] sm:$0xff]
        %v665 = vld [vmem:[%s200 + $0xd08] sm:$0xff]
        %v666 = vld [vmem:[%s200 + $0xd10] sm:$0xff]
        %v667 = vld [vmem:[%s200 + $0xd18] sm:$0xff]
        %v668 = vld [vmem:[%s200 + $0xd20] sm:$0xff]
        %v669 = vld [vmem:[%s200 + $0xd28] sm:$0xff]
        %v670 = vld [vmem:[%s200 + $0xd30] sm:$0xff]
        %v671 = vld [vmem:[%s200 + $0xd38] sm:$0xff]
        %v672 = vld [vmem:[%s200 + $0xd40] sm:$0xff]
        %v673 = vld [vmem:[%s200 + $0xd48] sm:$0xff]
        %v674 = vld [vmem:[%s200 + $0xd50] sm:$0xff]
        %v675 = vld [vmem:[%s200 + $0xd58] sm:$0xff]
        %v676 = vld [vmem:[%s200 + $0xd60] sm:$0xff]
        %v677 = vld [vmem:[%s200 + $0xd68] sm:$0xff]
        %v678 = vld [vmem:[%s200 + $0xd70] sm:$0xff]
        %v679 = vld [vmem:[%s200 + $0xd78] sm:$0xff]
        %v680 = vld [vmem:[%s200 + $0xd80] sm:$0xff]
        %v681 = vld [vmem:[%s200 + $0xd88] sm:$0xff]
        %v682 = vld [vmem:[%s200 + $0xd90] sm:$0xff]
        %v683 = vld [vmem:[%s200 + $0xd98] sm:$0xff]
        %v684 = vld [vmem:[%s200 + $0xda0] sm:$0xff]
        %v685 = vld [vmem:[%s200 + $0xda8] sm:$0xff]
        %v686 = vld [vmem:[%s200 + $0xdb0] sm:$0xff]
        %v687 = vld [vmem:[%s200 + $0xdb8] sm:$0xff]
        %v688 = vld [vmem:[%s200 + $0xdc0] sm:$0xff]
        %v689 = vld [vmem:[%s200 + $0xdc8] sm:$0xff]
        %v690 = vld [vmem:[%s200 + $0xdd0] sm:$0xff]
        %v691 = vld [vmem:[%s200 + $0xdd8] sm:$0xff]
        %v692 = vld [vmem:[%s200 + $0xde0] sm:$0xff]
        %v693 = vld [vmem:[%s200 + $0xde8] sm:$0xff]
        %v694 = vld [vmem:[%s200 + $0xdf0] sm:$0xff]
        %v695 = vld [vmem:[%s200 + $0xdf8] sm:$0xff]
        %v696 = vld [vmem:[%s200 + $0xe00] sm:$0xff]
        %v697 = vld [vmem:[%s200 + $0xe08] sm:$0xff]
        %v698 = vld [vmem:[%s200 + $0xe10] sm:$0xff]
        %v699 = vld [vmem:[%s200 + $0xe18] sm:$0xff]
        %v700 = vld [vmem:[%s200 + $0xe20] sm:$0xff]
        %v701 = vld [vmem:[%s200 + $0xe28] sm:$0xff]
        %v702 = vld [vmem:[%s200 + $0xe30] sm:$0xff]
        %v703 = vld [vmem:[%s200 + $0xe38] sm:$0xff]
        %v704 = vld [vmem:[%s200 + $0xe40] sm:$0xff]
        %v705 = vld [vmem:[%s200 + $0xe48] sm:$0xff]
        %v706 = vld [vmem:[%s200 + $0xe50] sm:$0xff]
        %v707 = vld [vmem:[%s200 + $0xe58] sm:$0xff]
        %v708 = vld [vmem:[%s200 + $0xe60] sm:$0xff]
        %v709 = vld [vmem:[%s200 + $0xe68] sm:$0xff]
        %v710 = vld [vmem:[%s200 + $0xe70] sm:$0xff]
        %v711 = vld [vmem:[%s200 + $0xe78] sm:$0xff]
        %v712 = vld [vmem:[%s200 + $0xe80] sm:$0xff]
        %v713 = vld [vmem:[%s200 + $0xe88] sm:$0xff]
        %v714 = vld [vmem:[%s200 + $0xe90] sm:$0xff]
        %v715 = vld [vmem:[%s200 + $0xe98] sm:$0xff]
        %v716 = vld [vmem:[%s200 + $0xea0] sm:$0xff]
        %v717 = vld [vmem:[%s200 + $0xea8] sm:$0xff]
        %v718 = vld [vmem:[%s200 + $0xeb0] sm:$0xff]
        %v719 = vld [vmem:[%s200 + $0xeb8] sm:$0xff]
        %v720 = vld [vmem:[%s200 + $0xec0] sm:$0xff]
        %v721 = vld [vmem:[%s200 + $0xec8] sm:$0xff]
        %v722 = vld [vmem:[%s200 + $0xed0] sm:$0xff]
        %v723 = vld [vmem:[%s200 + $0xed8] sm:$0xff]
        %v724 = vld [vmem:[%s200 + $0xee0] sm:$0xff]
        %v725 = vld [vmem:[%s200 + $0xee8] sm:$0xff]
        %v726 = vld [vmem:[%s200 + $0xef0] sm:$0xff]
        %v727 = vld [vmem:[%s200 + $0xef8] sm:$0xff]
        %v728 = vld [vmem:[%s200 + $0xf00] sm:$0xff]
        %v729 = vld [vmem:[%s200 + $0xf08] sm:$0xff]
        %v730 = vld [vmem:[%s200 + $0xf10] sm:$0xff]
        %v731 = vld [vmem:[%s200 + $0xf18] sm:$0xff]
        %v732 = vld [vmem:[%s200 + $0xf20] sm:$0xff]
        %v733 = vld [vmem:[%s200 + $0xf28] sm:$0xff]
        %v734 = vld [vmem:[%s200 + $0xf30] sm:$0xff]
        %v735 = vld [vmem:[%s200 + $0xf38] sm:$0xff]
        %v736 = vld [vmem:[%s200 + $0xf40] sm:$0xff]
        %v737 = vld [vmem:[%s200 + $0xf48] sm:$0xff]
        %v738 = vld [vmem:[%s200 + $0xf50] sm:$0xff]
        %v739 = vld [vmem:[%s200 + $0xf58] sm:$0xff]
        %v740 = vld [vmem:[%s200 + $0xf60] sm:$0xff]
        %v741 = vld [vmem:[%s200 + $0xf68] sm:$0xff]
        %v742 = vld [vmem:[%s200 + $0xf70] sm:$0xff]
        %v743 = vld [vmem:[%s200 + $0xf78] sm:$0xff]
        %v744 = vld [vmem:[%s200 + $0xf80] sm:$0xff]
        %v745 = vld [vmem:[%s200 + $0xf88] sm:$0xff]
        %v746 = vld [vmem:[%s200 + $0xf90] sm:$0xff]
        %v747 = vld [vmem:[%s200 + $0xf98] sm:$0xff]
        %v748 = vld [vmem:[%s200 + $0xfa0] sm:$0xff]
        %v749 = vld [vmem:[%s200 + $0xfa8] sm:$0xff]
        %v750 = vld [vmem:[%s200 + $0xfb0] sm:$0xff]
        %v751 = vld [vmem:[%s200 + $0xfb8] sm:$0xff]
        %v752 = vld [vmem:[%s200 + $0xfc0] sm:$0xff]
        %v753 = vld [vmem:[%s200 + $0xfc8] sm:$0xff]
        %v754 = vld [vmem:[%s200 + $0xfd0] sm:$0xff]
        %v755 = vld [vmem:[%s200 + $0xfd8] sm:$0xff]
        %v756 = vld [vmem:[%s200 + $0xfe0] sm:$0xff]
        %v757 = vld [vmem:[%s200 + $0xfe8] sm:$0xff]
        %v758 = vld [vmem:[%s200 + $0xff0] sm:$0xff]
        %v759 = vld [vmem:[%s200 + $0xff8] sm:$0xff]
        %v760 = vld [vmem:[%s200 + $0x1000] sm:$0xff]
        %v761 = vld [vmem:[%s200 + $0x1008] sm:$0xff]
        %v762 = vld [vmem:[%s200 + $0x1010] sm:$0xff]
        %v763 = vld [vmem:[%s200 + $0x1018] sm:$0xff]
        %v764 = vld [vmem:[%s200 + $0x1020] sm:$0xff]
        %v765 = vld [vmem:[%s200 + $0x1028] sm:$0xff]
        %v766 = vld [vmem:[%s200 + $0x1030] sm:$0xff]
        %v767 = vld [vmem:[%s200 + $0x1038] sm:$0xff]
        %v768 = vld [vmem:[%s200 + $0x1040] sm:$0xff]
        %v769 = vld [vmem:[%s200 + $0x1048] sm:$0xff]
        %v770 = vld [vmem:[%s200 + $0x1050] sm:$0xff]
        %v771 = vld [vmem:[%s200 + $0x1058] sm:$0xff]
        %v772 = vld [vmem:[%s200 + $0x1060] sm:$0xff]
        %v773 = vld [vmem:[%s200 + $0x1068] sm:$0xff]
        %v774 = vld [vmem:[%s200 + $0x1070] sm:$0xff]
        %v775 = vld [vmem:[%s200 + $0x1078] sm:$0xff]
        %v776 = vld [vmem:[%s200 + $0x1080] sm:$0xff]
        %v777 = vld [vmem:[%s200 + $0x1088] sm:$0xff]
        %v778 = vld [vmem:[%s200 + $0x1090] sm:$0xff]
        %v779 = vld [vmem:[%s200 + $0x1098] sm:$0xff]
        %v780 = vld [vmem:[%s200 + $0x10a0] sm:$0xff]
        %v781 = vld [vmem:[%s200 + $0x10a8] sm:$0xff]
        %v782 = vld [vmem:[%s200 + $0x10b0] sm:$0xff]
        %v783 = vld [vmem:[%s200 + $0x10b8] sm:$0xff]
        %v784 = vld [vmem:[%s200 + $0x10c0] sm:$0xff]
        %v785 = vld [vmem:[%s200 + $0x10c8] sm:$0xff]
        %v786 = vld [vmem:[%s200 + $0x10d0] sm:$0xff]
        %v787 = vld [vmem:[%s200 + $0x10d8] sm:$0xff]
        %v788 = vld [vmem:[%s200 + $0x10e0] sm:$0xff]
        %v789 = vld [vmem:[%s200 + $0x10e8] sm:$0xff]
        %v790 = vld [vmem:[%s200 + $0x10f0] sm:$0xff]
        %v791 = vld [vmem:[%s200 + $0x10f8] sm:$0xff]
        %v792 = vld [vmem:[%s200 + $0x1100] sm:$0xff]
        %v793 = vld [vmem:[%s200 + $0x1108] sm:$0xff]
        %v794 = vld [vmem:[%s200 + $0x1110] sm:$0xff]
        %v795 = vld [vmem:[%s200 + $0x1118] sm:$0xff]
        %v796 = vld [vmem:[%s200 + $0x1120] sm:$0xff]
        %v797 = vld [vmem:[%s200 + $0x1128] sm:$0xff]
        %v798 = vld [vmem:[%s200 + $0x1130] sm:$0xff]
        %v799 = vld [vmem:[%s200 + $0x1138] sm:$0xff]
        %v800 = vld [vmem:[%s200 + $0x1140] sm:$0xff]
        %v801 = vld [vmem:[%s200 + $0x1148] sm:$0xff]
        %v802 = vld [vmem:[%s200 + $0x1150] sm:$0xff]
        %v803 = vld [vmem:[%s200 + $0x1158] sm:$0xff]
        %v804 = vld [vmem:[%s200 + $0x1160] sm:$0xff]
        %v805 = vld [vmem:[%s200 + $0x1168] sm:$0xff]
        %v806 = vld [vmem:[%s200 + $0x1170] sm:$0xff]
        %v807 = vld [vmem:[%s200 + $0x1178] sm:$0xff]
        %v808 = vld [vmem:[%s200 + $0x1180] sm:$0xff]
        %v809 = vld [vmem:[%s200 + $0x1188] sm:$0xff]
        %v810 = vld [vmem:[%s200 + $0x1190] sm:$0xff]
        %v811 = vld [vmem:[%s200 + $0x1198] sm:$0xff]
        %v812 = vld [vmem:[%s200 + $0x11a0] sm:$0xff]
        %v813 = vld [vmem:[%s200 + $0x11a8] sm:$0xff]
        %v814 = vld [vmem:[%s200 + $0x11b0] sm:$0xff]
        %v815 = vld [vmem:[%s200 + $0x11b8] sm:$0xff]
        %v816 = vld [vmem:[%s200 + $0x11c0] sm:$0xff]
        %v817 = vld [vmem:[%s200 + $0x11c8] sm:$0xff]
        %v818 = vld [vmem:[%s200 + $0x11d0] sm:$0xff]
        %v819 = vld [vmem:[%s200 + $0x11d8] sm:$0xff]
        %v820 = vld [vmem:[%s200 + $0x11e0] sm:$0xff]
        %v821 = vld [vmem:[%s200 + $0x11e8] sm:$0xff]
        %v822 = vld [vmem:[%s200 + $0x11f0] sm:$0xff]
        %v823 = vld [vmem:[%s200 + $0x11f8] sm:$0xff]
        %v824 = vld [vmem:[%s200 + $0x1200] sm:$0xff]
        %v825 = vld [vmem:[%s200 + $0x1208] sm:$0xff]
        %v826 = vld [vmem:[%s200 + $0x1210] sm:$0xff]
        %v827 = vld [vmem:[%s200 + $0x1218] sm:$0xff]
        %v828 = vld [vmem:[%s200 + $0x1220] sm:$0xff]
        %v829 = vld [vmem:[%s200 + $0x1228] sm:$0xff]
        %v830 = vld [vmem:[%s200 + $0x1230] sm:$0xff]
        %v831 = vld [vmem:[%s200 + $0x1238] sm:$0xff]
        %v832 = vld [vmem:[%s200 + $0x1240] sm:$0xff]
        %v833 = vld [vmem:[%s200 + $0x1248] sm:$0xff]
        %v834 = vld [vmem:[%s200 + $0x1250] sm:$0xff]
        %v835 = vld [vmem:[%s200 + $0x1258] sm:$0xff]
        %v836 = vld [vmem:[%s200 + $0x1260] sm:$0xff]
        %v837 = vld [vmem:[%s200 + $0x1268] sm:$0xff]
        %v838 = vld [vmem:[%s200 + $0x1270] sm:$0xff]
        %v839 = vld [vmem:[%s200 + $0x1278] sm:$0xff]
        %v840 = vld [vmem:[%s200 + $0x1280] sm:$0xff]
        %v841 = vld [vmem:[%s200 + $0x1288] sm:$0xff]
        %v842 = vld [vmem:[%s200 + $0x1290] sm:$0xff]
        %v843 = vld [vmem:[%s200 + $0x1298] sm:$0xff]
        %v844 = vld [vmem:[%s200 + $0x12a0] sm:$0xff]
        %v845 = vld [vmem:[%s200 + $0x12a8] sm:$0xff]
        %v846 = vld [vmem:[%s200 + $0x12b0] sm:$0xff]
        %v847 = vld [vmem:[%s200 + $0x12b8] sm:$0xff]
        %v848 = vld [vmem:[%s200 + $0x12c0] sm:$0xff]
        %v849 = vld [vmem:[%s200 + $0x12c8] sm:$0xff]
        %v850 = vld [vmem:[%s200 + $0x12d0] sm:$0xff]
        %v851 = vld [vmem:[%s200 + $0x12d8] sm:$0xff]
        %v852 = vld [vmem:[%s200 + $0x12e0] sm:$0xff]
        %v853 = vld [vmem:[%s200 + $0x12e8] sm:$0xff]
        %v854 = vld [vmem:[%s200 + $0x12f0] sm:$0xff]
        %v855 = vld [vmem:[%s200 + $0x12f8] sm:$0xff]
        %v856 = vld [vmem:[%s200 + $0x1300] sm:$0xff]
        %v857 = vld [vmem:[%s200 + $0x1308] sm:$0xff]
        %v858 = vld [vmem:[%s200 + $0x1310] sm:$0xff]
        %v859 = vld [vmem:[%s200 + $0x1318] sm:$0xff]
        %v860 = vld [vmem:[%s200 + $0x1320] sm:$0xff]
        %v861 = vld [vmem:[%s200 + $0x1328] sm:$0xff]
        %v862 = vld [vmem:[%s200 + $0x1330] sm:$0xff]
        %v863 = vld [vmem:[%s200 + $0x1338] sm:$0xff]
        %v864 = vld [vmem:[%s200 + $0x1340] sm:$0xff]
        %v865 = vld [vmem:[%s200 + $0x1348] sm:$0xff]
        %v866 = vld [vmem:[%s200 + $0x1350] sm:$0xff]
        %v867 = vld [vmem:[%s200 + $0x1358] sm:$0xff]
        %v868 = vld [vmem:[%s200 + $0x1360] sm:$0xff]
        %v869 = vld [vmem:[%s200 + $0x1368] sm:$0xff]
        %v870 = vld [vmem:[%s200 + $0x1370] sm:$0xff]
        %v871 = vld [vmem:[%s200 + $0x1378] sm:$0xff]
        %v872 = vld [vmem:[%s200 + $0x1380] sm:$0xff]
        %v873 = vld [vmem:[%s200 + $0x1388] sm:$0xff]
        %v874 = vld [vmem:[%s200 + $0x1390] sm:$0xff]
        %v875 = vld [vmem:[%s200 + $0x1398] sm:$0xff]
        %v876 = vld [vmem:[%s200 + $0x13a0] sm:$0xff]
        %v877 = vld [vmem:[%s200 + $0x13a8] sm:$0xff]
        %v878 = vld [vmem:[%s200 + $0x13b0] sm:$0xff]
        %v879 = vld [vmem:[%s200 + $0x13b8] sm:$0xff]
        %v880 = vld [vmem:[%s200 + $0x13c0] sm:$0xff]
        %v881 = vld [vmem:[%s200 + $0x13c8] sm:$0xff]
        %v882 = vld [vmem:[%s200 + $0x13d0] sm:$0xff]
        %v883 = vld [vmem:[%s200 + $0x13d8] sm:$0xff]
        %v884 = vld [vmem:[%s200 + $0x13e0] sm:$0xff]
        %v885 = vld [vmem:[%s200 + $0x13e8] sm:$0xff]
        %v886 = vld [vmem:[%s200 + $0x13f0] sm:$0xff]
        %v887 = vld [vmem:[%s200 + $0x13f8] sm:$0xff]
        %v888 = vld [vmem:[%s200 + $0x1400] sm:$0xff]
        %v889 = vld [vmem:[%s200 + $0x1408] sm:$0xff]
        %v890 = vld [vmem:[%s200 + $0x1410] sm:$0xff]
        %v891 = vld [vmem:[%s200 + $0x1418] sm:$0xff]
        %v892 = vld [vmem:[%s200 + $0x1420] sm:$0xff]
        %v893 = vld [vmem:[%s200 + $0x1428] sm:$0xff]
        %v894 = vld [vmem:[%s200 + $0x1430] sm:$0xff]
        %v895 = vld [vmem:[%s200 + $0x1438] sm:$0xff]
        %v896 = vld [vmem:[%s200 + $0x1440] sm:$0xff]
        %v897 = vld [vmem:[%s200 + $0x1448] sm:$0xff]
        %v898 = vld [vmem:[%s200 + $0x1450] sm:$0xff]
        %v899 = vld [vmem:[%s200 + $0x1458] sm:$0xff]
        %v900 = vld [vmem:[%s200 + $0x1460] sm:$0xff]
        %v901 = vld [vmem:[%s200 + $0x1468] sm:$0xff]
        %v902 = vld [vmem:[%s200 + $0x1470] sm:$0xff]
        %v903 = vld [vmem:[%s200 + $0x1478] sm:$0xff]
        %v904 = vld [vmem:[%s200 + $0x1480] sm:$0xff]
        %v905 = vld [vmem:[%s200 + $0x1488] sm:$0xff]
        %v906 = vld [vmem:[%s200 + $0x1490] sm:$0xff]
        %v907 = vld [vmem:[%s200 + $0x1498] sm:$0xff]
        %v908 = vld [vmem:[%s200 + $0x14a0] sm:$0xff]
        %v909 = vld [vmem:[%s200 + $0x14a8] sm:$0xff]
        %v910 = vld [vmem:[%s200 + $0x14b0] sm:$0xff]
        %v911 = vld [vmem:[%s200 + $0x14b8] sm:$0xff]
        %v912 = vld [vmem:[%s200 + $0x14c0] sm:$0xff]
        %v913 = vld [vmem:[%s200 + $0x14c8] sm:$0xff]
        %v914 = vld [vmem:[%s200 + $0x14d0] sm:$0xff]
        %v915 = vld [vmem:[%s200 + $0x14d8] sm:$0xff]
        %v916 = vld [vmem:[%s200 + $0x14e0] sm:$0xff]
        %v917 = vld [vmem:[%s200 + $0x14e8] sm:$0xff]
        %v918 = vld [vmem:[%s200 + $0x14f0] sm:$0xff]
        %v919 = vld [vmem:[%s200 + $0x14f8] sm:$0xff]
        %v920 = vld [vmem:[%s200 + $0x1500] sm:$0xff]
        %v921 = vld [vmem:[%s200 + $0x1508] sm:$0xff]
        %v922 = vld [vmem:[%s200 + $0x1510] sm:$0xff]
        %v923 = vld [vmem:[%s200 + $0x1518] sm:$0xff]
        %v924 = vld [vmem:[%s200 + $0x1520] sm:$0xff]
        %v925 = vld [vmem:[%s200 + $0x1528] sm:$0xff]
        %v926 = vld [vmem:[%s200 + $0x1530] sm:$0xff]
        %v927 = vld [vmem:[%s200 + $0x1538] sm:$0xff]
        %v928 = vld [vmem:[%s200 + $0x1540] sm:$0xff]
        %v929 = vld [vmem:[%s200 + $0x1548] sm:$0xff]
        %v930 = vld [vmem:[%s200 + $0x1550] sm:$0xff]
        %v931 = vld [vmem:[%s200 + $0x1558] sm:$0xff]
        %v932 = vld [vmem:[%s200 + $0x1560] sm:$0xff]
        %v933 = vld [vmem:[%s200 + $0x1568] sm:$0xff]
        %v934 = vld [vmem:[%s200 + $0x1570] sm:$0xff]
        %v935 = vld [vmem:[%s200 + $0x1578] sm:$0xff]
        %v936 = vld [vmem:[%s200 + $0x1580] sm:$0xff]
        %v937 = vld [vmem:[%s200 + $0x1588] sm:$0xff]
        %v938 = vld [vmem:[%s200 + $0x1590] sm:$0xff]
        %v939 = vld [vmem:[%s200 + $0x1598] sm:$0xff]
        %v940 = vld [vmem:[%s200 + $0x15a0] sm:$0xff]
        %v941 = vld [vmem:[%s200 + $0x15a8] sm:$0xff]
        %v942 = vld [vmem:[%s200 + $0x15b0] sm:$0xff]
        %v943 = vld [vmem:[%s200 + $0x15b8] sm:$0xff]
        %v944 = vld [vmem:[%s200 + $0x15c0] sm:$0xff]
        %v945 = vld [vmem:[%s200 + $0x15c8] sm:$0xff]
        %v946 = vld [vmem:[%s200 + $0x15d0] sm:$0xff]
        %v947 = vld [vmem:[%s200 + $0x15d8] sm:$0xff]
        %v948 = vld [vmem:[%s200 + $0x15e0] sm:$0xff]
        %v949 = vld [vmem:[%s200 + $0x15e8] sm:$0xff]
        %v950 = vld [vmem:[%s200 + $0x15f0] sm:$0xff]
        %v951 = vld [vmem:[%s200 + $0x15f8] sm:$0xff]
        %v952 = vld [vmem:[%s200 + $0x1600] sm:$0xff]
        %v953 = vld [vmem:[%s200 + $0x1608] sm:$0xff]
        %v954 = vld [vmem:[%s200 + $0x1610] sm:$0xff]
        %v955 = vld [vmem:[%s200 + $0x1618] sm:$0xff]
        %v956 = vld [vmem:[%s200 + $0x1620] sm:$0xff]
        %v957 = vld [vmem:[%s200 + $0x1628] sm:$0xff]
        %v958 = vld [vmem:[%s200 + $0x1630] sm:$0xff]
        %v959 = vld [vmem:[%s200 + $0x1638] sm:$0xff]
        %v960 = vld [vmem:[%s200 + $0x1640] sm:$0xff]
        %v961 = vld [vmem:[%s200 + $0x1648] sm:$0xff]
        %v962 = vld [vmem:[%s200 + $0x1650] sm:$0xff]
        %v963 = vld [vmem:[%s200 + $0x1658] sm:$0xff]
        %v964 = vld [vmem:[%s200 + $0x1660] sm:$0xff]
        %v965 = vld [vmem:[%s200 + $0x1668] sm:$0xff]
        %v966 = vld [vmem:[%s200 + $0x1670] sm:$0xff]
        %v967 = vld [vmem:[%s200 + $0x1678] sm:$0xff]
        %v968 = vld [vmem:[%s200 + $0x1680] sm:$0xff]
        %v969 = vld [vmem:[%s200 + $0x1688] sm:$0xff]
        %v970 = vld [vmem:[%s200 + $0x1690] sm:$0xff]
        %v971 = vld [vmem:[%s200 + $0x1698] sm:$0xff]
        %v972 = vld [vmem:[%s200 + $0x16a0] sm:$0xff]
        %v973 = vld [vmem:[%s200 + $0x16a8] sm:$0xff]
        %v974 = vld [vmem:[%s200 + $0x16b0] sm:$0xff]
        %v975 = vld [vmem:[%s200 + $0x16b8] sm:$0xff]
        %v976 = vld [vmem:[%s200 + $0x16c0] sm:$0xff]
        %v977 = vld [vmem:[%s200 + $0x16c8] sm:$0xff]
        %v978 = vld [vmem:[%s200 + $0x16d0] sm:$0xff]
        %v979 = vld [vmem:[%s200 + $0x16d8] sm:$0xff]
        %v980 = vld [vmem:[%s200 + $0x16e0] sm:$0xff]
        %v981 = vld [vmem:[%s200 + $0x16e8] sm:$0xff]
        %v982 = vld [vmem:[%s200 + $0x16f0] sm:$0xff]
        %v983 = vld [vmem:[%s200 + $0x16f8] sm:$0xff]
        %v984 = vld [vmem:[%s200 + $0x1700] sm:$0xff]
        %v985 = vld [vmem:[%s200 + $0x1708] sm:$0xff]
        %v986 = vld [vmem:[%s200 + $0x1710] sm:$0xff]
        %v987 = vld [vmem:[%s200 + $0x1718] sm:$0xff]
        %v988 = vld [vmem:[%s200 + $0x1720] sm:$0xff]
        %v989 = vld [vmem:[%s200 + $0x1728] sm:$0xff]
        %v990 = vld [vmem:[%s200 + $0x1730] sm:$0xff]
        %v991 = vld [vmem:[%s200 + $0x1738] sm:$0xff]
        %v992 = vld [vmem:[%s200 + $0x1740] sm:$0xff]
        %v993 = vld [vmem:[%s200 + $0x1748] sm:$0xff]
        %v994 = vld [vmem:[%s200 + $0x1750] sm:$0xff]
        %v995 = vld [vmem:[%s200 + $0x1758] sm:$0xff]
        %v996 = vld [vmem:[%s200 + $0x1760] sm:$0xff]
        %v997 = vld [vmem:[%s200 + $0x1768] sm:$0xff]
        %v998 = vld [vmem:[%s200 + $0x1770] sm:$0xff]
        %v999 = vld [vmem:[%s200 + $0x1778] sm:$0xff]
        %v1000 = vld [vmem:[%s200 + $0x1780] sm:$0xff]
        %v1001 = vld [vmem:[%s200 + $0x1788] sm:$0xff]
        %v1002 = vld [vmem:[%s200 + $0x1790] sm:$0xff]
        %v1003 = vld [vmem:[%s200 + $0x1798] sm:$0xff]
        %v1004 = vld [vmem:[%s200 + $0x17a0] sm:$0xff]
        %v1005 = vld [vmem:[%s200 + $0x17a8] sm:$0xff]
        %v1006 = vld [vmem:[%s200 + $0x17b0] sm:$0xff]
        %v1007 = vld [vmem:[%s200 + $0x17b8] sm:$0xff]
        %v1008 = vld [vmem:[%s200 + $0x17c0] sm:$0xff]
        %v1009 = vld [vmem:[%s200 + $0x17c8] sm:$0xff]
        %v1010 = vld [vmem:[%s200 + $0x17d0] sm:$0xff]
        %v1011 = vld [vmem:[%s200 + $0x17d8] sm:$0xff]
        %v1012 = vld [vmem:[%s200 + $0x17e0] sm:$0xff]
        %v1013 = vld [vmem:[%s200 + $0x17e8] sm:$0xff]
        %v1014 = vld [vmem:[%s200 + $0x17f0] sm:$0xff]
        %v1015 = vld [vmem:[%s200 + $0x17f8] sm:$0xff]
        %v1016 = vld [vmem:[%s200 + $0x1800] sm:$0xff]
        %v1017 = vld [vmem:[%s200 + $0x1808] sm:$0xff]
        %v1018 = vld [vmem:[%s200 + $0x1810] sm:$0xff]
        %v1019 = vld [vmem:[%s200 + $0x1818] sm:$0xff]
        %v1020 = vld [vmem:[%s200 + $0x1820] sm:$0xff]
        %v1021 = vld [vmem:[%s200 + $0x1828] sm:$0xff]
        %v1022 = vld [vmem:[%s200 + $0x1830] sm:$0xff]
        %v1023 = vld [vmem:[%s200 + $0x1838] sm:$0xff]
        %v1024 = vld [vmem:[%s200 + $0x1840] sm:$0xff]
        %v1025 = vld [vmem:[%s200 + $0x1848] sm:$0xff]
        %v1026 = vld [vmem:[%s200 + $0x1850] sm:$0xff]
        %v1027 = vld [vmem:[%s200 + $0x1858] sm:$0xff]
        %v1028 = vld [vmem:[%s200 + $0x1860] sm:$0xff]
        %v1029 = vld [vmem:[%s200 + $0x1868] sm:$0xff]
        %v1030 = vld [vmem:[%s200 + $0x1870] sm:$0xff]
        %v1031 = vld [vmem:[%s200 + $0x1878] sm:$0xff]
        %v1032 = vld [vmem:[%s200 + $0x1880] sm:$0xff]
        %v1033 = vld [vmem:[%s200 + $0x1888] sm:$0xff]
        %v1034 = vld [vmem:[%s200 + $0x1890] sm:$0xff]
        %v1035 = vld [vmem:[%s200 + $0x1898] sm:$0xff]
        %v1036 = vld [vmem:[%s200 + $0x18a0] sm:$0xff]
        %v1037 = vld [vmem:[%s200 + $0x18a8] sm:$0xff]
        %v1038 = vld [vmem:[%s200 + $0x18b0] sm:$0xff]
        %v1039 = vld [vmem:[%s200 + $0x18b8] sm:$0xff]
        %v1040 = vld [vmem:[%s200 + $0x18c0] sm:$0xff]
        %v1041 = vld [vmem:[%s200 + $0x18c8] sm:$0xff]
        %v1042 = vld [vmem:[%s200 + $0x18d0] sm:$0xff]
        %v1043 = vld [vmem:[%s200 + $0x18d8] sm:$0xff]
        %v1044 = vld [vmem:[%s200 + $0x18e0] sm:$0xff]
        %v1045 = vld [vmem:[%s200 + $0x18e8] sm:$0xff]
        %v1046 = vld [vmem:[%s200 + $0x18f0] sm:$0xff]
        %v1047 = vld [vmem:[%s200 + $0x18f8] sm:$0xff]
        %v1048 = vld [vmem:[%s200 + $0x1900] sm:$0xff]
        %v1049 = vld [vmem:[%s200 + $0x1908] sm:$0xff]
        %v1050 = vld [vmem:[%s200 + $0x1910] sm:$0xff]
        %v1051 = vld [vmem:[%s200 + $0x1918] sm:$0xff]
        %v1052 = vld [vmem:[%s200 + $0x1920] sm:$0xff]
        %v1053 = vld [vmem:[%s200 + $0x1928] sm:$0xff]
        %v1054 = vld [vmem:[%s200 + $0x1930] sm:$0xff]
        %v1055 = vld [vmem:[%s200 + $0x1938] sm:$0xff]
        %v1056 = vld [vmem:[%s200 + $0x1940] sm:$0xff]
        %v1057 = vld [vmem:[%s200 + $0x1948] sm:$0xff]
        %v1058 = vld [vmem:[%s200 + $0x1950] sm:$0xff]
        %v1059 = vld [vmem:[%s200 + $0x1958] sm:$0xff]
        %v1060 = vld [vmem:[%s200 + $0x1960] sm:$0xff]
        %v1061 = vld [vmem:[%s200 + $0x1968] sm:$0xff]
        %v1062 = vld [vmem:[%s200 + $0x1970] sm:$0xff]
        %v1063 = vld [vmem:[%s200 + $0x1978] sm:$0xff]
        %v1064 = vld [vmem:[%s200 + $0x1980] sm:$0xff]
        %v1065 = vld [vmem:[%s200 + $0x1988] sm:$0xff]
        %v1066 = vld [vmem:[%s200 + $0x1990] sm:$0xff]
        %v1067 = vld [vmem:[%s200 + $0x1998] sm:$0xff]
        %v1068 = vld [vmem:[%s200 + $0x19a0] sm:$0xff]
        %v1069 = vld [vmem:[%s200 + $0x19a8] sm:$0xff]
        %v1070 = vld [vmem:[%s200 + $0x19b0] sm:$0xff]
        %v1071 = vld [vmem:[%s200 + $0x19b8] sm:$0xff]
        %v1072 = vld [vmem:[%s200 + $0x19c0] sm:$0xff]
        %v1073 = vld [vmem:[%s200 + $0x19c8] sm:$0xff]
        %v1074 = vld [vmem:[%s200 + $0x19d0] sm:$0xff]
        %v1075 = vld [vmem:[%s200 + $0x19d8] sm:$0xff]
        %v1076 = vld [vmem:[%s200 + $0x19e0] sm:$0xff]
        %v1077 = vld [vmem:[%s200 + $0x19e8] sm:$0xff]
        %v1078 = vld [vmem:[%s200 + $0x19f0] sm:$0xff]
        %v1079 = vld [vmem:[%s200 + $0x19f8] sm:$0xff]
        %v1080 = vld [vmem:[%s200 + $0x1a00] sm:$0xff]
        %v1081 = vld [vmem:[%s200 + $0x1a08] sm:$0xff]
        %v1082 = vld [vmem:[%s200 + $0x1a10] sm:$0xff]
        %v1083 = vld [vmem:[%s200 + $0x1a18] sm:$0xff]
        %v1084 = vld [vmem:[%s200 + $0x1a20] sm:$0xff]
        %v1085 = vld [vmem:[%s200 + $0x1a28] sm:$0xff]
        %v1086 = vld [vmem:[%s200 + $0x1a30] sm:$0xff]
        %v1087 = vld [vmem:[%s200 + $0x1a38] sm:$0xff]
        %v1088 = vld [vmem:[%s200 + $0x1a40] sm:$0xff]
        %v1089 = vld [vmem:[%s200 + $0x1a48] sm:$0xff]
        %v1090 = vld [vmem:[%s200 + $0x1a50] sm:$0xff]
        %v1091 = vld [vmem:[%s200 + $0x1a58] sm:$0xff]
        %v1092 = vld [vmem:[%s200 + $0x1a60] sm:$0xff]
        %v1093 = vld [vmem:[%s200 + $0x1a68] sm:$0xff]
        %v1094 = vld [vmem:[%s200 + $0x1a70] sm:$0xff]
        %v1095 = vld [vmem:[%s200 + $0x1a78] sm:$0xff]
        %v1096 = vld [vmem:[%s200 + $0x1a80] sm:$0xff]
        %v1097 = vld [vmem:[%s200 + $0x1a88] sm:$0xff]
        %v1098 = vld [vmem:[%s200 + $0x1a90] sm:$0xff]
        %v1099 = vld [vmem:[%s200 + $0x1a98] sm:$0xff]
        %v1100 = vld [vmem:[%s200 + $0x1aa0] sm:$0xff]
        %v1101 = vld [vmem:[%s200 + $0x1aa8] sm:$0xff]
        %v1102 = vld [vmem:[%s200 + $0x1ab0] sm:$0xff]
        %v1103 = vld [vmem:[%s200 + $0x1ab8] sm:$0xff]
        %v1104 = vld [vmem:[%s200 + $0x1ac0] sm:$0xff]
        %v1105 = vld [vmem:[%s200 + $0x1ac8] sm:$0xff]
        %v1106 = vld [vmem:[%s200 + $0x1ad0] sm:$0xff]
        %v1107 = vld [vmem:[%s200 + $0x1ad8] sm:$0xff]
        %v1108 = vld [vmem:[%s200 + $0x1ae0] sm:$0xff]
        %v1109 = vld [vmem:[%s200 + $0x1ae8] sm:$0xff]
        %v1110 = vld [vmem:[%s200 + $0x1af0] sm:$0xff]
        %v1111 = vld [vmem:[%s200 + $0x1af8] sm:$0xff]
        %v1112 = vld [vmem:[%s200 + $0x1b00] sm:$0xff]
        %v1113 = vld [vmem:[%s200 + $0x1b08] sm:$0xff]
        %v1114 = vld [vmem:[%s200 + $0x1b10] sm:$0xff]
        %v1115 = vld [vmem:[%s200 + $0x1b18] sm:$0xff]
        %v1116 = vld [vmem:[%s200 + $0x1b20] sm:$0xff]
        %v1117 = vld [vmem:[%s200 + $0x1b28] sm:$0xff]
        %v1118 = vld [vmem:[%s200 + $0x1b30] sm:$0xff]
        %v1119 = vld [vmem:[%s200 + $0x1b38] sm:$0xff]
        %v1120 = vld [vmem:[%s200 + $0x1b40] sm:$0xff]
        %v1121 = vld [vmem:[%s200 + $0x1b48] sm:$0xff]
        %v1122 = vld [vmem:[%s200 + $0x1b50] sm:$0xff]
        %v1123 = vld [vmem:[%s200 + $0x1b58] sm:$0xff]
        %v1124 = vld [vmem:[%s200 + $0x1b60] sm:$0xff]
        %v1125 = vld [vmem:[%s200 + $0x1b68] sm:$0xff]
        %v1126 = vld [vmem:[%s200 + $0x1b70] sm:$0xff]
        %v1127 = vld [vmem:[%s200 + $0x1b78] sm:$0xff]
        %v1128 = vld [vmem:[%s200 + $0x1b80] sm:$0xff]
        %v1129 = vld [vmem:[%s200 + $0x1b88] sm:$0xff]
        %v1130 = vld [vmem:[%s200 + $0x1b90] sm:$0xff]
        %v1131 = vld [vmem:[%s200 + $0x1b98] sm:$0xff]
        %v1132 = vld [vmem:[%s200 + $0x1ba0] sm:$0xff]
        %v1133 = vld [vmem:[%s200 + $0x1ba8] sm:$0xff]
        %v1134 = vld [vmem:[%s200 + $0x1bb0] sm:$0xff]
        %v1135 = vld [vmem:[%s200 + $0x1bb8] sm:$0xff]
        %v1136 = vld [vmem:[%s200 + $0x1bc0] sm:$0xff]
        %v1137 = vld [vmem:[%s200 + $0x1bc8] sm:$0xff]
        %v1138 = vld [vmem:[%s200 + $0x1bd0] sm:$0xff]
        %v1139 = vld [vmem:[%s200 + $0x1bd8] sm:$0xff]
        %v1140 = vld [vmem:[%s200 + $0x1be0] sm:$0xff]
        %v1141 = vld [vmem:[%s200 + $0x1be8] sm:$0xff]
        %v1142 = vld [vmem:[%s200 + $0x1bf0] sm:$0xff]
        %v1143 = vld [vmem:[%s200 + $0x1bf8] sm:$0xff]
        %v1144 = vld [vmem:[%s200 + $0x1c00] sm:$0xff]
        %v1145 = vld [vmem:[%s200 + $0x1c08] sm:$0xff]
        %v1146 = vld [vmem:[%s200 + $0x1c10] sm:$0xff]
        %v1147 = vld [vmem:[%s200 + $0x1c18] sm:$0xff]
        %v1148 = vld [vmem:[%s200 + $0x1c20] sm:$0xff]
        %v1149 = vld [vmem:[%s200 + $0x1c28] sm:$0xff]
        %v1150 = vld [vmem:[%s200 + $0x1c30] sm:$0xff]
        %v1151 = vld [vmem:[%s200 + $0x1c38] sm:$0xff]
        %v1152 = vld [vmem:[%s200 + $0x1c40] sm:$0xff]
        %v1153 = vld [vmem:[%s200 + $0x1c48] sm:$0xff]
        %v1154 = vld [vmem:[%s200 + $0x1c50] sm:$0xff]
        %v1155 = vld [vmem:[%s200 + $0x1c58] sm:$0xff]
        %v1156 = vld [vmem:[%s200 + $0x1c60] sm:$0xff]
        %v1157 = vld [vmem:[%s200 + $0x1c68] sm:$0xff]
        %v1158 = vld [vmem:[%s200 + $0x1c70] sm:$0xff]
        %v1159 = vld [vmem:[%s200 + $0x1c78] sm:$0xff]
        %v1160 = vld [vmem:[%s200 + $0x1c80] sm:$0xff]
        %v1161 = vld [vmem:[%s200 + $0x1c88] sm:$0xff]
        %v1162 = vld [vmem:[%s200 + $0x1c90] sm:$0xff]
        %v1163 = vld [vmem:[%s200 + $0x1c98] sm:$0xff]
        %v1164 = vld [vmem:[%s200 + $0x1ca0] sm:$0xff]
        %v1165 = vld [vmem:[%s200 + $0x1ca8] sm:$0xff]
        %v1166 = vld [vmem:[%s200 + $0x1cb0] sm:$0xff]
        %v1167 = vld [vmem:[%s200 + $0x1cb8] sm:$0xff]
        %v1168 = vld [vmem:[%s200 + $0x1cc0] sm:$0xff]
        %v1169 = vld [vmem:[%s200 + $0x1cc8] sm:$0xff]
        %v1170 = vld [vmem:[%s200 + $0x1cd0] sm:$0xff]
        %v1171 = vld [vmem:[%s200 + $0x1cd8] sm:$0xff]
        %v1172 = vld [vmem:[%s200 + $0x1ce0] sm:$0xff]
        %v1173 = vld [vmem:[%s200 + $0x1ce8] sm:$0xff]
        %v1174 = vld [vmem:[%s200 + $0x1cf0] sm:$0xff]
        %v1175 = vld [vmem:[%s200 + $0x1cf8] sm:$0xff]
        %v1176 = vld [vmem:[%s200 + $0x1d00] sm:$0xff]
        %v1177 = vld [vmem:[%s200 + $0x1d08] sm:$0xff]
        %v1178 = vld [vmem:[%s200 + $0x1d10] sm:$0xff]
        %v1179 = vld [vmem:[%s200 + $0x1d18] sm:$0xff]
        %v1180 = vld [vmem:[%s200 + $0x1d20] sm:$0xff]
        %v1181 = vld [vmem:[%s200 + $0x1d28] sm:$0xff]
        %v1182 = vld [vmem:[%s200 + $0x1d30] sm:$0xff]
        %v1183 = vld [vmem:[%s200 + $0x1d38] sm:$0xff]
        %v1184 = vld [vmem:[%s200 + $0x1d40] sm:$0xff]
        %v1185 = vld [vmem:[%s200 + $0x1d48] sm:$0xff]
        %v1186 = vld [vmem:[%s200 + $0x1d50] sm:$0xff]
        %v1187 = vld [vmem:[%s200 + $0x1d58] sm:$0xff]
        %v1188 = vld [vmem:[%s200 + $0x1d60] sm:$0xff]
        %v1189 = vld [vmem:[%s200 + $0x1d68] sm:$0xff]
        %v1190 = vld [vmem:[%s200 + $0x1d70] sm:$0xff]
        %v1191 = vld [vmem:[%s200 + $0x1d78] sm:$0xff]
        %v1192 = vld [vmem:[%s200 + $0x1d80] sm:$0xff]
        %v1193 = vld [vmem:[%s200 + $0x1d88] sm:$0xff]
        %v1194 = vld [vmem:[%s200 + $0x1d90] sm:$0xff]
        %v1195 = vld [vmem:[%s200 + $0x1d98] sm:$0xff]
        %v1196 = vld [vmem:[%s200 + $0x1da0] sm:$0xff]
        %v1197 = vld [vmem:[%s200 + $0x1da8] sm:$0xff]
        %v1198 = vld [vmem:[%s200 + $0x1db0] sm:$0xff]
        %v1199 = vld [vmem:[%s200 + $0x1db8] sm:$0xff]
        %v1200 = vld [vmem:[%s200 + $0x1dc0] sm:$0xff]
        %v1201 = vld [vmem:[%s200 + $0x1dc8] sm:$0xff]
        %v1202 = vld [vmem:[%s200 + $0x1dd0] sm:$0xff]
        %v1203 = vld [vmem:[%s200 + $0x1dd8] sm:$0xff]
        %v1204 = vld [vmem:[%s200 + $0x1de0] sm:$0xff]
        %v1205 = vld [vmem:[%s200 + $0x1de8] sm:$0xff]
        %v1206 = vld [vmem:[%s200 + $0x1df0] sm:$0xff]
        %v1207 = vld [vmem:[%s200 + $0x1df8] sm:$0xff]
        %v1208 = vld [vmem:[%s200 + $0x1e00] sm:$0xff]
        %v1209 = vld [vmem:[%s200 + $0x1e08] sm:$0xff]
        %v1210 = vld [vmem:[%s200 + $0x1e10] sm:$0xff]
        %v1211 = vld [vmem:[%s200 + $0x1e18] sm:$0xff]
        %v1212 = vld [vmem:[%s200 + $0x1e20] sm:$0xff]
        %v1213 = vld [vmem:[%s200 + $0x1e28] sm:$0xff]
        %v1214 = vld [vmem:[%s200 + $0x1e30] sm:$0xff]
        %v1215 = vld [vmem:[%s200 + $0x1e38] sm:$0xff]
        %v1216 = vld [vmem:[%s200 + $0x1e40] sm:$0xff]
        %v1217 = vld [vmem:[%s200 + $0x1e48] sm:$0xff]
        %v1218 = vld [vmem:[%s200 + $0x1e50] sm:$0xff]
        %v1219 = vld [vmem:[%s200 + $0x1e58] sm:$0xff]
        %v1220 = vld [vmem:[%s200 + $0x1e60] sm:$0xff]
        %v1221 = vld [vmem:[%s200 + $0x1e68] sm:$0xff]
        %v1222 = vld [vmem:[%s200 + $0x1e70] sm:$0xff]
        %v1223 = vld [vmem:[%s200 + $0x1e78] sm:$0xff]
        %v1224 = vld [vmem:[%s200 + $0x1e80] sm:$0xff]
        %v1225 = vld [vmem:[%s200 + $0x1e88] sm:$0xff]
        %v1226 = vld [vmem:[%s200 + $0x1e90] sm:$0xff]
        %v1227 = vld [vmem:[%s200 + $0x1e98] sm:$0xff]
        %v1228 = vld [vmem:[%s200 + $0x1ea0] sm:$0xff]
        %v1229 = vld [vmem:[%s200 + $0x1ea8] sm:$0xff]
        %v1230 = vld [vmem:[%s200 + $0x1eb0] sm:$0xff]
        %v1231 = vld [vmem:[%s200 + $0x1eb8] sm:$0xff]
        %v1232 = vld [vmem:[%s200 + $0x1ec0] sm:$0xff]
        %v1233 = vld [vmem:[%s200 + $0x1ec8] sm:$0xff]
        %v1234 = vld [vmem:[%s200 + $0x1ed0] sm:$0xff]
        %v1235 = vld [vmem:[%s200 + $0x1ed8] sm:$0xff]
        %v1236 = vld [vmem:[%s200 + $0x1ee0] sm:$0xff]
        %v1237 = vld [vmem:[%s200 + $0x1ee8] sm:$0xff]
        %v1238 = vld [vmem:[%s200 + $0x1ef0] sm:$0xff]
        %v1239 = vld [vmem:[%s200 + $0x1ef8] sm:$0xff]
        %v1240 = vld [vmem:[%s200 + $0x1f00] sm:$0xff]
        %v1241 = vld [vmem:[%s200 + $0x1f08] sm:$0xff]
        %v1242 = vld [vmem:[%s200 + $0x1f10] sm:$0xff]
        %v1243 = vld [vmem:[%s200 + $0x1f18] sm:$0xff]
        %v1244 = vld [vmem:[%s200 + $0x1f20] sm:$0xff]
        %v1245 = vld [vmem:[%s200 + $0x1f28] sm:$0xff]
        %v1246 = vld [vmem:[%s200 + $0x1f30] sm:$0xff]
        %v1247 = vld [vmem:[%s200 + $0x1f38] sm:$0xff]
        %v1248 = vld [vmem:[%s200 + $0x1f40] sm:$0xff]
        %v1249 = vld [vmem:[%s200 + $0x1f48] sm:$0xff]
        %v1250 = vld [vmem:[%s200 + $0x1f50] sm:$0xff]
        %v1251 = vld [vmem:[%s200 + $0x1f58] sm:$0xff]
        %v1252 = vld [vmem:[%s200 + $0x1f60] sm:$0xff]
        %v1253 = vld [vmem:[%s200 + $0x1f68] sm:$0xff]
        %v1254 = vld [vmem:[%s200 + $0x1f70] sm:$0xff]
        %v1255 = vld [vmem:[%s200 + $0x1f78] sm:$0xff]
        %v1256 = vld [vmem:[%s200 + $0x1f80] sm:$0xff]
        %v1257 = vld [vmem:[%s200 + $0x1f88] sm:$0xff]
        %v1258 = vld [vmem:[%s200 + $0x1f90] sm:$0xff]
        %v1259 = vld [vmem:[%s200 + $0x1f98] sm:$0xff]
        %v1260 = vld [vmem:[%s200 + $0x1fa0] sm:$0xff]
        %v1261 = vld [vmem:[%s200 + $0x1fa8] sm:$0xff]
        %v1262 = vld [vmem:[%s200 + $0x1fb0] sm:$0xff]
        %v1263 = vld [vmem:[%s200 + $0x1fb8] sm:$0xff]
        %v1264 = vld [vmem:[%s200 + $0x1fc0] sm:$0xff]
        %v1265 = vld [vmem:[%s200 + $0x1fc8] sm:$0xff]
        %v1266 = vld [vmem:[%s200 + $0x1fd0] sm:$0xff]
        %v1267 = vld [vmem:[%s200 + $0x1fd8] sm:$0xff]
        %v1268 = vld [vmem:[%s200 + $0x1fe0] sm:$0xff]
        %v1269 = vld [vmem:[%s200 + $0x1fe8] sm:$0xff]
        %v1270 = vld [vmem:[%s200 + $0x1ff0] sm:$0xff]
        %v1271 = vld [vmem:[%s200 + $0x1ff8] sm:$0xff]
        %v1272 = vld [vmem:[%s210] sm:$0xff]
        %v1273 = vld [vmem:[%s210 + $0x8] sm:$0xff]
        %v1274 = vld [vmem:[%s210 + $0x10] sm:$0xff]
        %v1275 = vld [vmem:[%s210 + $0x18] sm:$0xff]
        %v1280 = vperm.slane %v1272, 0
        %v1281 = vperm.slane %v1272, 1
        %v1282 = vperm.slane %v1272, 2
        %v1283 = vperm.slane %v1272, 3
        %v1284 = vperm.slane %v1272, 4
        %v1285 = vperm.slane %v1272, 5
        %v1286 = vperm.slane %v1272, 6
        %v1287 = vperm.slane %v1272, 7
        %v1288 = vperm.slane %v1273, 0
        %v1289 = vperm.slane %v1273, 1
        %v1290 = vperm.slane %v1273, 2
        %v1291 = vperm.slane %v1273, 3
        %v1292 = vperm.slane %v1273, 4
        %v1293 = vperm.slane %v1273, 5
        %v1294 = vperm.slane %v1273, 6
        %v1295 = vperm.slane %v1273, 7
        %v1296 = vperm.slane %v1274, 0
        %v1297 = vperm.slane %v1274, 1
        %v1298 = vperm.slane %v1274, 2
        %v1299 = vperm.slane %v1274, 3
        %v1300 = vperm.slane %v1274, 4
        %v1301 = vperm.slane %v1274, 5
        %v1302 = vperm.slane %v1274, 6
        %v1303 = vperm.slane %v1274, 7
        %v1304 = vperm.slane %v1275, 0
        %v1305 = vperm.slane %v1275, 1
        %v1306 = vperm.slane %v1275, 2
        %v1307 = vperm.slane %v1275, 3
        %v1308 = vperm.slane %v1275, 4
        %v1309 = vperm.slane %v1275, 5
        %v1310 = vperm.slane %v1275, 6
        %v1311 = vperm.slane %v1275, 7
        %1345 = vst [vmem:[#allocation1] ss:$4 sm:$0xff] %v247
        %v1346 = vld.sshfl [vmem:[#allocation1] sm:$0xff pattern:$0x73625140]
        %v1347 = vld.sshfl [vmem:[#allocation1 + $0x8] sm:$0xff pattern:$0x73625140]
        %1350 = vmatpush.msra.mxu0 %v728
        %1351 = vmatpush.msra.mxu0 %v696
        %1352 = vmatpush.msra.mxu0 %v664
        %1353 = vmatpush.msra.mxu0 %v632
        %1354 = vmatpush.msra.mxu0 %v600
        %1355 = vmatpush.msra.mxu0 %v568
        %1356 = vmatpush.msra.mxu0 %v536
        %1357 = vmatpush.msra.mxu0 %v504
        %1358 = vmatpush.msra.mxu0 %v472
        %1359 = vmatpush.msra.mxu0 %v440
        %1360 = vmatpush.msra.mxu0 %v408
        %1361 = vmatpush.msra.mxu0 %v376
        %1362 = vmatpush.msra.mxu0 %v344
        %1363 = vmatpush.msra.mxu0 %v312
        %1364 = vmatpush.msra.mxu0 %v280
        %1365 = vmatpush.msra.mxu0 %v248
        %1366 = vmatmul.f32.gmra.mxu0 %v1346
        %v1367 = vpop.f32.mrf.mxu0
        %v1368 = vadd.f32 %v1280, %v1367
        %1369 = vdwg.mxu0
        %1370 = vmatpush.msra.mxu0 %v1240
        %1371 = vmatpush.msra.mxu0 %v1208
        %1372 = vmatpush.msra.mxu0 %v1176
        %1373 = vmatpush.msra.mxu0 %v1144
        %1374 = vmatpush.msra.mxu0 %v1112
        %1375 = vmatpush.msra.mxu0 %v1080
        %1376 = vmatpush.msra.mxu0 %v1048
        %1377 = vmatpush.msra.mxu0 %v1016
        %1378 = vmatpush.msra.mxu0 %v984
        %1379 = vmatpush.msra.mxu0 %v952
        %1380 = vmatpush.msra.mxu0 %v920
        %1381 = vmatpush.msra.mxu0 %v888
        %1382 = vmatpush.msra.mxu0 %v856
        %1383 = vmatpush.msra.mxu0 %v824
        %1384 = vmatpush.msra.mxu0 %v792
        %1385 = vmatpush.msra.mxu0 %v760
        %1386 = vmatmul.f32.gmra.mxu0 %v1347
        %v1387 = vpop.f32.mrf.mxu0
        %v1388 = vadd.f32 %v1368, %v1387
        %1389 = vdwg.mxu0
        %1390 = vmatpush.msra.mxu0 %v729
        %1391 = vmatpush.msra.mxu0 %v697
        %1392 = vmatpush.msra.mxu0 %v665
        %1393 = vmatpush.msra.mxu0 %v633
        %1394 = vmatpush.msra.mxu0 %v601
        %1395 = vmatpush.msra.mxu0 %v569
        %1396 = vmatpush.msra.mxu0 %v537
        %1397 = vmatpush.msra.mxu0 %v505
        %1398 = vmatpush.msra.mxu0 %v473
        %1399 = vmatpush.msra.mxu0 %v441
        %1400 = vmatpush.msra.mxu0 %v409
        %1401 = vmatpush.msra.mxu0 %v377
        %1402 = vmatpush.msra.mxu0 %v345
        %1403 = vmatpush.msra.mxu0 %v313
        %1404 = vmatpush.msra.mxu0 %v281
        %1405 = vmatpush.msra.mxu0 %v249
        %1406 = vmatmul.f32.gmra.mxu0 %v1346
        %v1407 = vpop.f32.mrf.mxu0
        %v1408 = vadd.f32 %v1281, %v1407
        %1409 = vdwg.mxu0
        %1410 = vmatpush.msra.mxu0 %v1241
        %1411 = vmatpush.msra.mxu0 %v1209
        %1412 = vmatpush.msra.mxu0 %v1177
        %1413 = vmatpush.msra.mxu0 %v1145
        %1414 = vmatpush.msra.mxu0 %v1113
        %1415 = vmatpush.msra.mxu0 %v1081
        %1416 = vmatpush.msra.mxu0 %v1049
        %1417 = vmatpush.msra.mxu0 %v1017
        %1418 = vmatpush.msra.mxu0 %v985
        %1419 = vmatpush.msra.mxu0 %v953
        %1420 = vmatpush.msra.mxu0 %v921
        %1421 = vmatpush.msra.mxu0 %v889
        %1422 = vmatpush.msra.mxu0 %v857
        %1423 = vmatpush.msra.mxu0 %v825
        %1424 = vmatpush.msra.mxu0 %v793
        %1425 = vmatpush.msra.mxu0 %v761
        %1426 = vmatmul.f32.gmra.mxu0 %v1347
        %v1427 = vpop.f32.mrf.mxu0
        %v1428 = vadd.f32 %v1408, %v1427
        %1429 = vdwg.mxu0
        %1430 = vmatpush.msra.mxu0 %v730
        %1431 = vmatpush.msra.mxu0 %v698
        %1432 = vmatpush.msra.mxu0 %v666
        %1433 = vmatpush.msra.mxu0 %v634
        %1434 = vmatpush.msra.mxu0 %v602
        %1435 = vmatpush.msra.mxu0 %v570
        %1436 = vmatpush.msra.mxu0 %v538
        %1437 = vmatpush.msra.mxu0 %v506
        %1438 = vmatpush.msra.mxu0 %v474
        %1439 = vmatpush.msra.mxu0 %v442
        %1440 = vmatpush.msra.mxu0 %v410
        %1441 = vmatpush.msra.mxu0 %v378
        %1442 = vmatpush.msra.mxu0 %v346
        %1443 = vmatpush.msra.mxu0 %v314
        %1444 = vmatpush.msra.mxu0 %v282
        %1445 = vmatpush.msra.mxu0 %v250
        %1446 = vmatmul.f32.gmra.mxu0 %v1346
        %v1447 = vpop.f32.mrf.mxu0
        %v1448 = vadd.f32 %v1282, %v1447
        %1449 = vdwg.mxu0
        %1450 = vmatpush.msra.mxu0 %v1242
        %1451 = vmatpush.msra.mxu0 %v1210
        %1452 = vmatpush.msra.mxu0 %v1178
        %1453 = vmatpush.msra.mxu0 %v1146
        %1454 = vmatpush.msra.mxu0 %v1114
        %1455 = vmatpush.msra.mxu0 %v1082
        %1456 = vmatpush.msra.mxu0 %v1050
        %1457 = vmatpush.msra.mxu0 %v1018
        %1458 = vmatpush.msra.mxu0 %v986
        %1459 = vmatpush.msra.mxu0 %v954
        %1460 = vmatpush.msra.mxu0 %v922
        %1461 = vmatpush.msra.mxu0 %v890
        %1462 = vmatpush.msra.mxu0 %v858
        %1463 = vmatpush.msra.mxu0 %v826
        %1464 = vmatpush.msra.mxu0 %v794
        %1465 = vmatpush.msra.mxu0 %v762
        %1466 = vmatmul.f32.gmra.mxu0 %v1347
        %v1467 = vpop.f32.mrf.mxu0
        %v1468 = vadd.f32 %v1448, %v1467
        %1469 = vdwg.mxu0
        %1470 = vmatpush.msra.mxu0 %v731
        %1471 = vmatpush.msra.mxu0 %v699
        %1472 = vmatpush.msra.mxu0 %v667
        %1473 = vmatpush.msra.mxu0 %v635
        %1474 = vmatpush.msra.mxu0 %v603
        %1475 = vmatpush.msra.mxu0 %v571
        %1476 = vmatpush.msra.mxu0 %v539
        %1477 = vmatpush.msra.mxu0 %v507
        %1478 = vmatpush.msra.mxu0 %v475
        %1479 = vmatpush.msra.mxu0 %v443
        %1480 = vmatpush.msra.mxu0 %v411
        %1481 = vmatpush.msra.mxu0 %v379
        %1482 = vmatpush.msra.mxu0 %v347
        %1483 = vmatpush.msra.mxu0 %v315
        %1484 = vmatpush.msra.mxu0 %v283
        %1485 = vmatpush.msra.mxu0 %v251
        %1486 = vmatmul.f32.gmra.mxu0 %v1346
        %v1487 = vpop.f32.mrf.mxu0
        %v1488 = vadd.f32 %v1283, %v1487
        %1489 = vdwg.mxu0
        %1490 = vmatpush.msra.mxu0 %v1243
        %1491 = vmatpush.msra.mxu0 %v1211
        %1492 = vmatpush.msra.mxu0 %v1179
        %1493 = vmatpush.msra.mxu0 %v1147
        %1494 = vmatpush.msra.mxu0 %v1115
        %1495 = vmatpush.msra.mxu0 %v1083
        %1496 = vmatpush.msra.mxu0 %v1051
        %1497 = vmatpush.msra.mxu0 %v1019
        %1498 = vmatpush.msra.mxu0 %v987
        %1499 = vmatpush.msra.mxu0 %v955
        %1500 = vmatpush.msra.mxu0 %v923
        %1501 = vmatpush.msra.mxu0 %v891
        %1502 = vmatpush.msra.mxu0 %v859
        %1503 = vmatpush.msra.mxu0 %v827
        %1504 = vmatpush.msra.mxu0 %v795
        %1505 = vmatpush.msra.mxu0 %v763
        %1506 = vmatmul.f32.gmra.mxu0 %v1347
        %v1507 = vpop.f32.mrf.mxu0
        %v1508 = vadd.f32 %v1488, %v1507
        %1509 = vdwg.mxu0
        %1510 = vmatpush.msra.mxu0 %v732
        %1511 = vmatpush.msra.mxu0 %v700
        %1512 = vmatpush.msra.mxu0 %v668
        %1513 = vmatpush.msra.mxu0 %v636
        %1514 = vmatpush.msra.mxu0 %v604
        %1515 = vmatpush.msra.mxu0 %v572
        %1516 = vmatpush.msra.mxu0 %v540
        %1517 = vmatpush.msra.mxu0 %v508
        %1518 = vmatpush.msra.mxu0 %v476
        %1519 = vmatpush.msra.mxu0 %v444
        %1520 = vmatpush.msra.mxu0 %v412
        %1521 = vmatpush.msra.mxu0 %v380
        %1522 = vmatpush.msra.mxu0 %v348
        %1523 = vmatpush.msra.mxu0 %v316
        %1524 = vmatpush.msra.mxu0 %v284
        %1525 = vmatpush.msra.mxu0 %v252
        %1526 = vmatmul.f32.gmra.mxu0 %v1346
        %v1527 = vpop.f32.mrf.mxu0
        %v1528 = vadd.f32 %v1284, %v1527
        %1529 = vdwg.mxu0
        %1530 = vmatpush.msra.mxu0 %v1244
        %1531 = vmatpush.msra.mxu0 %v1212
        %1532 = vmatpush.msra.mxu0 %v1180
        %1533 = vmatpush.msra.mxu0 %v1148
        %1534 = vmatpush.msra.mxu0 %v1116
        %1535 = vmatpush.msra.mxu0 %v1084
        %1536 = vmatpush.msra.mxu0 %v1052
        %1537 = vmatpush.msra.mxu0 %v1020
        %1538 = vmatpush.msra.mxu0 %v988
        %1539 = vmatpush.msra.mxu0 %v956
        %1540 = vmatpush.msra.mxu0 %v924
        %1541 = vmatpush.msra.mxu0 %v892
        %1542 = vmatpush.msra.mxu0 %v860
        %1543 = vmatpush.msra.mxu0 %v828
        %1544 = vmatpush.msra.mxu0 %v796
        %1545 = vmatpush.msra.mxu0 %v764
        %1546 = vmatmul.f32.gmra.mxu0 %v1347
        %v1547 = vpop.f32.mrf.mxu0
        %v1548 = vadd.f32 %v1528, %v1547
        %1549 = vdwg.mxu0
        %1550 = vmatpush.msra.mxu0 %v733
        %1551 = vmatpush.msra.mxu0 %v701
        %1552 = vmatpush.msra.mxu0 %v669
        %1553 = vmatpush.msra.mxu0 %v637
        %1554 = vmatpush.msra.mxu0 %v605
        %1555 = vmatpush.msra.mxu0 %v573
        %1556 = vmatpush.msra.mxu0 %v541
        %1557 = vmatpush.msra.mxu0 %v509
        %1558 = vmatpush.msra.mxu0 %v477
        %1559 = vmatpush.msra.mxu0 %v445
        %1560 = vmatpush.msra.mxu0 %v413
        %1561 = vmatpush.msra.mxu0 %v381
        %1562 = vmatpush.msra.mxu0 %v349
        %1563 = vmatpush.msra.mxu0 %v317
        %1564 = vmatpush.msra.mxu0 %v285
        %1565 = vmatpush.msra.mxu0 %v253
        %1566 = vmatmul.f32.gmra.mxu0 %v1346
        %v1567 = vpop.f32.mrf.mxu0
        %v1568 = vadd.f32 %v1285, %v1567
        %1569 = vdwg.mxu0
        %1570 = vmatpush.msra.mxu0 %v1245
        %1571 = vmatpush.msra.mxu0 %v1213
        %1572 = vmatpush.msra.mxu0 %v1181
        %1573 = vmatpush.msra.mxu0 %v1149
        %1574 = vmatpush.msra.mxu0 %v1117
        %1575 = vmatpush.msra.mxu0 %v1085
        %1576 = vmatpush.msra.mxu0 %v1053
        %1577 = vmatpush.msra.mxu0 %v1021
        %1578 = vmatpush.msra.mxu0 %v989
        %1579 = vmatpush.msra.mxu0 %v957
        %1580 = vmatpush.msra.mxu0 %v925
        %1581 = vmatpush.msra.mxu0 %v893
        %1582 = vmatpush.msra.mxu0 %v861
        %1583 = vmatpush.msra.mxu0 %v829
        %1584 = vmatpush.msra.mxu0 %v797
        %1585 = vmatpush.msra.mxu0 %v765
        %1586 = vmatmul.f32.gmra.mxu0 %v1347
        %v1587 = vpop.f32.mrf.mxu0
        %v1588 = vadd.f32 %v1568, %v1587
        %1589 = vdwg.mxu0
        %1590 = vmatpush.msra.mxu0 %v734
        %1591 = vmatpush.msra.mxu0 %v702
        %1592 = vmatpush.msra.mxu0 %v670
        %1593 = vmatpush.msra.mxu0 %v638
        %1594 = vmatpush.msra.mxu0 %v606
        %1595 = vmatpush.msra.mxu0 %v574
        %1596 = vmatpush.msra.mxu0 %v542
        %1597 = vmatpush.msra.mxu0 %v510
        %1598 = vmatpush.msra.mxu0 %v478
        %1599 = vmatpush.msra.mxu0 %v446
        %1600 = vmatpush.msra.mxu0 %v414
        %1601 = vmatpush.msra.mxu0 %v382
        %1602 = vmatpush.msra.mxu0 %v350
        %1603 = vmatpush.msra.mxu0 %v318
        %1604 = vmatpush.msra.mxu0 %v286
        %1605 = vmatpush.msra.mxu0 %v254
        %1606 = vmatmul.f32.gmra.mxu0 %v1346
        %v1607 = vpop.f32.mrf.mxu0
        %v1608 = vadd.f32 %v1286, %v1607
        %1609 = vdwg.mxu0
        %1610 = vmatpush.msra.mxu0 %v1246
        %1611 = vmatpush.msra.mxu0 %v1214
        %1612 = vmatpush.msra.mxu0 %v1182
        %1613 = vmatpush.msra.mxu0 %v1150
        %1614 = vmatpush.msra.mxu0 %v1118
        %1615 = vmatpush.msra.mxu0 %v1086
        %1616 = vmatpush.msra.mxu0 %v1054
        %1617 = vmatpush.msra.mxu0 %v1022
        %1618 = vmatpush.msra.mxu0 %v990
        %1619 = vmatpush.msra.mxu0 %v958
        %1620 = vmatpush.msra.mxu0 %v926
        %1621 = vmatpush.msra.mxu0 %v894
        %1622 = vmatpush.msra.mxu0 %v862
        %1623 = vmatpush.msra.mxu0 %v830
        %1624 = vmatpush.msra.mxu0 %v798
        %1625 = vmatpush.msra.mxu0 %v766
        %1626 = vmatmul.f32.gmra.mxu0 %v1347
        %v1627 = vpop.f32.mrf.mxu0
        %v1628 = vadd.f32 %v1608, %v1627
        %1629 = vdwg.mxu0
        %1630 = vmatpush.msra.mxu0 %v735
        %1631 = vmatpush.msra.mxu0 %v703
        %1632 = vmatpush.msra.mxu0 %v671
        %1633 = vmatpush.msra.mxu0 %v639
        %1634 = vmatpush.msra.mxu0 %v607
        %1635 = vmatpush.msra.mxu0 %v575
        %1636 = vmatpush.msra.mxu0 %v543
        %1637 = vmatpush.msra.mxu0 %v511
        %1638 = vmatpush.msra.mxu0 %v479
        %1639 = vmatpush.msra.mxu0 %v447
        %1640 = vmatpush.msra.mxu0 %v415
        %1641 = vmatpush.msra.mxu0 %v383
        %1642 = vmatpush.msra.mxu0 %v351
        %1643 = vmatpush.msra.mxu0 %v319
        %1644 = vmatpush.msra.mxu0 %v287
        %1645 = vmatpush.msra.mxu0 %v255
        %1646 = vmatmul.f32.gmra.mxu0 %v1346
        %v1647 = vpop.f32.mrf.mxu0
        %v1648 = vadd.f32 %v1287, %v1647
        %1649 = vdwg.mxu0
        %1650 = vmatpush.msra.mxu0 %v1247
        %1651 = vmatpush.msra.mxu0 %v1215
        %1652 = vmatpush.msra.mxu0 %v1183
        %1653 = vmatpush.msra.mxu0 %v1151
        %1654 = vmatpush.msra.mxu0 %v1119
        %1655 = vmatpush.msra.mxu0 %v1087
        %1656 = vmatpush.msra.mxu0 %v1055
        %1657 = vmatpush.msra.mxu0 %v1023
        %1658 = vmatpush.msra.mxu0 %v991
        %1659 = vmatpush.msra.mxu0 %v959
        %1660 = vmatpush.msra.mxu0 %v927
        %1661 = vmatpush.msra.mxu0 %v895
        %1662 = vmatpush.msra.mxu0 %v863
        %1663 = vmatpush.msra.mxu0 %v831
        %1664 = vmatpush.msra.mxu0 %v799
        %1665 = vmatpush.msra.mxu0 %v767
        %1666 = vmatmul.f32.gmra.mxu0 %v1347
        %v1667 = vpop.f32.mrf.mxu0
        %v1668 = vadd.f32 %v1648, %v1667
        %1669 = vdwg.mxu0
        %1670 = vmatpush.msra.mxu0 %v736
        %1671 = vmatpush.msra.mxu0 %v704
        %1672 = vmatpush.msra.mxu0 %v672
        %1673 = vmatpush.msra.mxu0 %v640
        %1674 = vmatpush.msra.mxu0 %v608
        %1675 = vmatpush.msra.mxu0 %v576
        %1676 = vmatpush.msra.mxu0 %v544
        %1677 = vmatpush.msra.mxu0 %v512
        %1678 = vmatpush.msra.mxu0 %v480
        %1679 = vmatpush.msra.mxu0 %v448
        %1680 = vmatpush.msra.mxu0 %v416
        %1681 = vmatpush.msra.mxu0 %v384
        %1682 = vmatpush.msra.mxu0 %v352
        %1683 = vmatpush.msra.mxu0 %v320
        %1684 = vmatpush.msra.mxu0 %v288
        %1685 = vmatpush.msra.mxu0 %v256
        %1686 = vmatmul.f32.gmra.mxu0 %v1346
        %v1687 = vpop.f32.mrf.mxu0
        %v1688 = vadd.f32 %v1288, %v1687
        %1689 = vdwg.mxu0
        %1690 = vmatpush.msra.mxu0 %v1248
        %1691 = vmatpush.msra.mxu0 %v1216
        %1692 = vmatpush.msra.mxu0 %v1184
        %1693 = vmatpush.msra.mxu0 %v1152
        %1694 = vmatpush.msra.mxu0 %v1120
        %1695 = vmatpush.msra.mxu0 %v1088
        %1696 = vmatpush.msra.mxu0 %v1056
        %1697 = vmatpush.msra.mxu0 %v1024
        %1698 = vmatpush.msra.mxu0 %v992
        %1699 = vmatpush.msra.mxu0 %v960
        %1700 = vmatpush.msra.mxu0 %v928
        %1701 = vmatpush.msra.mxu0 %v896
        %1702 = vmatpush.msra.mxu0 %v864
        %1703 = vmatpush.msra.mxu0 %v832
        %1704 = vmatpush.msra.mxu0 %v800
        %1705 = vmatpush.msra.mxu0 %v768
        %1706 = vmatmul.f32.gmra.mxu0 %v1347
        %v1707 = vpop.f32.mrf.mxu0
        %v1708 = vadd.f32 %v1688, %v1707
        %1709 = vdwg.mxu0
        %1710 = vmatpush.msra.mxu0 %v737
        %1711 = vmatpush.msra.mxu0 %v705
        %1712 = vmatpush.msra.mxu0 %v673
        %1713 = vmatpush.msra.mxu0 %v641
        %1714 = vmatpush.msra.mxu0 %v609
        %1715 = vmatpush.msra.mxu0 %v577
        %1716 = vmatpush.msra.mxu0 %v545
        %1717 = vmatpush.msra.mxu0 %v513
        %1718 = vmatpush.msra.mxu0 %v481
        %1719 = vmatpush.msra.mxu0 %v449
        %1720 = vmatpush.msra.mxu0 %v417
        %1721 = vmatpush.msra.mxu0 %v385
        %1722 = vmatpush.msra.mxu0 %v353
        %1723 = vmatpush.msra.mxu0 %v321
        %1724 = vmatpush.msra.mxu0 %v289
        %1725 = vmatpush.msra.mxu0 %v257
        %1726 = vmatmul.f32.gmra.mxu0 %v1346
        %v1727 = vpop.f32.mrf.mxu0
        %v1728 = vadd.f32 %v1289, %v1727
        %1729 = vdwg.mxu0
        %1730 = vmatpush.msra.mxu0 %v1249
        %1731 = vmatpush.msra.mxu0 %v1217
        %1732 = vmatpush.msra.mxu0 %v1185
        %1733 = vmatpush.msra.mxu0 %v1153
        %1734 = vmatpush.msra.mxu0 %v1121
        %1735 = vmatpush.msra.mxu0 %v1089
        %1736 = vmatpush.msra.mxu0 %v1057
        %1737 = vmatpush.msra.mxu0 %v1025
        %1738 = vmatpush.msra.mxu0 %v993
        %1739 = vmatpush.msra.mxu0 %v961
        %1740 = vmatpush.msra.mxu0 %v929
        %1741 = vmatpush.msra.mxu0 %v897
        %1742 = vmatpush.msra.mxu0 %v865
        %1743 = vmatpush.msra.mxu0 %v833
        %1744 = vmatpush.msra.mxu0 %v801
        %1745 = vmatpush.msra.mxu0 %v769
        %1746 = vmatmul.f32.gmra.mxu0 %v1347
        %v1747 = vpop.f32.mrf.mxu0
        %v1748 = vadd.f32 %v1728, %v1747
        %1749 = vdwg.mxu0
        %1750 = vmatpush.msra.mxu0 %v738
        %1751 = vmatpush.msra.mxu0 %v706
        %1752 = vmatpush.msra.mxu0 %v674
        %1753 = vmatpush.msra.mxu0 %v642
        %1754 = vmatpush.msra.mxu0 %v610
        %1755 = vmatpush.msra.mxu0 %v578
        %1756 = vmatpush.msra.mxu0 %v546
        %1757 = vmatpush.msra.mxu0 %v514
        %1758 = vmatpush.msra.mxu0 %v482
        %1759 = vmatpush.msra.mxu0 %v450
        %1760 = vmatpush.msra.mxu0 %v418
        %1761 = vmatpush.msra.mxu0 %v386
        %1762 = vmatpush.msra.mxu0 %v354
        %1763 = vmatpush.msra.mxu0 %v322
        %1764 = vmatpush.msra.mxu0 %v290
        %1765 = vmatpush.msra.mxu0 %v258
        %1766 = vmatmul.f32.gmra.mxu0 %v1346
        %v1767 = vpop.f32.mrf.mxu0
        %v1768 = vadd.f32 %v1290, %v1767
        %1769 = vdwg.mxu0
        %1770 = vmatpush.msra.mxu0 %v1250
        %1771 = vmatpush.msra.mxu0 %v1218
        %1772 = vmatpush.msra.mxu0 %v1186
        %1773 = vmatpush.msra.mxu0 %v1154
        %1774 = vmatpush.msra.mxu0 %v1122
        %1775 = vmatpush.msra.mxu0 %v1090
        %1776 = vmatpush.msra.mxu0 %v1058
        %1777 = vmatpush.msra.mxu0 %v1026
        %1778 = vmatpush.msra.mxu0 %v994
        %1779 = vmatpush.msra.mxu0 %v962
        %1780 = vmatpush.msra.mxu0 %v930
        %1781 = vmatpush.msra.mxu0 %v898
        %1782 = vmatpush.msra.mxu0 %v866
        %1783 = vmatpush.msra.mxu0 %v834
        %1784 = vmatpush.msra.mxu0 %v802
        %1785 = vmatpush.msra.mxu0 %v770
        %1786 = vmatmul.f32.gmra.mxu0 %v1347
        %v1787 = vpop.f32.mrf.mxu0
        %v1788 = vadd.f32 %v1768, %v1787
        %1789 = vdwg.mxu0
        %1790 = vmatpush.msra.mxu0 %v739
        %1791 = vmatpush.msra.mxu0 %v707
        %1792 = vmatpush.msra.mxu0 %v675
        %1793 = vmatpush.msra.mxu0 %v643
        %1794 = vmatpush.msra.mxu0 %v611
        %1795 = vmatpush.msra.mxu0 %v579
        %1796 = vmatpush.msra.mxu0 %v547
        %1797 = vmatpush.msra.mxu0 %v515
        %1798 = vmatpush.msra.mxu0 %v483
        %1799 = vmatpush.msra.mxu0 %v451
        %1800 = vmatpush.msra.mxu0 %v419
        %1801 = vmatpush.msra.mxu0 %v387
        %1802 = vmatpush.msra.mxu0 %v355
        %1803 = vmatpush.msra.mxu0 %v323
        %1804 = vmatpush.msra.mxu0 %v291
        %1805 = vmatpush.msra.mxu0 %v259
        %1806 = vmatmul.f32.gmra.mxu0 %v1346
        %v1807 = vpop.f32.mrf.mxu0
        %v1808 = vadd.f32 %v1291, %v1807
        %1809 = vdwg.mxu0
        %1810 = vmatpush.msra.mxu0 %v1251
        %1811 = vmatpush.msra.mxu0 %v1219
        %1812 = vmatpush.msra.mxu0 %v1187
        %1813 = vmatpush.msra.mxu0 %v1155
        %1814 = vmatpush.msra.mxu0 %v1123
        %1815 = vmatpush.msra.mxu0 %v1091
        %1816 = vmatpush.msra.mxu0 %v1059
        %1817 = vmatpush.msra.mxu0 %v1027
        %1818 = vmatpush.msra.mxu0 %v995
        %1819 = vmatpush.msra.mxu0 %v963
        %1820 = vmatpush.msra.mxu0 %v931
        %1821 = vmatpush.msra.mxu0 %v899
        %1822 = vmatpush.msra.mxu0 %v867
        %1823 = vmatpush.msra.mxu0 %v835
        %1824 = vmatpush.msra.mxu0 %v803
        %1825 = vmatpush.msra.mxu0 %v771
        %1826 = vmatmul.f32.gmra.mxu0 %v1347
        %v1827 = vpop.f32.mrf.mxu0
        %v1828 = vadd.f32 %v1808, %v1827
        %1829 = vdwg.mxu0
        %1830 = vmatpush.msra.mxu0 %v740
        %1831 = vmatpush.msra.mxu0 %v708
        %1832 = vmatpush.msra.mxu0 %v676
        %1833 = vmatpush.msra.mxu0 %v644
        %1834 = vmatpush.msra.mxu0 %v612
        %1835 = vmatpush.msra.mxu0 %v580
        %1836 = vmatpush.msra.mxu0 %v548
        %1837 = vmatpush.msra.mxu0 %v516
        %1838 = vmatpush.msra.mxu0 %v484
        %1839 = vmatpush.msra.mxu0 %v452
        %1840 = vmatpush.msra.mxu0 %v420
        %1841 = vmatpush.msra.mxu0 %v388
        %1842 = vmatpush.msra.mxu0 %v356
        %1843 = vmatpush.msra.mxu0 %v324
        %1844 = vmatpush.msra.mxu0 %v292
        %1845 = vmatpush.msra.mxu0 %v260
        %1846 = vmatmul.f32.gmra.mxu0 %v1346
        %v1847 = vpop.f32.mrf.mxu0
        %v1848 = vadd.f32 %v1292, %v1847
        %1849 = vdwg.mxu0
        %1850 = vmatpush.msra.mxu0 %v1252
        %1851 = vmatpush.msra.mxu0 %v1220
        %1852 = vmatpush.msra.mxu0 %v1188
        %1853 = vmatpush.msra.mxu0 %v1156
        %1854 = vmatpush.msra.mxu0 %v1124
        %1855 = vmatpush.msra.mxu0 %v1092
        %1856 = vmatpush.msra.mxu0 %v1060
        %1857 = vmatpush.msra.mxu0 %v1028
        %1858 = vmatpush.msra.mxu0 %v996
        %1859 = vmatpush.msra.mxu0 %v964
        %1860 = vmatpush.msra.mxu0 %v932
        %1861 = vmatpush.msra.mxu0 %v900
        %1862 = vmatpush.msra.mxu0 %v868
        %1863 = vmatpush.msra.mxu0 %v836
        %1864 = vmatpush.msra.mxu0 %v804
        %1865 = vmatpush.msra.mxu0 %v772
        %1866 = vmatmul.f32.gmra.mxu0 %v1347
        %v1867 = vpop.f32.mrf.mxu0
        %v1868 = vadd.f32 %v1848, %v1867
        %1869 = vdwg.mxu0
        %1870 = vmatpush.msra.mxu0 %v741
        %1871 = vmatpush.msra.mxu0 %v709
        %1872 = vmatpush.msra.mxu0 %v677
        %1873 = vmatpush.msra.mxu0 %v645
        %1874 = vmatpush.msra.mxu0 %v613
        %1875 = vmatpush.msra.mxu0 %v581
        %1876 = vmatpush.msra.mxu0 %v549
        %1877 = vmatpush.msra.mxu0 %v517
        %1878 = vmatpush.msra.mxu0 %v485
        %1879 = vmatpush.msra.mxu0 %v453
        %1880 = vmatpush.msra.mxu0 %v421
        %1881 = vmatpush.msra.mxu0 %v389
        %1882 = vmatpush.msra.mxu0 %v357
        %1883 = vmatpush.msra.mxu0 %v325
        %1884 = vmatpush.msra.mxu0 %v293
        %1885 = vmatpush.msra.mxu0 %v261
        %1886 = vmatmul.f32.gmra.mxu0 %v1346
        %v1887 = vpop.f32.mrf.mxu0
        %v1888 = vadd.f32 %v1293, %v1887
        %1889 = vdwg.mxu0
        %1890 = vmatpush.msra.mxu0 %v1253
        %1891 = vmatpush.msra.mxu0 %v1221
        %1892 = vmatpush.msra.mxu0 %v1189
        %1893 = vmatpush.msra.mxu0 %v1157
        %1894 = vmatpush.msra.mxu0 %v1125
        %1895 = vmatpush.msra.mxu0 %v1093
        %1896 = vmatpush.msra.mxu0 %v1061
        %1897 = vmatpush.msra.mxu0 %v1029
        %1898 = vmatpush.msra.mxu0 %v997
        %1899 = vmatpush.msra.mxu0 %v965
        %1900 = vmatpush.msra.mxu0 %v933
        %1901 = vmatpush.msra.mxu0 %v901
        %1902 = vmatpush.msra.mxu0 %v869
        %1903 = vmatpush.msra.mxu0 %v837
        %1904 = vmatpush.msra.mxu0 %v805
        %1905 = vmatpush.msra.mxu0 %v773
        %1906 = vmatmul.f32.gmra.mxu0 %v1347
        %v1907 = vpop.f32.mrf.mxu0
        %v1908 = vadd.f32 %v1888, %v1907
        %1909 = vdwg.mxu0
        %1910 = vmatpush.msra.mxu0 %v742
        %1911 = vmatpush.msra.mxu0 %v710
        %1912 = vmatpush.msra.mxu0 %v678
        %1913 = vmatpush.msra.mxu0 %v646
        %1914 = vmatpush.msra.mxu0 %v614
        %1915 = vmatpush.msra.mxu0 %v582
        %1916 = vmatpush.msra.mxu0 %v550
        %1917 = vmatpush.msra.mxu0 %v518
        %1918 = vmatpush.msra.mxu0 %v486
        %1919 = vmatpush.msra.mxu0 %v454
        %1920 = vmatpush.msra.mxu0 %v422
        %1921 = vmatpush.msra.mxu0 %v390
        %1922 = vmatpush.msra.mxu0 %v358
        %1923 = vmatpush.msra.mxu0 %v326
        %1924 = vmatpush.msra.mxu0 %v294
        %1925 = vmatpush.msra.mxu0 %v262
        %1926 = vmatmul.f32.gmra.mxu0 %v1346
        %v1927 = vpop.f32.mrf.mxu0
        %v1928 = vadd.f32 %v1294, %v1927
        %1929 = vdwg.mxu0
        %1930 = vmatpush.msra.mxu0 %v1254
        %1931 = vmatpush.msra.mxu0 %v1222
        %1932 = vmatpush.msra.mxu0 %v1190
        %1933 = vmatpush.msra.mxu0 %v1158
        %1934 = vmatpush.msra.mxu0 %v1126
        %1935 = vmatpush.msra.mxu0 %v1094
        %1936 = vmatpush.msra.mxu0 %v1062
        %1937 = vmatpush.msra.mxu0 %v1030
        %1938 = vmatpush.msra.mxu0 %v998
        %1939 = vmatpush.msra.mxu0 %v966
        %1940 = vmatpush.msra.mxu0 %v934
        %1941 = vmatpush.msra.mxu0 %v902
        %1942 = vmatpush.msra.mxu0 %v870
        %1943 = vmatpush.msra.mxu0 %v838
        %1944 = vmatpush.msra.mxu0 %v806
        %1945 = vmatpush.msra.mxu0 %v774
        %1946 = vmatmul.f32.gmra.mxu0 %v1347
        %v1947 = vpop.f32.mrf.mxu0
        %v1948 = vadd.f32 %v1928, %v1947
        %1949 = vdwg.mxu0
        %1950 = vmatpush.msra.mxu0 %v743
        %1951 = vmatpush.msra.mxu0 %v711
        %1952 = vmatpush.msra.mxu0 %v679
        %1953 = vmatpush.msra.mxu0 %v647
        %1954 = vmatpush.msra.mxu0 %v615
        %1955 = vmatpush.msra.mxu0 %v583
        %1956 = vmatpush.msra.mxu0 %v551
        %1957 = vmatpush.msra.mxu0 %v519
        %1958 = vmatpush.msra.mxu0 %v487
        %1959 = vmatpush.msra.mxu0 %v455
        %1960 = vmatpush.msra.mxu0 %v423
        %1961 = vmatpush.msra.mxu0 %v391
        %1962 = vmatpush.msra.mxu0 %v359
        %1963 = vmatpush.msra.mxu0 %v327
        %1964 = vmatpush.msra.mxu0 %v295
        %1965 = vmatpush.msra.mxu0 %v263
        %1966 = vmatmul.f32.gmra.mxu0 %v1346
        %v1967 = vpop.f32.mrf.mxu0
        %v1968 = vadd.f32 %v1295, %v1967
        %1969 = vdwg.mxu0
        %1970 = vmatpush.msra.mxu0 %v1255
        %1971 = vmatpush.msra.mxu0 %v1223
        %1972 = vmatpush.msra.mxu0 %v1191
        %1973 = vmatpush.msra.mxu0 %v1159
        %1974 = vmatpush.msra.mxu0 %v1127
        %1975 = vmatpush.msra.mxu0 %v1095
        %1976 = vmatpush.msra.mxu0 %v1063
        %1977 = vmatpush.msra.mxu0 %v1031
        %1978 = vmatpush.msra.mxu0 %v999
        %1979 = vmatpush.msra.mxu0 %v967
        %1980 = vmatpush.msra.mxu0 %v935
        %1981 = vmatpush.msra.mxu0 %v903
        %1982 = vmatpush.msra.mxu0 %v871
        %1983 = vmatpush.msra.mxu0 %v839
        %1984 = vmatpush.msra.mxu0 %v807
        %1985 = vmatpush.msra.mxu0 %v775
        %1986 = vmatmul.f32.gmra.mxu0 %v1347
        %v1987 = vpop.f32.mrf.mxu0
        %v1988 = vadd.f32 %v1968, %v1987
        %1989 = vdwg.mxu0
        %1990 = vmatpush.msra.mxu0 %v744
        %1991 = vmatpush.msra.mxu0 %v712
        %1992 = vmatpush.msra.mxu0 %v680
        %1993 = vmatpush.msra.mxu0 %v648
        %1994 = vmatpush.msra.mxu0 %v616
        %1995 = vmatpush.msra.mxu0 %v584
        %1996 = vmatpush.msra.mxu0 %v552
        %1997 = vmatpush.msra.mxu0 %v520
        %1998 = vmatpush.msra.mxu0 %v488
        %1999 = vmatpush.msra.mxu0 %v456
        %2000 = vmatpush.msra.mxu0 %v424
        %2001 = vmatpush.msra.mxu0 %v392
        %2002 = vmatpush.msra.mxu0 %v360
        %2003 = vmatpush.msra.mxu0 %v328
        %2004 = vmatpush.msra.mxu0 %v296
        %2005 = vmatpush.msra.mxu0 %v264
        %2006 = vmatmul.f32.gmra.mxu0 %v1346
        %v2007 = vpop.f32.mrf.mxu0
        %v2008 = vadd.f32 %v1296, %v2007
        %2009 = vdwg.mxu0
        %2010 = vmatpush.msra.mxu0 %v1256
        %2011 = vmatpush.msra.mxu0 %v1224
        %2012 = vmatpush.msra.mxu0 %v1192
        %2013 = vmatpush.msra.mxu0 %v1160
        %2014 = vmatpush.msra.mxu0 %v1128
        %2015 = vmatpush.msra.mxu0 %v1096
        %2016 = vmatpush.msra.mxu0 %v1064
        %2017 = vmatpush.msra.mxu0 %v1032
        %2018 = vmatpush.msra.mxu0 %v1000
        %2019 = vmatpush.msra.mxu0 %v968
        %2020 = vmatpush.msra.mxu0 %v936
        %2021 = vmatpush.msra.mxu0 %v904
        %2022 = vmatpush.msra.mxu0 %v872
        %2023 = vmatpush.msra.mxu0 %v840
        %2024 = vmatpush.msra.mxu0 %v808
        %2025 = vmatpush.msra.mxu0 %v776
        %2026 = vmatmul.f32.gmra.mxu0 %v1347
        %v2027 = vpop.f32.mrf.mxu0
        %v2028 = vadd.f32 %v2008, %v2027
        %2029 = vdwg.mxu0
        %2030 = vmatpush.msra.mxu0 %v745
        %2031 = vmatpush.msra.mxu0 %v713
        %2032 = vmatpush.msra.mxu0 %v681
        %2033 = vmatpush.msra.mxu0 %v649
        %2034 = vmatpush.msra.mxu0 %v617
        %2035 = vmatpush.msra.mxu0 %v585
        %2036 = vmatpush.msra.mxu0 %v553
        %2037 = vmatpush.msra.mxu0 %v521
        %2038 = vmatpush.msra.mxu0 %v489
        %2039 = vmatpush.msra.mxu0 %v457
        %2040 = vmatpush.msra.mxu0 %v425
        %2041 = vmatpush.msra.mxu0 %v393
        %2042 = vmatpush.msra.mxu0 %v361
        %2043 = vmatpush.msra.mxu0 %v329
        %2044 = vmatpush.msra.mxu0 %v297
        %2045 = vmatpush.msra.mxu0 %v265
        %2046 = vmatmul.f32.gmra.mxu0 %v1346
        %v2047 = vpop.f32.mrf.mxu0
        %v2048 = vadd.f32 %v1297, %v2047
        %2049 = vdwg.mxu0
        %2050 = vmatpush.msra.mxu0 %v1257
        %2051 = vmatpush.msra.mxu0 %v1225
        %2052 = vmatpush.msra.mxu0 %v1193
        %2053 = vmatpush.msra.mxu0 %v1161
        %2054 = vmatpush.msra.mxu0 %v1129
        %2055 = vmatpush.msra.mxu0 %v1097
        %2056 = vmatpush.msra.mxu0 %v1065
        %2057 = vmatpush.msra.mxu0 %v1033
        %2058 = vmatpush.msra.mxu0 %v1001
        %2059 = vmatpush.msra.mxu0 %v969
        %2060 = vmatpush.msra.mxu0 %v937
        %2061 = vmatpush.msra.mxu0 %v905
        %2062 = vmatpush.msra.mxu0 %v873
        %2063 = vmatpush.msra.mxu0 %v841
        %2064 = vmatpush.msra.mxu0 %v809
        %2065 = vmatpush.msra.mxu0 %v777
        %2066 = vmatmul.f32.gmra.mxu0 %v1347
        %v2067 = vpop.f32.mrf.mxu0
        %v2068 = vadd.f32 %v2048, %v2067
        %2069 = vdwg.mxu0
        %2070 = vmatpush.msra.mxu0 %v746
        %2071 = vmatpush.msra.mxu0 %v714
        %2072 = vmatpush.msra.mxu0 %v682
        %2073 = vmatpush.msra.mxu0 %v650
        %2074 = vmatpush.msra.mxu0 %v618
        %2075 = vmatpush.msra.mxu0 %v586
        %2076 = vmatpush.msra.mxu0 %v554
        %2077 = vmatpush.msra.mxu0 %v522
        %2078 = vmatpush.msra.mxu0 %v490
        %2079 = vmatpush.msra.mxu0 %v458
        %2080 = vmatpush.msra.mxu0 %v426
        %2081 = vmatpush.msra.mxu0 %v394
        %2082 = vmatpush.msra.mxu0 %v362
        %2083 = vmatpush.msra.mxu0 %v330
        %2084 = vmatpush.msra.mxu0 %v298
        %2085 = vmatpush.msra.mxu0 %v266
        %2086 = vmatmul.f32.gmra.mxu0 %v1346
        %v2087 = vpop.f32.mrf.mxu0
        %v2088 = vadd.f32 %v1298, %v2087
        %2089 = vdwg.mxu0
        %2090 = vmatpush.msra.mxu0 %v1258
        %2091 = vmatpush.msra.mxu0 %v1226
        %2092 = vmatpush.msra.mxu0 %v1194
        %2093 = vmatpush.msra.mxu0 %v1162
        %2094 = vmatpush.msra.mxu0 %v1130
        %2095 = vmatpush.msra.mxu0 %v1098
        %2096 = vmatpush.msra.mxu0 %v1066
        %2097 = vmatpush.msra.mxu0 %v1034
        %2098 = vmatpush.msra.mxu0 %v1002
        %2099 = vmatpush.msra.mxu0 %v970
        %2100 = vmatpush.msra.mxu0 %v938
        %2101 = vmatpush.msra.mxu0 %v906
        %2102 = vmatpush.msra.mxu0 %v874
        %2103 = vmatpush.msra.mxu0 %v842
        %2104 = vmatpush.msra.mxu0 %v810
        %2105 = vmatpush.msra.mxu0 %v778
        %2106 = vmatmul.f32.gmra.mxu0 %v1347
        %v2107 = vpop.f32.mrf.mxu0
        %v2108 = vadd.f32 %v2088, %v2107
        %2109 = vdwg.mxu0
        %2110 = vmatpush.msra.mxu0 %v747
        %2111 = vmatpush.msra.mxu0 %v715
        %2112 = vmatpush.msra.mxu0 %v683
        %2113 = vmatpush.msra.mxu0 %v651
        %2114 = vmatpush.msra.mxu0 %v619
        %2115 = vmatpush.msra.mxu0 %v587
        %2116 = vmatpush.msra.mxu0 %v555
        %2117 = vmatpush.msra.mxu0 %v523
        %2118 = vmatpush.msra.mxu0 %v491
        %2119 = vmatpush.msra.mxu0 %v459
        %2120 = vmatpush.msra.mxu0 %v427
        %2121 = vmatpush.msra.mxu0 %v395
        %2122 = vmatpush.msra.mxu0 %v363
        %2123 = vmatpush.msra.mxu0 %v331
        %2124 = vmatpush.msra.mxu0 %v299
        %2125 = vmatpush.msra.mxu0 %v267
        %2126 = vmatmul.f32.gmra.mxu0 %v1346
        %v2127 = vpop.f32.mrf.mxu0
        %v2128 = vadd.f32 %v1299, %v2127
        %2129 = vdwg.mxu0
        %2130 = vmatpush.msra.mxu0 %v1259
        %2131 = vmatpush.msra.mxu0 %v1227
        %2132 = vmatpush.msra.mxu0 %v1195
        %2133 = vmatpush.msra.mxu0 %v1163
        %2134 = vmatpush.msra.mxu0 %v1131
        %2135 = vmatpush.msra.mxu0 %v1099
        %2136 = vmatpush.msra.mxu0 %v1067
        %2137 = vmatpush.msra.mxu0 %v1035
        %2138 = vmatpush.msra.mxu0 %v1003
        %2139 = vmatpush.msra.mxu0 %v971
        %2140 = vmatpush.msra.mxu0 %v939
        %2141 = vmatpush.msra.mxu0 %v907
        %2142 = vmatpush.msra.mxu0 %v875
        %2143 = vmatpush.msra.mxu0 %v843
        %2144 = vmatpush.msra.mxu0 %v811
        %2145 = vmatpush.msra.mxu0 %v779
        %2146 = vmatmul.f32.gmra.mxu0 %v1347
        %v2147 = vpop.f32.mrf.mxu0
        %v2148 = vadd.f32 %v2128, %v2147
        %2149 = vdwg.mxu0
        %2150 = vmatpush.msra.mxu0 %v748
        %2151 = vmatpush.msra.mxu0 %v716
        %2152 = vmatpush.msra.mxu0 %v684
        %2153 = vmatpush.msra.mxu0 %v652
        %2154 = vmatpush.msra.mxu0 %v620
        %2155 = vmatpush.msra.mxu0 %v588
        %2156 = vmatpush.msra.mxu0 %v556
        %2157 = vmatpush.msra.mxu0 %v524
        %2158 = vmatpush.msra.mxu0 %v492
        %2159 = vmatpush.msra.mxu0 %v460
        %2160 = vmatpush.msra.mxu0 %v428
        %2161 = vmatpush.msra.mxu0 %v396
        %2162 = vmatpush.msra.mxu0 %v364
        %2163 = vmatpush.msra.mxu0 %v332
        %2164 = vmatpush.msra.mxu0 %v300
        %2165 = vmatpush.msra.mxu0 %v268
        %2166 = vmatmul.f32.gmra.mxu0 %v1346
        %v2167 = vpop.f32.mrf.mxu0
        %v2168 = vadd.f32 %v1300, %v2167
        %2169 = vdwg.mxu0
        %2170 = vmatpush.msra.mxu0 %v1260
        %2171 = vmatpush.msra.mxu0 %v1228
        %2172 = vmatpush.msra.mxu0 %v1196
        %2173 = vmatpush.msra.mxu0 %v1164
        %2174 = vmatpush.msra.mxu0 %v1132
        %2175 = vmatpush.msra.mxu0 %v1100
        %2176 = vmatpush.msra.mxu0 %v1068
        %2177 = vmatpush.msra.mxu0 %v1036
        %2178 = vmatpush.msra.mxu0 %v1004
        %2179 = vmatpush.msra.mxu0 %v972
        %2180 = vmatpush.msra.mxu0 %v940
        %2181 = vmatpush.msra.mxu0 %v908
        %2182 = vmatpush.msra.mxu0 %v876
        %2183 = vmatpush.msra.mxu0 %v844
        %2184 = vmatpush.msra.mxu0 %v812
        %2185 = vmatpush.msra.mxu0 %v780
        %2186 = vmatmul.f32.gmra.mxu0 %v1347
        %v2187 = vpop.f32.mrf.mxu0
        %v2188 = vadd.f32 %v2168, %v2187
        %2189 = vdwg.mxu0
        %2190 = vmatpush.msra.mxu0 %v749
        %2191 = vmatpush.msra.mxu0 %v717
        %2192 = vmatpush.msra.mxu0 %v685
        %2193 = vmatpush.msra.mxu0 %v653
        %2194 = vmatpush.msra.mxu0 %v621
        %2195 = vmatpush.msra.mxu0 %v589
        %2196 = vmatpush.msra.mxu0 %v557
        %2197 = vmatpush.msra.mxu0 %v525
        %2198 = vmatpush.msra.mxu0 %v493
        %2199 = vmatpush.msra.mxu0 %v461
        %2200 = vmatpush.msra.mxu0 %v429
        %2201 = vmatpush.msra.mxu0 %v397
        %2202 = vmatpush.msra.mxu0 %v365
        %2203 = vmatpush.msra.mxu0 %v333
        %2204 = vmatpush.msra.mxu0 %v301
        %2205 = vmatpush.msra.mxu0 %v269
        %2206 = vmatmul.f32.gmra.mxu0 %v1346
        %v2207 = vpop.f32.mrf.mxu0
        %v2208 = vadd.f32 %v1301, %v2207
        %2209 = vdwg.mxu0
        %2210 = vmatpush.msra.mxu0 %v1261
        %2211 = vmatpush.msra.mxu0 %v1229
        %2212 = vmatpush.msra.mxu0 %v1197
        %2213 = vmatpush.msra.mxu0 %v1165
        %2214 = vmatpush.msra.mxu0 %v1133
        %2215 = vmatpush.msra.mxu0 %v1101
        %2216 = vmatpush.msra.mxu0 %v1069
        %2217 = vmatpush.msra.mxu0 %v1037
        %2218 = vmatpush.msra.mxu0 %v1005
        %2219 = vmatpush.msra.mxu0 %v973
        %2220 = vmatpush.msra.mxu0 %v941
        %2221 = vmatpush.msra.mxu0 %v909
        %2222 = vmatpush.msra.mxu0 %v877
        %2223 = vmatpush.msra.mxu0 %v845
        %2224 = vmatpush.msra.mxu0 %v813
        %2225 = vmatpush.msra.mxu0 %v781
        %2226 = vmatmul.f32.gmra.mxu0 %v1347
        %v2227 = vpop.f32.mrf.mxu0
        %v2228 = vadd.f32 %v2208, %v2227
        %2229 = vdwg.mxu0
        %2230 = vmatpush.msra.mxu0 %v750
        %2231 = vmatpush.msra.mxu0 %v718
        %2232 = vmatpush.msra.mxu0 %v686
        %2233 = vmatpush.msra.mxu0 %v654
        %2234 = vmatpush.msra.mxu0 %v622
        %2235 = vmatpush.msra.mxu0 %v590
        %2236 = vmatpush.msra.mxu0 %v558
        %2237 = vmatpush.msra.mxu0 %v526
        %2238 = vmatpush.msra.mxu0 %v494
        %2239 = vmatpush.msra.mxu0 %v462
        %2240 = vmatpush.msra.mxu0 %v430
        %2241 = vmatpush.msra.mxu0 %v398
        %2242 = vmatpush.msra.mxu0 %v366
        %2243 = vmatpush.msra.mxu0 %v334
        %2244 = vmatpush.msra.mxu0 %v302
        %2245 = vmatpush.msra.mxu0 %v270
        %2246 = vmatmul.f32.gmra.mxu0 %v1346
        %v2247 = vpop.f32.mrf.mxu0
        %v2248 = vadd.f32 %v1302, %v2247
        %2249 = vdwg.mxu0
        %2250 = vmatpush.msra.mxu0 %v1262
        %2251 = vmatpush.msra.mxu0 %v1230
        %2252 = vmatpush.msra.mxu0 %v1198
        %2253 = vmatpush.msra.mxu0 %v1166
        %2254 = vmatpush.msra.mxu0 %v1134
        %2255 = vmatpush.msra.mxu0 %v1102
        %2256 = vmatpush.msra.mxu0 %v1070
        %2257 = vmatpush.msra.mxu0 %v1038
        %2258 = vmatpush.msra.mxu0 %v1006
        %2259 = vmatpush.msra.mxu0 %v974
        %2260 = vmatpush.msra.mxu0 %v942
        %2261 = vmatpush.msra.mxu0 %v910
        %2262 = vmatpush.msra.mxu0 %v878
        %2263 = vmatpush.msra.mxu0 %v846
        %2264 = vmatpush.msra.mxu0 %v814
        %2265 = vmatpush.msra.mxu0 %v782
        %2266 = vmatmul.f32.gmra.mxu0 %v1347
        %v2267 = vpop.f32.mrf.mxu0
        %v2268 = vadd.f32 %v2248, %v2267
        %2269 = vdwg.mxu0
        %2270 = vmatpush.msra.mxu0 %v751
        %2271 = vmatpush.msra.mxu0 %v719
        %2272 = vmatpush.msra.mxu0 %v687
        %2273 = vmatpush.msra.mxu0 %v655
        %2274 = vmatpush.msra.mxu0 %v623
        %2275 = vmatpush.msra.mxu0 %v591
        %2276 = vmatpush.msra.mxu0 %v559
        %2277 = vmatpush.msra.mxu0 %v527
        %2278 = vmatpush.msra.mxu0 %v495
        %2279 = vmatpush.msra.mxu0 %v463
        %2280 = vmatpush.msra.mxu0 %v431
        %2281 = vmatpush.msra.mxu0 %v399
        %2282 = vmatpush.msra.mxu0 %v367
        %2283 = vmatpush.msra.mxu0 %v335
        %2284 = vmatpush.msra.mxu0 %v303
        %2285 = vmatpush.msra.mxu0 %v271
        %2286 = vmatmul.f32.gmra.mxu0 %v1346
        %v2287 = vpop.f32.mrf.mxu0
        %v2288 = vadd.f32 %v1303, %v2287
        %2289 = vdwg.mxu0
        %2290 = vmatpush.msra.mxu0 %v1263
        %2291 = vmatpush.msra.mxu0 %v1231
        %2292 = vmatpush.msra.mxu0 %v1199
        %2293 = vmatpush.msra.mxu0 %v1167
        %2294 = vmatpush.msra.mxu0 %v1135
        %2295 = vmatpush.msra.mxu0 %v1103
        %2296 = vmatpush.msra.mxu0 %v1071
        %2297 = vmatpush.msra.mxu0 %v1039
        %2298 = vmatpush.msra.mxu0 %v1007
        %2299 = vmatpush.msra.mxu0 %v975
        %2300 = vmatpush.msra.mxu0 %v943
        %2301 = vmatpush.msra.mxu0 %v911
        %2302 = vmatpush.msra.mxu0 %v879
        %2303 = vmatpush.msra.mxu0 %v847
        %2304 = vmatpush.msra.mxu0 %v815
        %2305 = vmatpush.msra.mxu0 %v783
        %2306 = vmatmul.f32.gmra.mxu0 %v1347
        %v2307 = vpop.f32.mrf.mxu0
        %v2308 = vadd.f32 %v2288, %v2307
        %2309 = vdwg.mxu0
        %2310 = vmatpush.msra.mxu0 %v752
        %2311 = vmatpush.msra.mxu0 %v720
        %2312 = vmatpush.msra.mxu0 %v688
        %2313 = vmatpush.msra.mxu0 %v656
        %2314 = vmatpush.msra.mxu0 %v624
        %2315 = vmatpush.msra.mxu0 %v592
        %2316 = vmatpush.msra.mxu0 %v560
        %2317 = vmatpush.msra.mxu0 %v528
        %2318 = vmatpush.msra.mxu0 %v496
        %2319 = vmatpush.msra.mxu0 %v464
        %2320 = vmatpush.msra.mxu0 %v432
        %2321 = vmatpush.msra.mxu0 %v400
        %2322 = vmatpush.msra.mxu0 %v368
        %2323 = vmatpush.msra.mxu0 %v336
        %2324 = vmatpush.msra.mxu0 %v304
        %2325 = vmatpush.msra.mxu0 %v272
        %2326 = vmatmul.f32.gmra.mxu0 %v1346
        %v2327 = vpop.f32.mrf.mxu0
        %v2328 = vadd.f32 %v1304, %v2327
        %2329 = vdwg.mxu0
        %2330 = vmatpush.msra.mxu0 %v1264
        %2331 = vmatpush.msra.mxu0 %v1232
        %2332 = vmatpush.msra.mxu0 %v1200
        %2333 = vmatpush.msra.mxu0 %v1168
        %2334 = vmatpush.msra.mxu0 %v1136
        %2335 = vmatpush.msra.mxu0 %v1104
        %2336 = vmatpush.msra.mxu0 %v1072
        %2337 = vmatpush.msra.mxu0 %v1040
        %2338 = vmatpush.msra.mxu0 %v1008
        %2339 = vmatpush.msra.mxu0 %v976
        %2340 = vmatpush.msra.mxu0 %v944
        %2341 = vmatpush.msra.mxu0 %v912
        %2342 = vmatpush.msra.mxu0 %v880
        %2343 = vmatpush.msra.mxu0 %v848
        %2344 = vmatpush.msra.mxu0 %v816
        %2345 = vmatpush.msra.mxu0 %v784
        %2346 = vmatmul.f32.gmra.mxu0 %v1347
        %v2347 = vpop.f32.mrf.mxu0
        %v2348 = vadd.f32 %v2328, %v2347
        %2349 = vdwg.mxu0
        %2350 = vmatpush.msra.mxu0 %v753
        %2351 = vmatpush.msra.mxu0 %v721
        %2352 = vmatpush.msra.mxu0 %v689
        %2353 = vmatpush.msra.mxu0 %v657
        %2354 = vmatpush.msra.mxu0 %v625
        %2355 = vmatpush.msra.mxu0 %v593
        %2356 = vmatpush.msra.mxu0 %v561
        %2357 = vmatpush.msra.mxu0 %v529
        %2358 = vmatpush.msra.mxu0 %v497
        %2359 = vmatpush.msra.mxu0 %v465
        %2360 = vmatpush.msra.mxu0 %v433
        %2361 = vmatpush.msra.mxu0 %v401
        %2362 = vmatpush.msra.mxu0 %v369
        %2363 = vmatpush.msra.mxu0 %v337
        %2364 = vmatpush.msra.mxu0 %v305
        %2365 = vmatpush.msra.mxu0 %v273
        %2366 = vmatmul.f32.gmra.mxu0 %v1346
        %v2367 = vpop.f32.mrf.mxu0
        %v2368 = vadd.f32 %v1305, %v2367
        %2369 = vdwg.mxu0
        %2370 = vmatpush.msra.mxu0 %v1265
        %2371 = vmatpush.msra.mxu0 %v1233
        %2372 = vmatpush.msra.mxu0 %v1201
        %2373 = vmatpush.msra.mxu0 %v1169
        %2374 = vmatpush.msra.mxu0 %v1137
        %2375 = vmatpush.msra.mxu0 %v1105
        %2376 = vmatpush.msra.mxu0 %v1073
        %2377 = vmatpush.msra.mxu0 %v1041
        %2378 = vmatpush.msra.mxu0 %v1009
        %2379 = vmatpush.msra.mxu0 %v977
        %2380 = vmatpush.msra.mxu0 %v945
        %2381 = vmatpush.msra.mxu0 %v913
        %2382 = vmatpush.msra.mxu0 %v881
        %2383 = vmatpush.msra.mxu0 %v849
        %2384 = vmatpush.msra.mxu0 %v817
        %2385 = vmatpush.msra.mxu0 %v785
        %2386 = vmatmul.f32.gmra.mxu0 %v1347
        %v2387 = vpop.f32.mrf.mxu0
        %v2388 = vadd.f32 %v2368, %v2387
        %2389 = vdwg.mxu0
        %2390 = vmatpush.msra.mxu0 %v754
        %2391 = vmatpush.msra.mxu0 %v722
        %2392 = vmatpush.msra.mxu0 %v690
        %2393 = vmatpush.msra.mxu0 %v658
        %2394 = vmatpush.msra.mxu0 %v626
        %2395 = vmatpush.msra.mxu0 %v594
        %2396 = vmatpush.msra.mxu0 %v562
        %2397 = vmatpush.msra.mxu0 %v530
        %2398 = vmatpush.msra.mxu0 %v498
        %2399 = vmatpush.msra.mxu0 %v466
        %2400 = vmatpush.msra.mxu0 %v434
        %2401 = vmatpush.msra.mxu0 %v402
        %2402 = vmatpush.msra.mxu0 %v370
        %2403 = vmatpush.msra.mxu0 %v338
        %2404 = vmatpush.msra.mxu0 %v306
        %2405 = vmatpush.msra.mxu0 %v274
        %2406 = vmatmul.f32.gmra.mxu0 %v1346
        %v2407 = vpop.f32.mrf.mxu0
        %v2408 = vadd.f32 %v1306, %v2407
        %2409 = vdwg.mxu0
        %2410 = vmatpush.msra.mxu0 %v1266
        %2411 = vmatpush.msra.mxu0 %v1234
        %2412 = vmatpush.msra.mxu0 %v1202
        %2413 = vmatpush.msra.mxu0 %v1170
        %2414 = vmatpush.msra.mxu0 %v1138
        %2415 = vmatpush.msra.mxu0 %v1106
        %2416 = vmatpush.msra.mxu0 %v1074
        %2417 = vmatpush.msra.mxu0 %v1042
        %2418 = vmatpush.msra.mxu0 %v1010
        %2419 = vmatpush.msra.mxu0 %v978
        %2420 = vmatpush.msra.mxu0 %v946
        %2421 = vmatpush.msra.mxu0 %v914
        %2422 = vmatpush.msra.mxu0 %v882
        %2423 = vmatpush.msra.mxu0 %v850
        %2424 = vmatpush.msra.mxu0 %v818
        %2425 = vmatpush.msra.mxu0 %v786
        %2426 = vmatmul.f32.gmra.mxu0 %v1347
        %v2427 = vpop.f32.mrf.mxu0
        %v2428 = vadd.f32 %v2408, %v2427
        %2429 = vdwg.mxu0
        %2430 = vmatpush.msra.mxu0 %v755
        %2431 = vmatpush.msra.mxu0 %v723
        %2432 = vmatpush.msra.mxu0 %v691
        %2433 = vmatpush.msra.mxu0 %v659
        %2434 = vmatpush.msra.mxu0 %v627
        %2435 = vmatpush.msra.mxu0 %v595
        %2436 = vmatpush.msra.mxu0 %v563
        %2437 = vmatpush.msra.mxu0 %v531
        %2438 = vmatpush.msra.mxu0 %v499
        %2439 = vmatpush.msra.mxu0 %v467
        %2440 = vmatpush.msra.mxu0 %v435
        %2441 = vmatpush.msra.mxu0 %v403
        %2442 = vmatpush.msra.mxu0 %v371
        %2443 = vmatpush.msra.mxu0 %v339
        %2444 = vmatpush.msra.mxu0 %v307
        %2445 = vmatpush.msra.mxu0 %v275
        %2446 = vmatmul.f32.gmra.mxu0 %v1346
        %v2447 = vpop.f32.mrf.mxu0
        %v2448 = vadd.f32 %v1307, %v2447
        %2449 = vdwg.mxu0
        %2450 = vmatpush.msra.mxu0 %v1267
        %2451 = vmatpush.msra.mxu0 %v1235
        %2452 = vmatpush.msra.mxu0 %v1203
        %2453 = vmatpush.msra.mxu0 %v1171
        %2454 = vmatpush.msra.mxu0 %v1139
        %2455 = vmatpush.msra.mxu0 %v1107
        %2456 = vmatpush.msra.mxu0 %v1075
        %2457 = vmatpush.msra.mxu0 %v1043
        %2458 = vmatpush.msra.mxu0 %v1011
        %2459 = vmatpush.msra.mxu0 %v979
        %2460 = vmatpush.msra.mxu0 %v947
        %2461 = vmatpush.msra.mxu0 %v915
        %2462 = vmatpush.msra.mxu0 %v883
        %2463 = vmatpush.msra.mxu0 %v851
        %2464 = vmatpush.msra.mxu0 %v819
        %2465 = vmatpush.msra.mxu0 %v787
        %2466 = vmatmul.f32.gmra.mxu0 %v1347
        %v2467 = vpop.f32.mrf.mxu0
        %v2468 = vadd.f32 %v2448, %v2467
        %2469 = vdwg.mxu0
        %2470 = vmatpush.msra.mxu0 %v756
        %2471 = vmatpush.msra.mxu0 %v724
        %2472 = vmatpush.msra.mxu0 %v692
        %2473 = vmatpush.msra.mxu0 %v660
        %2474 = vmatpush.msra.mxu0 %v628
        %2475 = vmatpush.msra.mxu0 %v596
        %2476 = vmatpush.msra.mxu0 %v564
        %2477 = vmatpush.msra.mxu0 %v532
        %2478 = vmatpush.msra.mxu0 %v500
        %2479 = vmatpush.msra.mxu0 %v468
        %2480 = vmatpush.msra.mxu0 %v436
        %2481 = vmatpush.msra.mxu0 %v404
        %2482 = vmatpush.msra.mxu0 %v372
        %2483 = vmatpush.msra.mxu0 %v340
        %2484 = vmatpush.msra.mxu0 %v308
        %2485 = vmatpush.msra.mxu0 %v276
        %2486 = vmatmul.f32.gmra.mxu0 %v1346
        %v2487 = vpop.f32.mrf.mxu0
        %v2488 = vadd.f32 %v1308, %v2487
        %2489 = vdwg.mxu0
        %2490 = vmatpush.msra.mxu0 %v1268
        %2491 = vmatpush.msra.mxu0 %v1236
        %2492 = vmatpush.msra.mxu0 %v1204
        %2493 = vmatpush.msra.mxu0 %v1172
        %2494 = vmatpush.msra.mxu0 %v1140
        %2495 = vmatpush.msra.mxu0 %v1108
        %2496 = vmatpush.msra.mxu0 %v1076
        %2497 = vmatpush.msra.mxu0 %v1044
        %2498 = vmatpush.msra.mxu0 %v1012
        %2499 = vmatpush.msra.mxu0 %v980
        %2500 = vmatpush.msra.mxu0 %v948
        %2501 = vmatpush.msra.mxu0 %v916
        %2502 = vmatpush.msra.mxu0 %v884
        %2503 = vmatpush.msra.mxu0 %v852
        %2504 = vmatpush.msra.mxu0 %v820
        %2505 = vmatpush.msra.mxu0 %v788
        %2506 = vmatmul.f32.gmra.mxu0 %v1347
        %v2507 = vpop.f32.mrf.mxu0
        %v2508 = vadd.f32 %v2488, %v2507
        %2509 = vdwg.mxu0
        %2510 = vmatpush.msra.mxu0 %v757
        %2511 = vmatpush.msra.mxu0 %v725
        %2512 = vmatpush.msra.mxu0 %v693
        %2513 = vmatpush.msra.mxu0 %v661
        %2514 = vmatpush.msra.mxu0 %v629
        %2515 = vmatpush.msra.mxu0 %v597
        %2516 = vmatpush.msra.mxu0 %v565
        %2517 = vmatpush.msra.mxu0 %v533
        %2518 = vmatpush.msra.mxu0 %v501
        %2519 = vmatpush.msra.mxu0 %v469
        %2520 = vmatpush.msra.mxu0 %v437
        %2521 = vmatpush.msra.mxu0 %v405
        %2522 = vmatpush.msra.mxu0 %v373
        %2523 = vmatpush.msra.mxu0 %v341
        %2524 = vmatpush.msra.mxu0 %v309
        %2525 = vmatpush.msra.mxu0 %v277
        %2526 = vmatmul.f32.gmra.mxu0 %v1346
        %v2527 = vpop.f32.mrf.mxu0
        %v2528 = vadd.f32 %v1309, %v2527
        %2529 = vdwg.mxu0
        %2530 = vmatpush.msra.mxu0 %v1269
        %2531 = vmatpush.msra.mxu0 %v1237
        %2532 = vmatpush.msra.mxu0 %v1205
        %2533 = vmatpush.msra.mxu0 %v1173
        %2534 = vmatpush.msra.mxu0 %v1141
        %2535 = vmatpush.msra.mxu0 %v1109
        %2536 = vmatpush.msra.mxu0 %v1077
        %2537 = vmatpush.msra.mxu0 %v1045
        %2538 = vmatpush.msra.mxu0 %v1013
        %2539 = vmatpush.msra.mxu0 %v981
        %2540 = vmatpush.msra.mxu0 %v949
        %2541 = vmatpush.msra.mxu0 %v917
        %2542 = vmatpush.msra.mxu0 %v885
        %2543 = vmatpush.msra.mxu0 %v853
        %2544 = vmatpush.msra.mxu0 %v821
        %2545 = vmatpush.msra.mxu0 %v789
        %2546 = vmatmul.f32.gmra.mxu0 %v1347
        %v2547 = vpop.f32.mrf.mxu0
        %v2548 = vadd.f32 %v2528, %v2547
        %2549 = vdwg.mxu0
        %2550 = vmatpush.msra.mxu0 %v758
        %2551 = vmatpush.msra.mxu0 %v726
        %2552 = vmatpush.msra.mxu0 %v694
        %2553 = vmatpush.msra.mxu0 %v662
        %2554 = vmatpush.msra.mxu0 %v630
        %2555 = vmatpush.msra.mxu0 %v598
        %2556 = vmatpush.msra.mxu0 %v566
        %2557 = vmatpush.msra.mxu0 %v534
        %2558 = vmatpush.msra.mxu0 %v502
        %2559 = vmatpush.msra.mxu0 %v470
        %2560 = vmatpush.msra.mxu0 %v438
        %2561 = vmatpush.msra.mxu0 %v406
        %2562 = vmatpush.msra.mxu0 %v374
        %2563 = vmatpush.msra.mxu0 %v342
        %2564 = vmatpush.msra.mxu0 %v310
        %2565 = vmatpush.msra.mxu0 %v278
        %2566 = vmatmul.f32.gmra.mxu0 %v1346
        %v2567 = vpop.f32.mrf.mxu0
        %v2568 = vadd.f32 %v1310, %v2567
        %2569 = vdwg.mxu0
        %2570 = vmatpush.msra.mxu0 %v1270
        %2571 = vmatpush.msra.mxu0 %v1238
        %2572 = vmatpush.msra.mxu0 %v1206
        %2573 = vmatpush.msra.mxu0 %v1174
        %2574 = vmatpush.msra.mxu0 %v1142
        %2575 = vmatpush.msra.mxu0 %v1110
        %2576 = vmatpush.msra.mxu0 %v1078
        %2577 = vmatpush.msra.mxu0 %v1046
        %2578 = vmatpush.msra.mxu0 %v1014
        %2579 = vmatpush.msra.mxu0 %v982
        %2580 = vmatpush.msra.mxu0 %v950
        %2581 = vmatpush.msra.mxu0 %v918
        %2582 = vmatpush.msra.mxu0 %v886
        %2583 = vmatpush.msra.mxu0 %v854
        %2584 = vmatpush.msra.mxu0 %v822
        %2585 = vmatpush.msra.mxu0 %v790
        %2586 = vmatmul.f32.gmra.mxu0 %v1347
        %v2587 = vpop.f32.mrf.mxu0
        %v2588 = vadd.f32 %v2568, %v2587
        %2589 = vdwg.mxu0
        %2590 = vmatpush.msra.mxu0 %v759
        %2591 = vmatpush.msra.mxu0 %v727
        %2592 = vmatpush.msra.mxu0 %v695
        %2593 = vmatpush.msra.mxu0 %v663
        %2594 = vmatpush.msra.mxu0 %v631
        %2595 = vmatpush.msra.mxu0 %v599
        %2596 = vmatpush.msra.mxu0 %v567
        %2597 = vmatpush.msra.mxu0 %v535
        %2598 = vmatpush.msra.mxu0 %v503
        %2599 = vmatpush.msra.mxu0 %v471
        %2600 = vmatpush.msra.mxu0 %v439
        %2601 = vmatpush.msra.mxu0 %v407
        %2602 = vmatpush.msra.mxu0 %v375
        %2603 = vmatpush.msra.mxu0 %v343
        %2604 = vmatpush.msra.mxu0 %v311
        %2605 = vmatpush.msra.mxu0 %v279
        %2606 = vmatmul.f32.gmra.mxu0 %v1346
        %v2607 = vpop.f32.mrf.mxu0
        %v2608 = vadd.f32 %v1311, %v2607
        %2609 = vdwg.mxu0
        %2610 = vmatpush.msra.mxu0 %v1271
        %2611 = vmatpush.msra.mxu0 %v1239
        %2612 = vmatpush.msra.mxu0 %v1207
        %2613 = vmatpush.msra.mxu0 %v1175
        %2614 = vmatpush.msra.mxu0 %v1143
        %2615 = vmatpush.msra.mxu0 %v1111
        %2616 = vmatpush.msra.mxu0 %v1079
        %2617 = vmatpush.msra.mxu0 %v1047
        %2618 = vmatpush.msra.mxu0 %v1015
        %2619 = vmatpush.msra.mxu0 %v983
        %2620 = vmatpush.msra.mxu0 %v951
        %2621 = vmatpush.msra.mxu0 %v919
        %2622 = vmatpush.msra.mxu0 %v887
        %2623 = vmatpush.msra.mxu0 %v855
        %2624 = vmatpush.msra.mxu0 %v823
        %2625 = vmatpush.msra.mxu0 %v791
        %2626 = vmatmul.f32.gmra.mxu0 %v1347
        %v2627 = vpop.f32.mrf.mxu0
        %v2628 = vadd.f32 %v2608, %v2627
        %2629 = vdwg.mxu0
        %v2630 = vmax.f32 %v1388, 0.0
        %v2631 = vmax.f32 %v1428, 0.0
        %v2632 = vmax.f32 %v1468, 0.0
        %v2633 = vmax.f32 %v1508, 0.0
        %v2634 = vmax.f32 %v1548, 0.0
        %v2635 = vmax.f32 %v1588, 0.0
        %v2636 = vmax.f32 %v1628, 0.0
        %v2637 = vmax.f32 %v1668, 0.0
        %v2638 = vmax.f32 %v1708, 0.0
        %v2639 = vmax.f32 %v1748, 0.0
        %v2640 = vmax.f32 %v1788, 0.0
        %v2641 = vmax.f32 %v1828, 0.0
        %v2642 = vmax.f32 %v1868, 0.0
        %v2643 = vmax.f32 %v1908, 0.0
        %v2644 = vmax.f32 %v1948, 0.0
        %v2645 = vmax.f32 %v1988, 0.0
        %v2646 = vmax.f32 %v2028, 0.0
        %v2647 = vmax.f32 %v2068, 0.0
        %v2648 = vmax.f32 %v2108, 0.0
        %v2649 = vmax.f32 %v2148, 0.0
        %v2650 = vmax.f32 %v2188, 0.0
        %v2651 = vmax.f32 %v2228, 0.0
        %v2652 = vmax.f32 %v2268, 0.0
        %v2653 = vmax.f32 %v2308, 0.0
        %v2654 = vmax.f32 %v2348, 0.0
        %v2655 = vmax.f32 %v2388, 0.0
        %v2656 = vmax.f32 %v2428, 0.0
        %v2657 = vmax.f32 %v2468, 0.0
        %v2658 = vmax.f32 %v2508, 0.0
        %v2659 = vmax.f32 %v2548, 0.0
        %v2660 = vmax.f32 %v2588, 0.0
        %v2661 = vmax.f32 %v2628, 0.0
        %v2694 = vrot.slane %v2631, 6
        %v2695 = vrot.slane %v2632, 4
        %v2696 = vrot.slane %v2633, 2
        %v2697 = vrot.slane %v2635, 6
        %v2698 = vrot.slane %v2636, 4
        %v2699 = vrot.slane %v2637, 2
        %v2700 = vrot.slane %v2639, 6
        %v2701 = vrot.slane %v2640, 4
        %v2702 = vrot.slane %v2641, 2
        %v2703 = vrot.slane %v2643, 6
        %v2704 = vrot.slane %v2644, 4
        %v2705 = vrot.slane %v2645, 2
        %v2706 = vrot.slane %v2647, 6
        %v2707 = vrot.slane %v2648, 4
        %v2708 = vrot.slane %v2649, 2
        %v2709 = vrot.slane %v2651, 6
        %v2710 = vrot.slane %v2652, 4
        %v2711 = vrot.slane %v2653, 2
        %v2712 = vrot.slane %v2655, 6
        %v2713 = vrot.slane %v2656, 4
        %v2714 = vrot.slane %v2657, 2
        %v2715 = vrot.slane %v2659, 6
        %v2716 = vrot.slane %v2660, 4
        %v2717 = vrot.slane %v2661, 2
        %vm2718 = vcmask 1041408
        %v2719 = vsel %vm2718, %v2630, %v2694
        %vm2720 = vcmask 1045508
        %v2721 = vsel %vm2720, %v2695, %v2696
        %vm2722 = vcmask 1043456
        %v2723 = vsel %vm2722, %v2719, %v2721
        %v2724 = vsel %vm2718, %v2634, %v2697
        %v2725 = vsel %vm2720, %v2698, %v2699
        %v2726 = vsel %vm2722, %v2724, %v2725
        %v2727 = vsel %vm2718, %v2638, %v2700
        %v2728 = vsel %vm2720, %v2701, %v2702
        %v2729 = vsel %vm2722, %v2727, %v2728
        %v2730 = vsel %vm2718, %v2642, %v2703
        %v2731 = vsel %vm2720, %v2704, %v2705
        %v2732 = vsel %vm2722, %v2730, %v2731
        %v2733 = vsel %vm2718, %v2646, %v2706
        %v2734 = vsel %vm2720, %v2707, %v2708
        %v2735 = vsel %vm2722, %v2733, %v2734
        %v2736 = vsel %vm2718, %v2650, %v2709
        %v2737 = vsel %vm2720, %v2710, %v2711
        %v2738 = vsel %vm2722, %v2736, %v2737
        %v2739 = vsel %vm2718, %v2654, %v2712
        %v2740 = vsel %vm2720, %v2713, %v2714
        %v2741 = vsel %vm2722, %v2739, %v2740
        %v2742 = vsel %vm2718, %v2658, %v2715
        %v2743 = vsel %vm2720, %v2716, %v2717
        %v2744 = vsel %vm2722, %v2742, %v2743
        %2753 = vst [vmem:[%s245] sm:$0xff] %v2723
        %2754 = vst [vmem:[%s245 + $0x8] sm:$0xff] %v2726
        %2755 = vst [vmem:[%s245 + $0x10] sm:$0xff] %v2729
        %2756 = vst [vmem:[%s245 + $0x18] sm:$0xff] %v2732
        %2757 = vst [vmem:[%s245 + $0x20] sm:$0xff] %v2735
        %2758 = vst [vmem:[%s245 + $0x28] sm:$0xff] %v2738
        %2759 = vst [vmem:[%s245 + $0x30] sm:$0xff] %v2741
        %2760 = vst [vmem:[%s245 + $0x38] sm:$0xff] %v2744
        %s2761 = smul.u32 32, %s18
        %p2762 = scmp.lt.s32.totalorder %s2761, 191
        %s2763 = scalar_select %p2762, %s2761, 191
        %s2764 = smul.addr %s2763, 2
        %s2765 = scalar_lea.vmem %s3, %s2764
        // Predicated region
        $region45: #{decoder_forward.2} parent=31 // pred_check
          %p2766 = pneg %p109
        $region46: #{decoder_forward.2} parent=31 // pred_check_branch
          %2768 = sbr.rel (%p2766) target = $region48
        $region47: #{decoder_forward.2} parent=31 // pred_region
          %s2769 = smul.u32 32, %s18
        $region48: #{decoder_forward.2} parent=31 // pred_fallthru
          _
      $region32: #{decoder_forward.2} parent=5 // pred_fallthru
        _
      %p2770 = scmp.le.s32.totalorder 2, %s13
      // Predicated region
      $region49: #{decoder_forward.2} parent=5 // pred_check
        %p2771 = pneg %p2770
      $region50: #{decoder_forward.2} parent=5 // pred_check_branch
        %2773 = sbr.rel (%p2771) target = $region52
      $region51: #{decoder_forward.2} parent=5 // pred_region
        %s2774 = ssub.s32 %s13, 2
        // Predicated region
        $region53: #{decoder_forward.2} parent=51 // pred_check
          %p2775 = pneg %p115
        $region54: #{decoder_forward.2} parent=51 // pred_check_branch
          %2777 = sbr.rel (%p2775) target = $region56
        $region55: #{decoder_forward.2} parent=51 // pred_region
          %s2778 = smul.u32 32, %s19
          %p2779 = scmp.lt.s32.totalorder %s2778, 191
          %s2780 = scalar_select %p2779, %s2778, 191
          %s2781 = smul.addr %s2780, 2
          %s2782 = scalar_lea.vmem %s3, %s2781
        $region56: #{decoder_forward.2} parent=51 // pred_fallthru
          _
      $region52: #{decoder_forward.2} parent=5 // pred_fallthru
        _
    $region6: #{decoder_forward.2} parent=1 // loop_footer
      %s17 = sadd.s32 1, %s13
    $region7: #{decoder_forward.2} parent=1 // loop_footer_branch
      %12 = sbr.rel target = $region3
    $region8: #{decoder_forward.2} parent=1 // loop_exit
      _
    %2783 = vsyncpa [#allocation3], 1
    %s2784 = scalar_lea.sflag [#allocation3], 1
    %2785 = vsyncpa %s2784, 1
    %2786 = vsyncpa [#allocation5], 1
    %s2787 = scalar_lea.sflag [#allocation5], 1
    %2788 = vsyncpa %s2787, 1

</llo_original>
